<compile_context>
chip_gen: v6e
topology: v6e:2x2x1
jax: 0.10.0
libtpu: 0.0.40
codegen_flags: <defaults>
</compile_context>

<pallas_src>
import functools

import jax
import jax.numpy as jnp
from jax.experimental import pallas as pl
from jax.experimental.pallas import tpu as pltpu

_LANE = 128


def _round_up(x, m):
    return ((x + m - 1) // m) * m


def _cdiv(a, b):
    return -(-a // b)


def _pad2d(a, rows, cols):
    pr = rows - a.shape[0]
    pc = cols - a.shape[1]
    if pr == 0 and pc == 0:
        return a
    return jnp.pad(a, ((0, pr), (0, pc)))


# ---------------------------------------------------------------------------
# One-time hardware / capability probes (outside the hot path).
# ---------------------------------------------------------------------------
@functools.lru_cache(maxsize=1)
def _tpu_kind():
    try:
        for d in jax.devices():
            if d.platform == "tpu":
                return d.device_kind.lower()
    except Exception:
        pass
    return ""


@functools.lru_cache(maxsize=1)
def _tensorcores_per_chip():
    # v7x exposes 2 TensorCores per chip; v5e/v6e have 1.
    kind = _tpu_kind()
    return 2 if ("v7" in kind or "7x" in kind) else 1


@functools.lru_cache(maxsize=1)
def _vmem_capacity_bytes():
    # Device-aware VMEM budget (v7x: 64 MiB per TC, v5e/v6e: 128 MiB).
    try:
        cap = int(getattr(pltpu.get_tpu_info(), "vmem_capacity_bytes", 0))
        if cap > 0:
            return cap
    except Exception:
        pass
    return 64 * 2 ** 20  # conservative fallback (v7x per-core size)


@functools.lru_cache(maxsize=1)
def _pipeline_mode_supported():
    """One-time feature probe: does this JAX support BlockSpec pipeline_mode
    (pl.Buffered(1)) for constant-index blocks?  Compiles one trivial kernel
    mirroring the real usage; errors from the real kernel are never masked."""
    if not hasattr(pl, "Buffered"):
        return False

    def _probe_kernel(x_ref, b_ref, o_ref):
        o_ref[...] = x_ref[...] + b_ref[...]

    try:
        fn = pl.pallas_call(
            _probe_kernel,
            out_shape=jax.ShapeDtypeStruct((16, _LANE), jnp.float32),
            grid=(2,),
            in_specs=[
                pl.BlockSpec((8, _LANE), lambda i: (i, 0)),
                pl.BlockSpec((1, _LANE), lambda i: (0, 0),
                             pipeline_mode=pl.Buffered(1)),
            ],
            out_specs=pl.BlockSpec((8, _LANE), lambda i: (i, 0)),
        )
        jax.jit(fn).lower(jnp.zeros((16, _LANE), jnp.float32),
                          jnp.zeros((1, _LANE), jnp.float32)).compile()
        return True
    except Exception:
        return False


# ---------------------------------------------------------------------------
# Kernel
# ---------------------------------------------------------------------------
def _mlp_kernel(x_ref, w1_ref, b1_ref, w2_ref, b2_ref, w3_ref, b3_ref, o_ref):
    """Fused 3-layer MLP + sigmoid on one batch tile (eval-mode dropout).

    Matmul operands are in the storage dtype (bf16 by default); accumulation
    is forced to f32 via preferred_element_type.  Bias add / ReLU run in f32
    on the VPU.  The sigmoid is exp + approximate reciprocal so both land on
    the (otherwise idle) EUP slot.  Only the true nlabel output columns are
    activated and stored; lane padding of the last matmul never leaves VMEM.
    """
    mm_dtype = w1_ref.dtype
    nlabel = o_ref.shape[1]

    x = x_ref[...]                                              # (TB, Dp)

    h1 = jnp.dot(x, w1_ref[...], preferred_element_type=jnp.float32)
    h1 = jnp.maximum(h1 + b1_ref[...], 0.0)     # ReLU; dropout = identity (eval)

    h2 = jnp.dot(h1.astype(mm_dtype), w2_ref[...],
                 preferred_element_type=jnp.float32)
    h2 = jnp.maximum(h2 + b2_ref[...], 0.0)     # ReLU; dropout = identity (eval)

    logits = jnp.dot(h2.astype(mm_dtype), w3_ref[...],
                     preferred_element_type=jnp.float32)
    logits = logits + b3_ref[...]

    # sigmoid(z) = 1 / (1 + exp(-z)) via EUP exp + EUP approximate reciprocal.
    o_ref[...] = pl.reciprocal(1.0 + jnp.exp(-logits[:, :nlabel]),
                               approx=True).astype(o_ref.dtype)


# ---------------------------------------------------------------------------
# pallas_call wrapper
# ---------------------------------------------------------------------------
@functools.partial(
    jax.jit,
    static_argnames=("block_n", "matmul_dtype", "single_buffer_weights",
                     "core_parallel", "vmem_cap"))
def _forward_impl(x, w1, b1, w2, b2, w3, b3, *, block_n, matmul_dtype,
                  single_buffer_weights, core_parallel, vmem_cap):
    n, d_in = x.shape
    h = w1.shape[1]
    nlabel = w3.shape[1]
    mm_size = jnp.dtype(matmul_dtype).itemsize

    # Contraction/lane dims are padded to 128 multiples so the matmuls stay
    # lane-dense, but the OUTPUT keeps its true nlabel width so only
    # n_pad*nlabel*4 bytes ever hit HBM.  Inputs are cast to the matmul dtype
    # BEFORE padding (halves wrapper-side pad traffic); zero padding is exact
    # (relu(0)=0, padded weight rows/cols contribute nothing).
    d_pad = _round_up(d_in, _LANE)
    h_pad = _round_up(h, _LANE)
    out_pad = _round_up(nlabel, _LANE)          # lane padding for the last matmul only
    n_pad = block_n * _cdiv(n, block_n)

    x_p = _pad2d(x.astype(matmul_dtype), n_pad, d_pad)
    w1_p = _pad2d(w1.astype(matmul_dtype), d_pad, h_pad)
    b1_p = _pad2d(b1, 1, h_pad)                 # biases stay f32
    w2_p = _pad2d(w2.astype(matmul_dtype), h_pad, h_pad)
    b2_p = _pad2d(b2, 1, h_pad)
    w3_p = _pad2d(w3.astype(matmul_dtype), h_pad, out_pad)
    b3_p = _pad2d(b3, 1, out_pad)

    grid = (n_pad // block_n,)

    # Constant-index weight/bias blocks: single-buffer them when supported.
    const_kwargs = (dict(pipeline_mode=pl.Buffered(1))
                    if single_buffer_weights else {})

    # --- advisory cost estimate ---------------------------------------------
    flops = 2 * n_pad * (d_pad * h_pad + h_pad * h_pad + h_pad * out_pad)
    weight_hbm = ((w1_p.size + w2_p.size + w3_p.size) * mm_size
                  + (b1_p.size + b2_p.size + b3_p.size) * 4)
    bytes_accessed = x_p.size * mm_size + weight_hbm + n_pad * nlabel * 4
    cost = pl.CostEstimate(flops=flops,
                           transcendentals=2 * n_pad * nlabel,   # exp + rcp
                           bytes_accessed=bytes_accessed)

    # --- device-aware VMEM budget: ~2x the actual per-tile footprint ---------
    def vbytes(rows, cols, itemsize, bufs=1):
        sub = 8 * (4 // itemsize)               # sublane packing (f32:8, bf16:16)
        return bufs * _round_up(rows, sub) * _round_up(cols, _LANE) * itemsize

    wbufs = 1 if single_buffer_weights else 2
    weight_vmem = (vbytes(d_pad, h_pad, mm_size, wbufs)
                   + vbytes(h_pad, h_pad, mm_size, wbufs)
                   + vbytes(h_pad, out_pad, mm_size, wbufs)
                   + 2 * vbytes(1, h_pad, 4, wbufs)
                   + vbytes(1, out_pad, 4, wbufs))
    vmem_est = (vbytes(block_n, d_pad, mm_size, 2)    # x tile, double-buffered
                + vbytes(block_n, nlabel, 4, 2)       # out tile, double-buffered
                + weight_vmem
                + 5 * vbytes(block_n, h_pad, 4))      # live f32/bf16 intermediates
    if vmem_est > int(0.8 * vmem_cap):
        # TODO(synk): add the K-tiling grid axis before such shapes are used.
        raise ValueError(
            f"classifier2 kernel needs ~{vmem_est} bytes of VMEM but only "
            f"{vmem_cap} are available on this chip; reduce block_n or add "
            "K-tiling for the resident weights.")
    vmem_limit = int(min(int(0.9 * vmem_cap),
                         max(2 * vmem_est, vmem_est + (2 << 20))))

    if core_parallel and hasattr(pltpu, "CORE_PARALLEL"):
        dim_sem = (pltpu.CORE_PARALLEL,)        # actually engage both v7x TCs
    else:
        dim_sem = ("parallel",)

    out_p = pl.pallas_call(
        _mlp_kernel,
        out_shape=jax.ShapeDtypeStruct((n_pad, nlabel), jnp.float32),
        grid_spec=pltpu.PrefetchScalarGridSpec(
            num_scalar_prefetch=0,
            grid=grid,
            in_specs=[
                # x: tiled over the batch only.
                pl.BlockSpec((block_n, d_pad), lambda i: (i, 0)),
                # weights / biases: full arrays, resident across the grid.
                pl.BlockSpec((d_pad, h_pad), lambda i: (0, 0), **const_kwargs),
                pl.BlockSpec((1, h_pad), lambda i: (0, 0), **const_kwargs),
                pl.BlockSpec((h_pad, h_pad), lambda i: (0, 0), **const_kwargs),
                pl.BlockSpec((1, h_pad), lambda i: (0, 0), **const_kwargs),
                pl.BlockSpec((h_pad, out_pad), lambda i: (0, 0), **const_kwargs),
                pl.BlockSpec((1, out_pad), lambda i: (0, 0), **const_kwargs),
            ],
            # Output block last dim equals the full (unpadded) nlabel extent.
            out_specs=pl.BlockSpec((block_n, nlabel), lambda i: (i, 0)),
        ),
        compiler_params=pltpu.CompilerParams(
            dimension_semantics=dim_sem,
            vmem_limit_bytes=vmem_limit,
            # Let XLA fuse the wrapper-side pad/cast into the input DMA.
            allow_input_fusion=[True] * 7,
        ),
        cost_estimate=cost,
    )(x_p, w1_p, b1_p, w2_p, b2_p, w3_p, b3_p)

    return out_p[:n]                            # only padded rows are dropped


def classifier2_forward(x, w1, b1, w2, b2, w3, b3, *, block_n=1024,
                        matmul_dtype=jnp.bfloat16):
    """Pallas-fused forward pass of `_classifier2` (eval-mode dropout).

    Zero-pads ragged batches; keeps the output at its true nlabel width; only
    splits the batch tile across TensorCores on multi-TC chips (v7x), while
    v5e/v6e keep the single largest tile.
    """
    n = x.shape[0]
    sub = 16 if jnp.dtype(matmul_dtype).itemsize == 2 else 8   # sublane tile
    n_sub = _round_up(max(n, 1), sub)
    bn = _round_up(min(block_n, n_sub), sub)

    cores = _tensorcores_per_chip()
    if cores >= 2 and _cdiv(n_sub, bn) < cores and n_sub >= cores * sub:
        bn = _round_up(_cdiv(n_sub, cores), sub)   # give every v7x TC work

    return _forward_impl(
        x, w1, b1, w2, b2, w3, b3,
        block_n=bn,
        matmul_dtype=matmul_dtype,
        single_buffer_weights=_pipeline_mode_supported(),
        core_parallel=(cores >= 2),
        vmem_cap=_vmem_capacity_bytes())


# ---------------------------------------------------------------------------
# Reference implementations & init (for the self-test)
# ---------------------------------------------------------------------------
def _init_linear(key, fan_in, fan_out):
    """Deterministic init matching torch.nn.Linear defaults:
    U(-1/sqrt(fan_in), 1/sqrt(fan_in)) for weight and bias.
    Weight returned as (fan_in, fan_out) so the kernel does x @ W."""
    kw, kb = jax.random.split(key)
    bound = 1.0 / jnp.sqrt(jnp.asarray(fan_in, jnp.float32))
    w = jax.random.uniform(kw, (fan_in, fan_out), jnp.float32, -bound, bound)
    b = jax.random.uniform(kb, (1, fan_out), jnp.float32, -bound, bound)
    return w, b


def _reference_forward(x, w1, b1, w2, b2, w3, b3):
    """Plain-JAX f32 reference of the module's forward (eval-mode dropout)."""
    h1 = jnp.maximum(x @ w1 + b1, 0.0)
    h2 = jnp.maximum(h1 @ w2 + b2, 0.0)
    return jax.nn.sigmoid(h2 @ w3 + b3)


def _reference_forward_cast(x, w1, b1, w2, b2, w3, b3, mm_dtype):
    """Reference mirroring the kernel's matmul-operand casts (f32 accumulate)."""
    f32 = jnp.float32
    xc = x.astype(mm_dtype).astype(f32)
    h1 = jnp.maximum(xc @ w1.astype(mm_dtype).astype(f32) + b1, 0.0)
    h1c = h1.astype(mm_dtype).astype(f32)
    h2 = jnp.maximum(h1c @ w2.astype(mm_dtype).astype(f32) + b2, 0.0)
    h2c = h2.astype(mm_dtype).astype(f32)
    return jax.nn.sigmoid(h2c @ w3.astype(mm_dtype).astype(f32) + b3)


if __name__ == "__main__":
    # Shapes consistent with the module's __init__ signature; the batch is
    # ragged (1000) to exercise padding and the tile-selection logic.
    N, D_in, H, NLABEL = 1000, 32, 32, 8
    dropout = 0.2  # unused: eval-mode forward (dropout = identity)

    key = jax.random.PRNGKey(0)
    kx, k1, k2, k3 = jax.random.split(key, 4)

    x = jax.random.normal(kx, (N, D_in), jnp.float32)
    w1, b1 = _init_linear(k1, D_in, H)
    w2, b2 = _init_linear(k2, H, H)
    w3, b3 = _init_linear(k3, H, NLABEL)

    out = classifier2_forward(x, w1, b1, w2, b2, w3, b3)
    out = jax.block_until_ready(out)

    ref_cast = _reference_forward_cast(x, w1, b1, w2, b2, w3, b3, jnp.bfloat16)
    ref_f32 = _reference_forward(x, w1, b1, w2, b2, w3, b3)

    assert out.shape == (N, NLABEL)
    assert out.dtype == jnp.float32
    # Tight check vs. a reference with identical bf16 operand casts (allows
    # for the EUP approximate-reciprocal in the sigmoid).
    assert jnp.allclose(out, ref_cast, atol=2e-3), "mismatch vs cast reference"
    # Looser check vs. the pure-f32 module semantics (bf16 matmul rounding).
    assert jnp.allclose(out, ref_f32, atol=2e-2), "mismatch vs f32 reference"

    print("KERNEL_OK")
</pallas_src>

<mosaic_0001>
module attributes {stable_mosaic.version = 11 : i64} {
  func.func @_mlp_kernel(%arg0: i32, %arg1: memref<1008x128xbf16, #tpu.memory_space<vmem>>, %arg2: memref<128x128xbf16, #tpu.memory_space<vmem>>, %arg3: memref<1x128xf32, #tpu.memory_space<vmem>>, %arg4: memref<128x128xbf16, #tpu.memory_space<vmem>>, %arg5: memref<1x128xf32, #tpu.memory_space<vmem>>, %arg6: memref<128x128xbf16, #tpu.memory_space<vmem>>, %arg7: memref<1x128xf32, #tpu.memory_space<vmem>>, %arg8: memref<1008x8xf32, #tpu.memory_space<vmem>>) attributes {dimension_semantics = [#tpu.dimension_semantics<parallel>], iteration_bounds = array<i64: 1>, scalar_prefetch = 0 : i64, scratch_operands = 0 : i64, tpu.core_type = #tpu.core_type<tc>, window_params = [{transform_indices = @transform_0, window_bounds = array<i64: 1008, 128>}, {pipeline_mode = #tpu.pipeline_mode<synchronous>, transform_indices = @transform_1, window_bounds = array<i64: 128, 128>}, {pipeline_mode = #tpu.pipeline_mode<synchronous>, transform_indices = @transform_2, window_bounds = array<i64: 1, 128>}, {pipeline_mode = #tpu.pipeline_mode<synchronous>, transform_indices = @transform_3, window_bounds = array<i64: 128, 128>}, {pipeline_mode = #tpu.pipeline_mode<synchronous>, transform_indices = @transform_4, window_bounds = array<i64: 1, 128>}, {pipeline_mode = #tpu.pipeline_mode<synchronous>, transform_indices = @transform_5, window_bounds = array<i64: 128, 128>}, {pipeline_mode = #tpu.pipeline_mode<synchronous>, transform_indices = @transform_6, window_bounds = array<i64: 1, 128>}, {transform_indices = @transform_7, window_bounds = array<i64: 1008, 8>}]} {
    %c0 = arith.constant 0 : index
    %c0_0 = arith.constant 0 : index
    %0 = vector.load %arg1[%c0, %c0_0] : memref<1008x128xbf16, #tpu.memory_space<vmem>>, vector<1008x128xbf16>
    %c0_1 = arith.constant 0 : index
    %c0_2 = arith.constant 0 : index
    %1 = vector.load %arg2[%c0_1, %c0_2] : memref<128x128xbf16, #tpu.memory_space<vmem>>, vector<128x128xbf16>
    %cst = arith.constant dense<0.000000e+00> : vector<1008x128xf32>
    %2 = tpu.matmul %0, %1, %cst {dimension_numbers = #tpu.dot_dimension_numbers<[1], [0], [0], [1], [0, 0, 1, 1], [], []>} : vector<1008x128xbf16>, vector<128x128xbf16>, vector<1008x128xf32> -> vector<1008x128xf32>
    %c0_3 = arith.constant 0 : index
    %c0_4 = arith.constant 0 : index
    %3 = vector.load %arg3[%c0_3, %c0_4] : memref<1x128xf32, #tpu.memory_space<vmem>>, vector<1x128xf32>
    %4 = vector.broadcast %3 : vector<1x128xf32> to vector<1008x128xf32>
    %5 = arith.addf %2, %4 : vector<1008x128xf32>
    %cst_5 = arith.constant 0.000000e+00 : f32
    %6 = vector.broadcast %cst_5 : f32 to vector<1008x128xf32>
    %7 = arith.maximumf %5, %6 : vector<1008x128xf32>
    %8 = arith.truncf %7 : vector<1008x128xf32> to vector<1008x128xbf16>
    %c0_6 = arith.constant 0 : index
    %c0_7 = arith.constant 0 : index
    %9 = vector.load %arg4[%c0_6, %c0_7] : memref<128x128xbf16, #tpu.memory_space<vmem>>, vector<128x128xbf16>
    %cst_8 = arith.constant dense<0.000000e+00> : vector<1008x128xf32>
    %10 = tpu.matmul %8, %9, %cst_8 {dimension_numbers = #tpu.dot_dimension_numbers<[1], [0], [0], [1], [0, 0, 1, 1], [], []>} : vector<1008x128xbf16>, vector<128x128xbf16>, vector<1008x128xf32> -> vector<1008x128xf32>
    %c0_9 = arith.constant 0 : index
    %c0_10 = arith.constant 0 : index
    %11 = vector.load %arg5[%c0_9, %c0_10] : memref<1x128xf32, #tpu.memory_space<vmem>>, vector<1x128xf32>
    %12 = vector.broadcast %11 : vector<1x128xf32> to vector<1008x128xf32>
    %13 = arith.addf %10, %12 : vector<1008x128xf32>
    %cst_11 = arith.constant 0.000000e+00 : f32
    %14 = vector.broadcast %cst_11 : f32 to vector<1008x128xf32>
    %15 = arith.maximumf %13, %14 : vector<1008x128xf32>
    %16 = arith.truncf %15 : vector<1008x128xf32> to vector<1008x128xbf16>
    %c0_12 = arith.constant 0 : index
    %c0_13 = arith.constant 0 : index
    %17 = vector.load %arg6[%c0_12, %c0_13] : memref<128x128xbf16, #tpu.memory_space<vmem>>, vector<128x128xbf16>
    %cst_14 = arith.constant dense<0.000000e+00> : vector<1008x128xf32>
    %18 = tpu.matmul %16, %17, %cst_14 {dimension_numbers = #tpu.dot_dimension_numbers<[1], [0], [0], [1], [0, 0, 1, 1], [], []>} : vector<1008x128xbf16>, vector<128x128xbf16>, vector<1008x128xf32> -> vector<1008x128xf32>
    %c0_15 = arith.constant 0 : index
    %c0_16 = arith.constant 0 : index
    %19 = vector.load %arg7[%c0_15, %c0_16] : memref<1x128xf32, #tpu.memory_space<vmem>>, vector<1x128xf32>
    %20 = vector.broadcast %19 : vector<1x128xf32> to vector<1008x128xf32>
    %21 = arith.addf %18, %20 : vector<1008x128xf32>
    %22 = vector.extract_strided_slice %21 {offsets = [0, 0], sizes = [1008, 8], strides = [1, 1]} : vector<1008x128xf32> to vector<1008x8xf32>
    %cst_17 = arith.constant 0.000000e+00 : f32
    %23 = vector.broadcast %cst_17 : f32 to vector<1008x8xf32>
    %24 = arith.subf %23, %22 : vector<1008x8xf32>
    %25 = math.exp %24 : vector<1008x8xf32>
    %cst_18 = arith.constant 1.000000e+00 : f32
    %26 = vector.broadcast %cst_18 : f32 to vector<1008x8xf32>
    %27 = arith.addf %26, %25 : vector<1008x8xf32>
    %28 = tpu.reciprocal %27 {approx = true} : vector<1008x8xf32> -> vector<1008x8xf32>
    %c0_19 = arith.constant 0 : index
    %c0_20 = arith.constant 0 : index
    %29 = vector.load %arg8[%c0_19, %c0_20] : memref<1008x8xf32, #tpu.memory_space<vmem>>, vector<1008x8xf32>
    tpu.vector_store %arg8[%c0_19, %c0_20], %28 {strides = array<i32>} : memref<1008x8xf32, #tpu.memory_space<vmem>>, vector<1008x8xf32>,
    return
  }
  func.func @transform_0(%arg0: i32) -> (i32, i32) {
    %c0_i32 = arith.constant 0 : i32
    %c0_i32_0 = arith.constant 0 : i32
    return %arg0, %c0_i32 : i32, i32
  }
  func.func @transform_1(%arg0: i32) -> (i32, i32) {
    %c0_i32 = arith.constant 0 : i32
    %c0_i32_0 = arith.constant 0 : i32
    %c0_i32_1 = arith.constant 0 : i32
    return %c0_i32, %c0_i32_0 : i32, i32
  }
  func.func @transform_2(%arg0: i32) -> (i32, i32) {
    %c0_i32 = arith.constant 0 : i32
    %c0_i32_0 = arith.constant 0 : i32
    %c0_i32_1 = arith.constant 0 : i32
    return %c0_i32, %c0_i32_0 : i32, i32
  }
  func.func @transform_3(%arg0: i32) -> (i32, i32) {
    %c0_i32 = arith.constant 0 : i32
    %c0_i32_0 = arith.constant 0 : i32
    %c0_i32_1 = arith.constant 0 : i32
    return %c0_i32, %c0_i32_0 : i32, i32
  }
  func.func @transform_4(%arg0: i32) -> (i32, i32) {
    %c0_i32 = arith.constant 0 : i32
    %c0_i32_0 = arith.constant 0 : i32
    %c0_i32_1 = arith.constant 0 : i32
    return %c0_i32, %c0_i32_0 : i32, i32
  }
  func.func @transform_5(%arg0: i32) -> (i32, i32) {
    %c0_i32 = arith.constant 0 : i32
    %c0_i32_0 = arith.constant 0 : i32
    %c0_i32_1 = arith.constant 0 : i32
    return %c0_i32, %c0_i32_0 : i32, i32
  }
  func.func @transform_6(%arg0: i32) -> (i32, i32) {
    %c0_i32 = arith.constant 0 : i32
    %c0_i32_0 = arith.constant 0 : i32
    %c0_i32_1 = arith.constant 0 : i32
    return %c0_i32, %c0_i32_0 : i32, i32
  }
  func.func @transform_7(%arg0: i32) -> (i32, i32) {
    %c0_i32 = arith.constant 0 : i32
    %c0_i32_0 = arith.constant 0 : i32
    return %arg0, %c0_i32 : i32, i32
  }
}

</mosaic_0001>

<llo_original>
// kernel: _forward_impl.2
$region0: #{_forward_impl.2}
  #allocation0 [shape = 'u32[]', space=smem, size = 0x4, offset = 0x4, fixed_abs, tag = 'smem constant byte address 0x4 - core index']
  #allocation1 [shape = 'u32[144,128]{1,0:T(1,128)}', space=vmem, size = 0x12000, scoped, tag = 'internal scratch']
  #allocation2 [shape = 'u32[2048]{0}', space=vmem, size = 0x2000, scoped, tag = 'scoped memory for _forward_impl.2']
  #allocation3 [shape = 'u32[2048]{0}', space=vmem, size = 0x2000, scoped, tag = 'scoped memory for _forward_impl.2']
  #allocation4 [shape = 'u32[2048]{0}', space=vmem, size = 0x2000, scoped, tag = 'scoped memory for _forward_impl.2']
  #allocation5 [shape = 'u32[2048]{0}', space=vmem, size = 0x2000, scoped, tag = 'scoped memory for _forward_impl.2']
  #allocation6 [shape = 'u32[2048]{0}', space=vmem, size = 0x2000, scoped, tag = 'scoped memory for _forward_impl.2']
  #allocation7 [shape = 'u32[2048]{0}', space=vmem, size = 0x2000, scoped, tag = 'scoped memory for _forward_impl.2']
  #allocation8 [shape = 'u32[2048]{0}', space=vmem, size = 0x2000, scoped, tag = 'scoped memory for _forward_impl.2']
  #allocation9 [shape = 'u32[2048]{0}', space=vmem, size = 0x2000, scoped, tag = 'scoped memory for _forward_impl.2']
  #allocation10 [shape = 'u32[2048]{0}', space=vmem, size = 0x2000, scoped, tag = 'scoped memory for _forward_impl.2']
  #allocation11 [shape = 'u32[2048]{0}', space=vmem, size = 0x2000, scoped, tag = 'scoped memory for _forward_impl.2']
  #allocation12 [shape = 'u32[2048]{0}', space=vmem, size = 0x2000, scoped, tag = 'scoped memory for _forward_impl.2']
  #allocation13 [shape = 'u32[2048]{0}', space=vmem, size = 0x2000, scoped, tag = 'scoped memory for _forward_impl.2']
  #allocation14 [shape = 'u32[2048]{0}', space=vmem, size = 0x2000, scoped, tag = 'scoped memory for _forward_impl.2']
  #allocation15 [shape = 'u32[2048]{0}', space=vmem, size = 0x2000, scoped, tag = 'scoped memory for _forward_impl.2']
  #allocation16 [shape = 'u32[2048]{0}', space=vmem, size = 0x2000, scoped, tag = 'scoped memory for _forward_impl.2']
  #allocation17 [shape = 'u32[2048]{0}', space=vmem, size = 0x2000, scoped, tag = 'scoped memory for _forward_impl.2']
  #allocation18 [shape = 'u32[2048]{0}', space=vmem, size = 0x2000, scoped, tag = 'scoped memory for _forward_impl.2']
  #allocation19 [shape = 'u32[2048]{0}', space=vmem, size = 0x2000, scoped, tag = 'scoped memory for _forward_impl.2']
  #allocation20 [shape = 'u32[2048]{0}', space=vmem, size = 0x2000, scoped, tag = 'scoped memory for _forward_impl.2']
  #allocation21 [shape = 'u32[2048]{0}', space=vmem, size = 0x2000, scoped, tag = 'scoped memory for _forward_impl.2']
  #allocation22 [shape = 'u32[2048]{0}', space=vmem, size = 0x2000, scoped, tag = 'scoped memory for _forward_impl.2']
  #allocation23 [shape = 'u32[2048]{0}', space=vmem, size = 0x2000, scoped, tag = 'scoped memory for _forward_impl.2']
  #allocation24 [shape = 'u32[2048]{0}', space=vmem, size = 0x2000, scoped, tag = 'scoped memory for _forward_impl.2']
  #allocation25 [shape = 'u32[2048]{0}', space=vmem, size = 0x2000, scoped, tag = 'scoped memory for _forward_impl.2']
  #allocation26 [shape = 'u32[2048]{0}', space=vmem, size = 0x2000, scoped, tag = 'scoped memory for _forward_impl.2']
  #allocation27 [shape = 'u32[2048]{0}', space=vmem, size = 0x2000, scoped, tag = 'scoped memory for _forward_impl.2']
  #allocation28 [shape = 'u32[2048]{0}', space=vmem, size = 0x2000, scoped, tag = 'scoped memory for _forward_impl.2']
  #allocation29 [shape = 'u32[2048]{0}', space=vmem, size = 0x2000, scoped, tag = 'scoped memory for _forward_impl.2']
  #allocation30 [shape = 'u32[2048]{0}', space=vmem, size = 0x2000, scoped, tag = 'scoped memory for _forward_impl.2']
  #allocation31 [shape = 'u32[2048]{0}', space=vmem, size = 0x2000, scoped, tag = 'scoped memory for _forward_impl.2']
  #allocation32 [shape = 'u32[2048]{0}', space=vmem, size = 0x2000, scoped, tag = 'scoped memory for _forward_impl.2']
  #allocation33 [shape = 'u32[2048]{0}', space=vmem, size = 0x2000, scoped, tag = 'scoped memory for _forward_impl.2']
  #allocation34 [shape = 'u32[2048]{0}', space=vmem, size = 0x2000, scoped, tag = 'scoped memory for _forward_impl.2']
  #allocation35 [shape = 'u32[2048]{0}', space=vmem, size = 0x2000, scoped, tag = 'scoped memory for _forward_impl.2']
  #allocation36 [shape = 'u32[2048]{0}', space=vmem, size = 0x2000, scoped, tag = 'scoped memory for _forward_impl.2']
  %s0 = inlined_call_operand.vmem [shape: bf16[1000,32], index: 0, kind: input, shape index: {}]
  %s1 = inlined_call_operand.<no memory space> [shape: bf16[], index: 1, kind: input, shape index: {}]
  %s2 = inlined_call_operand.vmem [shape: bf16[32,8], index: 2, kind: input, shape index: {}]
  %s3 = inlined_call_operand.vmem [shape: bf16[32,32], index: 3, kind: input, shape index: {}]
  %s4 = inlined_call_operand.vmem [shape: bf16[32,32], index: 4, kind: input, shape index: {}]
  %s5 = inlined_call_operand.vmem [shape: f32[1,8], index: 5, kind: input, shape index: {}]
  %s6 = inlined_call_operand.<no memory space> [shape: f32[], index: 6, kind: input, shape index: {}]
  %s7 = inlined_call_operand.vmem [shape: f32[1,32], index: 7, kind: input, shape index: {}]
  %s8 = inlined_call_operand.vmem [shape: f32[1,32], index: 8, kind: input, shape index: {}]
  %s9 = inlined_call_operand.vmem [shape: f32[1008,8], index: 9, kind: output, shape index: {}]
  %s10 = sld [smem:[#allocation0]]
  $region38: #{_forward_impl.2} parent=0
    _
  %s12 = ssub.s32 1, %s10
  %s13 = scalar_select 0, %s12, %s10
  %v14 = vstv %s1
  %v15 = vunpack.i.l.bf16 %v14
  %v17 = vunpack.i.h.bf16 %v14
  %v19 = vstv %s1
  %v20 = vunpack.i.l.bf16 %v19
  %v22 = vunpack.i.h.bf16 %v19
  %v24 = vstv %s6
  %v25 = vstv %s1
  %v26 = vunpack.i.l.bf16 %v25
  %v28 = vunpack.i.h.bf16 %v25
  %v30 = vstv %s6
  %v31 = vstv %s1
  %v32 = vunpack.i.l.bf16 %v31
  %v34 = vunpack.i.h.bf16 %v31
  %v36 = vstv %s6
  $region1: #{_forward_impl.2} parent=0
    #allocation37 [shape = 'u8[258048]{0}', space=vmem, size = 0x3f000, dematerialized = true, scoped, tag = 'FusionAdapter Buffer %fusion.1 = bf16[1008,128]{1,0:T(8,128)(2,1)} fusion(%param_0.9, %param_1.10), kind=kLoop, calls=%fused_computation.1.clone, metadata={op_name="jit(_forward_impl)/jit(_pad)/pad" stack_frame_id=10}']
    #allocation38 [shape = 'u8[32768]{0}', space=vmem, size = 0x8000, dematerialized = true, scoped, tag = 'FusionAdapter Buffer %fusion.4 = bf16[128,128]{1,0:T(8,128)(2,1)} fusion(%param_4.7, %param_1.10), kind=kLoop, calls=%fused_computation.4.clone, metadata={op_name="jit(_forward_impl)/jit(_pad)/pad" stack_frame_id=13}']
    #allocation39 [shape = 'u8[512]{0}', space=vmem, size = 0x400, dematerialized = true, scoped, tag = 'FusionAdapter Buffer %fusion.7 = f32[1,128]{1,0:T(1,128)} fusion(%param_8.2, %param_6.7), kind=kLoop, calls=%fused_computation.7.clone, metadata={op_name="jit(_forward_impl)/jit(_pad)/pad" stack_frame_id=15}']
    #allocation40 [shape = 'u8[32768]{0}', space=vmem, size = 0x8000, dematerialized = true, scoped, tag = 'FusionAdapter Buffer %fusion.3 = bf16[128,128]{1,0:T(8,128)(2,1)} fusion(%param_3.6, %param_1.10), kind=kLoop, calls=%fused_computation.3.clone, metadata={op_name="jit(_forward_impl)/jit(_pad)/pad" stack_frame_id=18}']
    #allocation41 [shape = 'u8[512]{0}', space=vmem, size = 0x400, dematerialized = true, scoped, tag = 'FusionAdapter Buffer %fusion.6 = f32[1,128]{1,0:T(1,128)} fusion(%param_7.6, %param_6.7), kind=kLoop, calls=%fused_computation.6.clone, metadata={op_name="jit(_forward_impl)/jit(_pad)/pad" stack_frame_id=20}']
    #allocation42 [shape = 'u8[32768]{0}', space=vmem, size = 0x8000, dematerialized = true, scoped, tag = 'FusionAdapter Buffer %fusion.2 = bf16[128,128]{1,0:T(8,128)(2,1)} fusion(%param_2.6, %param_1.10), kind=kLoop, calls=%fused_computation.2.clone, metadata={op_name="jit(_forward_impl)/jit(_pad)/pad" stack_frame_id=23}']
    #allocation43 [shape = 'u8[512]{0}', space=vmem, size = 0x400, dematerialized = true, scoped, tag = 'FusionAdapter Buffer %fusion.5 = f32[1,128]{1,0:T(1,128)} fusion(%param_5.7, %param_6.7), kind=kLoop, calls=%fused_computation.5.clone, metadata={op_name="jit(_forward_impl)/jit(_pad)/pad" stack_frame_id=25}']
    // Predicated region
    $region2: #{_forward_impl.2} parent=1 // pred_check
      _
    $region3: #{_forward_impl.2} parent=1 // pred_check_branch
      %38 = sbr.rel (0) target = $region5
    $region4: #{_forward_impl.2} parent=1 // pred_region
      _
    $region5: #{_forward_impl.2} parent=1 // pred_fallthru
      _
    // Predicated region
    $region6: #{_forward_impl.2} parent=1 // pred_check
      _
    $region7: #{_forward_impl.2} parent=1 // pred_check_branch
      %40 = sbr.rel (0) target = $region9
    $region8: #{_forward_impl.2} parent=1 // pred_region
      _
    $region9: #{_forward_impl.2} parent=1 // pred_fallthru
      _
    // Predicated region
    $region10: #{_forward_impl.2} parent=1 // pred_check
      _
    $region11: #{_forward_impl.2} parent=1 // pred_check_branch
      %42 = sbr.rel (0) target = $region13
    $region12: #{_forward_impl.2} parent=1 // pred_region
      _
    $region13: #{_forward_impl.2} parent=1 // pred_fallthru
      _
    // Predicated region
    $region14: #{_forward_impl.2} parent=1 // pred_check
      _
    $region15: #{_forward_impl.2} parent=1 // pred_check_branch
      %44 = sbr.rel (0) target = $region17
    $region16: #{_forward_impl.2} parent=1 // pred_region
      _
    $region17: #{_forward_impl.2} parent=1 // pred_fallthru
      _
    // Predicated region
    $region18: #{_forward_impl.2} parent=1 // pred_check
      _
    $region19: #{_forward_impl.2} parent=1 // pred_check_branch
      %46 = sbr.rel (0) target = $region21
    $region20: #{_forward_impl.2} parent=1 // pred_region
      _
    $region21: #{_forward_impl.2} parent=1 // pred_fallthru
      _
    // Predicated region
    $region22: #{_forward_impl.2} parent=1 // pred_check
      _
    $region23: #{_forward_impl.2} parent=1 // pred_check_branch
      %48 = sbr.rel (0) target = $region25
    $region24: #{_forward_impl.2} parent=1 // pred_region
      _
    $region25: #{_forward_impl.2} parent=1 // pred_fallthru
      _
    // Predicated region
    $region26: #{_forward_impl.2} parent=1 // pred_check
      _
    $region27: #{_forward_impl.2} parent=1 // pred_check_branch
      %50 = sbr.rel (0) target = $region29
    $region28: #{_forward_impl.2} parent=1 // pred_region
      _
    $region29: #{_forward_impl.2} parent=1 // pred_fallthru
      _
    %s52 = sor.u32 255, 127
    %s53 = sand.u32 %s52, 85
    %s54 = sshrl.u32 %s53, 1
    %s55 = sor.u32 %s53, %s54
    %s56 = sand.u32 51, %s55
    %s57 = sshrl.u32 %s56, 2
    %s58 = sor.u32 %s56, %s57
    %s59 = sand.u32 15, %s58
    %v60 = vld [vmem:[%s0] sm:%s59]
    %v61 = vunpack.c.l.bf16 %v60
    %v62 = vunpack.c.h.bf16 %v60
    %v63 = vlaneseq
    %v64 = vand.u32 %v63, 127
    %vm66 = vcmp.lt.s32.totalorder %v64, 32
    %v67 = vsel %vm66, %v61, %v15
    %v68 = vpack.c.bf16 0.0, %v67
    %s70 = ssub.s32 16, 1
    %71 = vst [vmem:[#allocation37] sm:%s70] %v68
    %s72 = scalar_lea.vmem %s0, 4
    %s74 = sor.u32 255, 127
    %s75 = sand.u32 %s74, 85
    %s76 = sshrl.u32 %s75, 1
    %s77 = sor.u32 %s75, %s76
    %s78 = sand.u32 51, %s77
    %s79 = sshrl.u32 %s78, 2
    %s80 = sor.u32 %s78, %s79
    %s81 = sand.u32 15, %s80
    %v82 = vld [vmem:[%s72] sm:%s81]
    %v83 = vunpack.c.l.bf16 %v82
    %v84 = vunpack.c.h.bf16 %v82
    %v85 = vlaneseq
    %v86 = vand.u32 %v85, 127
    %vm88 = vcmp.lt.s32.totalorder %v86, 32
    %v89 = vsel %vm88, %v83, %v15
    %s90 = scalar_lea.vmem [#allocation37], 4
    %v91 = vpack.c.bf16 0.0, %v89
    %s93 = ssub.s32 16, 1
    %94 = vst [vmem:[%s90] sm:%s93] %v91
    %s95 = scalar_lea.vmem %s0, 8
    %s97 = sor.u32 255, 127
    %s98 = sand.u32 %s97, 85
    %s99 = sshrl.u32 %s98, 1
    %s100 = sor.u32 %s98, %s99
    %s101 = sand.u32 51, %s100
    %s102 = sshrl.u32 %s101, 2
    %s103 = sor.u32 %s101, %s102
    %s104 = sand.u32 15, %s103
    %v105 = vld [vmem:[%s95] sm:%s104]
    %v106 = vunpack.c.l.bf16 %v105
    %v107 = vunpack.c.h.bf16 %v105
    %v108 = vlaneseq
    %v109 = vand.u32 %v108, 127
    %vm111 = vcmp.lt.s32.totalorder %v109, 32
    %v112 = vsel %vm111, %v106, %v15
    %s113 = scalar_lea.vmem [#allocation37], 8
    %v114 = vpack.c.bf16 0.0, %v112
    %s116 = ssub.s32 16, 1
    %117 = vst [vmem:[%s113] sm:%s116] %v114
    %s118 = scalar_lea.vmem %s0, 12
    %s120 = sor.u32 255, 127
    %s121 = sand.u32 %s120, 85
    %s122 = sshrl.u32 %s121, 1
    %s123 = sor.u32 %s121, %s122
    %s124 = sand.u32 51, %s123
    %s125 = sshrl.u32 %s124, 2
    %s126 = sor.u32 %s124, %s125
    %s127 = sand.u32 15, %s126
    %v128 = vld [vmem:[%s118] sm:%s127]
    %v129 = vunpack.c.l.bf16 %v128
    %v130 = vunpack.c.h.bf16 %v128
    %v131 = vlaneseq
    %v132 = vand.u32 %v131, 127
    %vm134 = vcmp.lt.s32.totalorder %v132, 32
    %v135 = vsel %vm134, %v129, %v15
    %s136 = scalar_lea.vmem [#allocation37], 12
    %v137 = vpack.c.bf16 0.0, %v135
    %s139 = ssub.s32 16, 1
    %140 = vst [vmem:[%s136] sm:%s139] %v137
    %s141 = scalar_lea.vmem %s0, 16
    %s143 = sor.u32 255, 127
    %s144 = sand.u32 %s143, 85
    %s145 = sshrl.u32 %s144, 1
    %s146 = sor.u32 %s144, %s145
    %s147 = sand.u32 51, %s146
    %s148 = sshrl.u32 %s147, 2
    %s149 = sor.u32 %s147, %s148
    %s150 = sand.u32 15, %s149
    %v151 = vld [vmem:[%s141] sm:%s150]
    %v152 = vunpack.c.l.bf16 %v151
    %v153 = vunpack.c.h.bf16 %v151
    %v154 = vlaneseq
    %v155 = vand.u32 %v154, 127
    %vm157 = vcmp.lt.s32.totalorder %v155, 32
    %v158 = vsel %vm157, %v152, %v15
    %s159 = scalar_lea.vmem [#allocation37], 16
    %v160 = vpack.c.bf16 0.0, %v158
    %s162 = ssub.s32 16, 1
    %163 = vst [vmem:[%s159] sm:%s162] %v160
    %s164 = scalar_lea.vmem %s0, 20
    %s166 = sor.u32 255, 127
    %s167 = sand.u32 %s166, 85
    %s168 = sshrl.u32 %s167, 1
    %s169 = sor.u32 %s167, %s168
    %s170 = sand.u32 51, %s169
    %s171 = sshrl.u32 %s170, 2
    %s172 = sor.u32 %s170, %s171
    %s173 = sand.u32 15, %s172
    %v174 = vld [vmem:[%s164] sm:%s173]
    %v175 = vunpack.c.l.bf16 %v174
    %v176 = vunpack.c.h.bf16 %v174
    %v177 = vlaneseq
    %v178 = vand.u32 %v177, 127
    %vm180 = vcmp.lt.s32.totalorder %v178, 32
    %v181 = vsel %vm180, %v175, %v15
    %s182 = scalar_lea.vmem [#allocation37], 20
    %v183 = vpack.c.bf16 0.0, %v181
    %s185 = ssub.s32 16, 1
    %186 = vst [vmem:[%s182] sm:%s185] %v183
    %s187 = scalar_lea.vmem %s0, 24
    %s189 = sor.u32 255, 127
    %s190 = sand.u32 %s189, 85
    %s191 = sshrl.u32 %s190, 1
    %s192 = sor.u32 %s190, %s191
    %s193 = sand.u32 51, %s192
    %s194 = sshrl.u32 %s193, 2
    %s195 = sor.u32 %s193, %s194
    %s196 = sand.u32 15, %s195
    %v197 = vld [vmem:[%s187] sm:%s196]
    %v198 = vunpack.c.l.bf16 %v197
    %v199 = vunpack.c.h.bf16 %v197
    %v200 = vlaneseq
    %v201 = vand.u32 %v200, 127
    %vm203 = vcmp.lt.s32.totalorder %v201, 32
    %v204 = vsel %vm203, %v198, %v15
    %s205 = scalar_lea.vmem [#allocation37], 24
    %v206 = vpack.c.bf16 0.0, %v204
    %s208 = ssub.s32 16, 1
    %209 = vst [vmem:[%s205] sm:%s208] %v206
    %s210 = scalar_lea.vmem %s0, 28
    %s212 = sor.u32 255, 127
    %s213 = sand.u32 %s212, 85
    %s214 = sshrl.u32 %s213, 1
    %s215 = sor.u32 %s213, %s214
    %s216 = sand.u32 51, %s215
    %s217 = sshrl.u32 %s216, 2
    %s218 = sor.u32 %s216, %s217
    %s219 = sand.u32 15, %s218
    %v220 = vld [vmem:[%s210] sm:%s219]
    %v221 = vunpack.c.l.bf16 %v220
    %v222 = vunpack.c.h.bf16 %v220
    %v223 = vlaneseq
    %v224 = vand.u32 %v223, 127
    %vm226 = vcmp.lt.s32.totalorder %v224, 32
    %v227 = vsel %vm226, %v221, %v15
    %s228 = scalar_lea.vmem [#allocation37], 28
    %v229 = vpack.c.bf16 0.0, %v227
    %s231 = ssub.s32 16, 1
    %232 = vst [vmem:[%s228] sm:%s231] %v229
    %s233 = scalar_lea.vmem %s0, 32
    %s235 = sor.u32 255, 127
    %s236 = sand.u32 %s235, 85
    %s237 = sshrl.u32 %s236, 1
    %s238 = sor.u32 %s236, %s237
    %s239 = sand.u32 51, %s238
    %s240 = sshrl.u32 %s239, 2
    %s241 = sor.u32 %s239, %s240
    %s242 = sand.u32 15, %s241
    %v243 = vld [vmem:[%s233] sm:%s242]
    %v244 = vunpack.c.l.bf16 %v243
    %v245 = vunpack.c.h.bf16 %v243
    %v246 = vlaneseq
    %v247 = vand.u32 %v246, 127
    %vm249 = vcmp.lt.s32.totalorder %v247, 32
    %v250 = vsel %vm249, %v244, %v15
    %s251 = scalar_lea.vmem [#allocation37], 32
    %v252 = vpack.c.bf16 0.0, %v250
    %s254 = ssub.s32 16, 1
    %255 = vst [vmem:[%s251] sm:%s254] %v252
    %s256 = scalar_lea.vmem %s0, 36
    %s258 = sor.u32 255, 127
    %s259 = sand.u32 %s258, 85
    %s260 = sshrl.u32 %s259, 1
    %s261 = sor.u32 %s259, %s260
    %s262 = sand.u32 51, %s261
    %s263 = sshrl.u32 %s262, 2
    %s264 = sor.u32 %s262, %s263
    %s265 = sand.u32 15, %s264
    %v266 = vld [vmem:[%s256] sm:%s265]
    %v267 = vunpack.c.l.bf16 %v266
    %v268 = vunpack.c.h.bf16 %v266
    %v269 = vlaneseq
    %v270 = vand.u32 %v269, 127
    %vm272 = vcmp.lt.s32.totalorder %v270, 32
    %v273 = vsel %vm272, %v267, %v15
    %s274 = scalar_lea.vmem [#allocation37], 36
    %v275 = vpack.c.bf16 0.0, %v273
    %s277 = ssub.s32 16, 1
    %278 = vst [vmem:[%s274] sm:%s277] %v275
    %s279 = scalar_lea.vmem %s0, 40
    %s281 = sor.u32 255, 127
    %s282 = sand.u32 %s281, 85
    %s283 = sshrl.u32 %s282, 1
    %s284 = sor.u32 %s282, %s283
    %s285 = sand.u32 51, %s284
    %s286 = sshrl.u32 %s285, 2
    %s287 = sor.u32 %s285, %s286
    %s288 = sand.u32 15, %s287
    %v289 = vld [vmem:[%s279] sm:%s288]
    %v290 = vunpack.c.l.bf16 %v289
    %v291 = vunpack.c.h.bf16 %v289
    %v292 = vlaneseq
    %v293 = vand.u32 %v292, 127
    %vm295 = vcmp.lt.s32.totalorder %v293, 32
    %v296 = vsel %vm295, %v290, %v15
    %s297 = scalar_lea.vmem [#allocation37], 40
    %v298 = vpack.c.bf16 0.0, %v296
    %s300 = ssub.s32 16, 1
    %301 = vst [vmem:[%s297] sm:%s300] %v298
    %s302 = scalar_lea.vmem %s0, 44
    %s304 = sor.u32 255, 127
    %s305 = sand.u32 %s304, 85
    %s306 = sshrl.u32 %s305, 1
    %s307 = sor.u32 %s305, %s306
    %s308 = sand.u32 51, %s307
    %s309 = sshrl.u32 %s308, 2
    %s310 = sor.u32 %s308, %s309
    %s311 = sand.u32 15, %s310
    %v312 = vld [vmem:[%s302] sm:%s311]
    %v313 = vunpack.c.l.bf16 %v312
    %v314 = vunpack.c.h.bf16 %v312
    %v315 = vlaneseq
    %v316 = vand.u32 %v315, 127
    %vm318 = vcmp.lt.s32.totalorder %v316, 32
    %v319 = vsel %vm318, %v313, %v15
    %s320 = scalar_lea.vmem [#allocation37], 44
    %v321 = vpack.c.bf16 0.0, %v319
    %s323 = ssub.s32 16, 1
    %324 = vst [vmem:[%s320] sm:%s323] %v321
    %s325 = scalar_lea.vmem %s0, 48
    %s327 = sor.u32 255, 127
    %s328 = sand.u32 %s327, 85
    %s329 = sshrl.u32 %s328, 1
    %s330 = sor.u32 %s328, %s329
    %s331 = sand.u32 51, %s330
    %s332 = sshrl.u32 %s331, 2
    %s333 = sor.u32 %s331, %s332
    %s334 = sand.u32 15, %s333
    %v335 = vld [vmem:[%s325] sm:%s334]
    %v336 = vunpack.c.l.bf16 %v335
    %v337 = vunpack.c.h.bf16 %v335
    %v338 = vlaneseq
    %v339 = vand.u32 %v338, 127
    %vm341 = vcmp.lt.s32.totalorder %v339, 32
    %v342 = vsel %vm341, %v336, %v15
    %s343 = scalar_lea.vmem [#allocation37], 48
    %v344 = vpack.c.bf16 0.0, %v342
    %s346 = ssub.s32 16, 1
    %347 = vst [vmem:[%s343] sm:%s346] %v344
    %s348 = scalar_lea.vmem %s0, 52
    %s350 = sor.u32 255, 127
    %s351 = sand.u32 %s350, 85
    %s352 = sshrl.u32 %s351, 1
    %s353 = sor.u32 %s351, %s352
    %s354 = sand.u32 51, %s353
    %s355 = sshrl.u32 %s354, 2
    %s356 = sor.u32 %s354, %s355
    %s357 = sand.u32 15, %s356
    %v358 = vld [vmem:[%s348] sm:%s357]
    %v359 = vunpack.c.l.bf16 %v358
    %v360 = vunpack.c.h.bf16 %v358
    %v361 = vlaneseq
    %v362 = vand.u32 %v361, 127
    %vm364 = vcmp.lt.s32.totalorder %v362, 32
    %v365 = vsel %vm364, %v359, %v15
    %s366 = scalar_lea.vmem [#allocation37], 52
    %v367 = vpack.c.bf16 0.0, %v365
    %s369 = ssub.s32 16, 1
    %370 = vst [vmem:[%s366] sm:%s369] %v367
    %s371 = scalar_lea.vmem %s0, 56
    %s373 = sor.u32 255, 127
    %s374 = sand.u32 %s373, 85
    %s375 = sshrl.u32 %s374, 1
    %s376 = sor.u32 %s374, %s375
    %s377 = sand.u32 51, %s376
    %s378 = sshrl.u32 %s377, 2
    %s379 = sor.u32 %s377, %s378
    %s380 = sand.u32 15, %s379
    %v381 = vld [vmem:[%s371] sm:%s380]
    %v382 = vunpack.c.l.bf16 %v381
    %v383 = vunpack.c.h.bf16 %v381
    %v384 = vlaneseq
    %v385 = vand.u32 %v384, 127
    %vm387 = vcmp.lt.s32.totalorder %v385, 32
    %v388 = vsel %vm387, %v382, %v15
    %s389 = scalar_lea.vmem [#allocation37], 56
    %v390 = vpack.c.bf16 0.0, %v388
    %s392 = ssub.s32 16, 1
    %393 = vst [vmem:[%s389] sm:%s392] %v390
    %s394 = scalar_lea.vmem %s0, 60
    %s396 = sor.u32 255, 127
    %s397 = sand.u32 %s396, 85
    %s398 = sshrl.u32 %s397, 1
    %s399 = sor.u32 %s397, %s398
    %s400 = sand.u32 51, %s399
    %s401 = sshrl.u32 %s400, 2
    %s402 = sor.u32 %s400, %s401
    %s403 = sand.u32 15, %s402
    %v404 = vld [vmem:[%s394] sm:%s403]
    %v405 = vunpack.c.l.bf16 %v404
    %v406 = vunpack.c.h.bf16 %v404
    %v407 = vlaneseq
    %v408 = vand.u32 %v407, 127
    %vm410 = vcmp.lt.s32.totalorder %v408, 32
    %v411 = vsel %vm410, %v405, %v15
    %s412 = scalar_lea.vmem [#allocation37], 60
    %v413 = vpack.c.bf16 0.0, %v411
    %s415 = ssub.s32 16, 1
    %416 = vst [vmem:[%s412] sm:%s415] %v413
    %s417 = scalar_lea.vmem %s0, 64
    %s419 = sor.u32 255, 127
    %s420 = sand.u32 %s419, 85
    %s421 = sshrl.u32 %s420, 1
    %s422 = sor.u32 %s420, %s421
    %s423 = sand.u32 51, %s422
    %s424 = sshrl.u32 %s423, 2
    %s425 = sor.u32 %s423, %s424
    %s426 = sand.u32 15, %s425
    %v427 = vld [vmem:[%s417] sm:%s426]
    %v428 = vunpack.c.l.bf16 %v427
    %v429 = vunpack.c.h.bf16 %v427
    %v430 = vlaneseq
    %v431 = vand.u32 %v430, 127
    %vm433 = vcmp.lt.s32.totalorder %v431, 32
    %v434 = vsel %vm433, %v428, %v15
    %s435 = scalar_lea.vmem [#allocation37], 64
    %v436 = vpack.c.bf16 0.0, %v434
    %s438 = ssub.s32 16, 1
    %439 = vst [vmem:[%s435] sm:%s438] %v436
    %s440 = scalar_lea.vmem %s0, 68
    %s442 = sor.u32 255, 127
    %s443 = sand.u32 %s442, 85
    %s444 = sshrl.u32 %s443, 1
    %s445 = sor.u32 %s443, %s444
    %s446 = sand.u32 51, %s445
    %s447 = sshrl.u32 %s446, 2
    %s448 = sor.u32 %s446, %s447
    %s449 = sand.u32 15, %s448
    %v450 = vld [vmem:[%s440] sm:%s449]
    %v451 = vunpack.c.l.bf16 %v450
    %v452 = vunpack.c.h.bf16 %v450
    %v453 = vlaneseq
    %v454 = vand.u32 %v453, 127
    %vm456 = vcmp.lt.s32.totalorder %v454, 32
    %v457 = vsel %vm456, %v451, %v15
    %s458 = scalar_lea.vmem [#allocation37], 68
    %v459 = vpack.c.bf16 0.0, %v457
    %s461 = ssub.s32 16, 1
    %462 = vst [vmem:[%s458] sm:%s461] %v459
    %s463 = scalar_lea.vmem %s0, 72
    %s465 = sor.u32 255, 127
    %s466 = sand.u32 %s465, 85
    %s467 = sshrl.u32 %s466, 1
    %s468 = sor.u32 %s466, %s467
    %s469 = sand.u32 51, %s468
    %s470 = sshrl.u32 %s469, 2
    %s471 = sor.u32 %s469, %s470
    %s472 = sand.u32 15, %s471
    %v473 = vld [vmem:[%s463] sm:%s472]
    %v474 = vunpack.c.l.bf16 %v473
    %v475 = vunpack.c.h.bf16 %v473
    %v476 = vlaneseq
    %v477 = vand.u32 %v476, 127
    %vm479 = vcmp.lt.s32.totalorder %v477, 32
    %v480 = vsel %vm479, %v474, %v15
    %s481 = scalar_lea.vmem [#allocation37], 72
    %v482 = vpack.c.bf16 0.0, %v480
    %s484 = ssub.s32 16, 1
    %485 = vst [vmem:[%s481] sm:%s484] %v482
    %s486 = scalar_lea.vmem %s0, 76
    %s488 = sor.u32 255, 127
    %s489 = sand.u32 %s488, 85
    %s490 = sshrl.u32 %s489, 1
    %s491 = sor.u32 %s489, %s490
    %s492 = sand.u32 51, %s491
    %s493 = sshrl.u32 %s492, 2
    %s494 = sor.u32 %s492, %s493
    %s495 = sand.u32 15, %s494
    %v496 = vld [vmem:[%s486] sm:%s495]
    %v497 = vunpack.c.l.bf16 %v496
    %v498 = vunpack.c.h.bf16 %v496
    %v499 = vlaneseq
    %v500 = vand.u32 %v499, 127
    %vm502 = vcmp.lt.s32.totalorder %v500, 32
    %v503 = vsel %vm502, %v497, %v15
    %s504 = scalar_lea.vmem [#allocation37], 76
    %v505 = vpack.c.bf16 0.0, %v503
    %s507 = ssub.s32 16, 1
    %508 = vst [vmem:[%s504] sm:%s507] %v505
    %s509 = scalar_lea.vmem %s0, 80
    %s511 = sor.u32 255, 127
    %s512 = sand.u32 %s511, 85
    %s513 = sshrl.u32 %s512, 1
    %s514 = sor.u32 %s512, %s513
    %s515 = sand.u32 51, %s514
    %s516 = sshrl.u32 %s515, 2
    %s517 = sor.u32 %s515, %s516
    %s518 = sand.u32 15, %s517
    %v519 = vld [vmem:[%s509] sm:%s518]
    %v520 = vunpack.c.l.bf16 %v519
    %v521 = vunpack.c.h.bf16 %v519
    %v522 = vlaneseq
    %v523 = vand.u32 %v522, 127
    %vm525 = vcmp.lt.s32.totalorder %v523, 32
    %v526 = vsel %vm525, %v520, %v15
    %s527 = scalar_lea.vmem [#allocation37], 80
    %v528 = vpack.c.bf16 0.0, %v526
    %s530 = ssub.s32 16, 1
    %531 = vst [vmem:[%s527] sm:%s530] %v528
    %s532 = scalar_lea.vmem %s0, 84
    %s534 = sor.u32 255, 127
    %s535 = sand.u32 %s534, 85
    %s536 = sshrl.u32 %s535, 1
    %s537 = sor.u32 %s535, %s536
    %s538 = sand.u32 51, %s537
    %s539 = sshrl.u32 %s538, 2
    %s540 = sor.u32 %s538, %s539
    %s541 = sand.u32 15, %s540
    %v542 = vld [vmem:[%s532] sm:%s541]
    %v543 = vunpack.c.l.bf16 %v542
    %v544 = vunpack.c.h.bf16 %v542
    %v545 = vlaneseq
    %v546 = vand.u32 %v545, 127
    %vm548 = vcmp.lt.s32.totalorder %v546, 32
    %v549 = vsel %vm548, %v543, %v15
    %s550 = scalar_lea.vmem [#allocation37], 84
    %v551 = vpack.c.bf16 0.0, %v549
    %s553 = ssub.s32 16, 1
    %554 = vst [vmem:[%s550] sm:%s553] %v551
    %s555 = scalar_lea.vmem %s0, 88
    %s557 = sor.u32 255, 127
    %s558 = sand.u32 %s557, 85
    %s559 = sshrl.u32 %s558, 1
    %s560 = sor.u32 %s558, %s559
    %s561 = sand.u32 51, %s560
    %s562 = sshrl.u32 %s561, 2
    %s563 = sor.u32 %s561, %s562
    %s564 = sand.u32 15, %s563
    %v565 = vld [vmem:[%s555] sm:%s564]
    %v566 = vunpack.c.l.bf16 %v565
    %v567 = vunpack.c.h.bf16 %v565
    %v568 = vlaneseq
    %v569 = vand.u32 %v568, 127
    %vm571 = vcmp.lt.s32.totalorder %v569, 32
    %v572 = vsel %vm571, %v566, %v15
    %s573 = scalar_lea.vmem [#allocation37], 88
    %v574 = vpack.c.bf16 0.0, %v572
    %s576 = ssub.s32 16, 1
    %577 = vst [vmem:[%s573] sm:%s576] %v574
    %s578 = scalar_lea.vmem %s0, 92
    %s580 = sor.u32 255, 127
    %s581 = sand.u32 %s580, 85
    %s582 = sshrl.u32 %s581, 1
    %s583 = sor.u32 %s581, %s582
    %s584 = sand.u32 51, %s583
    %s585 = sshrl.u32 %s584, 2
    %s586 = sor.u32 %s584, %s585
    %s587 = sand.u32 15, %s586
    %v588 = vld [vmem:[%s578] sm:%s587]
    %v589 = vunpack.c.l.bf16 %v588
    %v590 = vunpack.c.h.bf16 %v588
    %v591 = vlaneseq
    %v592 = vand.u32 %v591, 127
    %vm594 = vcmp.lt.s32.totalorder %v592, 32
    %v595 = vsel %vm594, %v589, %v15
    %s596 = scalar_lea.vmem [#allocation37], 92
    %v597 = vpack.c.bf16 0.0, %v595
    %s599 = ssub.s32 16, 1
    %600 = vst [vmem:[%s596] sm:%s599] %v597
    %s601 = scalar_lea.vmem %s0, 96
    %s603 = sor.u32 255, 127
    %s604 = sand.u32 %s603, 85
    %s605 = sshrl.u32 %s604, 1
    %s606 = sor.u32 %s604, %s605
    %s607 = sand.u32 51, %s606
    %s608 = sshrl.u32 %s607, 2
    %s609 = sor.u32 %s607, %s608
    %s610 = sand.u32 15, %s609
    %v611 = vld [vmem:[%s601] sm:%s610]
    %v612 = vunpack.c.l.bf16 %v611
    %v613 = vunpack.c.h.bf16 %v611
    %v614 = vlaneseq
    %v615 = vand.u32 %v614, 127
    %vm617 = vcmp.lt.s32.totalorder %v615, 32
    %v618 = vsel %vm617, %v612, %v15
    %s619 = scalar_lea.vmem [#allocation37], 96
    %v620 = vpack.c.bf16 0.0, %v618
    %s622 = ssub.s32 16, 1
    %623 = vst [vmem:[%s619] sm:%s622] %v620
    %s624 = scalar_lea.vmem %s0, 100
    %s626 = sor.u32 255, 127
    %s627 = sand.u32 %s626, 85
    %s628 = sshrl.u32 %s627, 1
    %s629 = sor.u32 %s627, %s628
    %s630 = sand.u32 51, %s629
    %s631 = sshrl.u32 %s630, 2
    %s632 = sor.u32 %s630, %s631
    %s633 = sand.u32 15, %s632
    %v634 = vld [vmem:[%s624] sm:%s633]
    %v635 = vunpack.c.l.bf16 %v634
    %v636 = vunpack.c.h.bf16 %v634
    %v637 = vlaneseq
    %v638 = vand.u32 %v637, 127
    %vm640 = vcmp.lt.s32.totalorder %v638, 32
    %v641 = vsel %vm640, %v635, %v15
    %s642 = scalar_lea.vmem [#allocation37], 100
    %v643 = vpack.c.bf16 0.0, %v641
    %s645 = ssub.s32 16, 1
    %646 = vst [vmem:[%s642] sm:%s645] %v643
    %s647 = scalar_lea.vmem %s0, 104
    %s649 = sor.u32 255, 127
    %s650 = sand.u32 %s649, 85
    %s651 = sshrl.u32 %s650, 1
    %s652 = sor.u32 %s650, %s651
    %s653 = sand.u32 51, %s652
    %s654 = sshrl.u32 %s653, 2
    %s655 = sor.u32 %s653, %s654
    %s656 = sand.u32 15, %s655
    %v657 = vld [vmem:[%s647] sm:%s656]
    %v658 = vunpack.c.l.bf16 %v657
    %v659 = vunpack.c.h.bf16 %v657
    %v660 = vlaneseq
    %v661 = vand.u32 %v660, 127
    %vm663 = vcmp.lt.s32.totalorder %v661, 32
    %v664 = vsel %vm663, %v658, %v15
    %s665 = scalar_lea.vmem [#allocation37], 104
    %v666 = vpack.c.bf16 0.0, %v664
    %s668 = ssub.s32 16, 1
    %669 = vst [vmem:[%s665] sm:%s668] %v666
    %s670 = scalar_lea.vmem %s0, 108
    %s672 = sor.u32 255, 127
    %s673 = sand.u32 %s672, 85
    %s674 = sshrl.u32 %s673, 1
    %s675 = sor.u32 %s673, %s674
    %s676 = sand.u32 51, %s675
    %s677 = sshrl.u32 %s676, 2
    %s678 = sor.u32 %s676, %s677
    %s679 = sand.u32 15, %s678
    %v680 = vld [vmem:[%s670] sm:%s679]
    %v681 = vunpack.c.l.bf16 %v680
    %v682 = vunpack.c.h.bf16 %v680
    %v683 = vlaneseq
    %v684 = vand.u32 %v683, 127
    %vm686 = vcmp.lt.s32.totalorder %v684, 32
    %v687 = vsel %vm686, %v681, %v15
    %s688 = scalar_lea.vmem [#allocation37], 108
    %v689 = vpack.c.bf16 0.0, %v687
    %s691 = ssub.s32 16, 1
    %692 = vst [vmem:[%s688] sm:%s691] %v689
    %s693 = scalar_lea.vmem %s0, 112
    %s695 = sor.u32 255, 127
    %s696 = sand.u32 %s695, 85
    %s697 = sshrl.u32 %s696, 1
    %s698 = sor.u32 %s696, %s697
    %s699 = sand.u32 51, %s698
    %s700 = sshrl.u32 %s699, 2
    %s701 = sor.u32 %s699, %s700
    %s702 = sand.u32 15, %s701
    %v703 = vld [vmem:[%s693] sm:%s702]
    %v704 = vunpack.c.l.bf16 %v703
    %v705 = vunpack.c.h.bf16 %v703
    %v706 = vlaneseq
    %v707 = vand.u32 %v706, 127
    %vm709 = vcmp.lt.s32.totalorder %v707, 32
    %v710 = vsel %vm709, %v704, %v15
    %s711 = scalar_lea.vmem [#allocation37], 112
    %v712 = vpack.c.bf16 0.0, %v710
    %s714 = ssub.s32 16, 1
    %715 = vst [vmem:[%s711] sm:%s714] %v712
    %s716 = scalar_lea.vmem %s0, 116
    %s718 = sor.u32 255, 127
    %s719 = sand.u32 %s718, 85
    %s720 = sshrl.u32 %s719, 1
    %s721 = sor.u32 %s719, %s720
    %s722 = sand.u32 51, %s721
    %s723 = sshrl.u32 %s722, 2
    %s724 = sor.u32 %s722, %s723
    %s725 = sand.u32 15, %s724
    %v726 = vld [vmem:[%s716] sm:%s725]
    %v727 = vunpack.c.l.bf16 %v726
    %v728 = vunpack.c.h.bf16 %v726
    %v729 = vlaneseq
    %v730 = vand.u32 %v729, 127
    %vm732 = vcmp.lt.s32.totalorder %v730, 32
    %v733 = vsel %vm732, %v727, %v15
    %s734 = scalar_lea.vmem [#allocation37], 116
    %v735 = vpack.c.bf16 0.0, %v733
    %s737 = ssub.s32 16, 1
    %738 = vst [vmem:[%s734] sm:%s737] %v735
    %s739 = scalar_lea.vmem %s0, 120
    %s741 = sor.u32 255, 127
    %s742 = sand.u32 %s741, 85
    %s743 = sshrl.u32 %s742, 1
    %s744 = sor.u32 %s742, %s743
    %s745 = sand.u32 51, %s744
    %s746 = sshrl.u32 %s745, 2
    %s747 = sor.u32 %s745, %s746
    %s748 = sand.u32 15, %s747
    %v749 = vld [vmem:[%s739] sm:%s748]
    %v750 = vunpack.c.l.bf16 %v749
    %v751 = vunpack.c.h.bf16 %v749
    %v752 = vlaneseq
    %v753 = vand.u32 %v752, 127
    %vm755 = vcmp.lt.s32.totalorder %v753, 32
    %v756 = vsel %vm755, %v750, %v15
    %s757 = scalar_lea.vmem [#allocation37], 120
    %v758 = vpack.c.bf16 0.0, %v756
    %s760 = ssub.s32 16, 1
    %761 = vst [vmem:[%s757] sm:%s760] %v758
    %s762 = scalar_lea.vmem %s0, 124
    %s764 = sor.u32 255, 127
    %s765 = sand.u32 %s764, 85
    %s766 = sshrl.u32 %s765, 1
    %s767 = sor.u32 %s765, %s766
    %s768 = sand.u32 51, %s767
    %s769 = sshrl.u32 %s768, 2
    %s770 = sor.u32 %s768, %s769
    %s771 = sand.u32 15, %s770
    %v772 = vld [vmem:[%s762] sm:%s771]
    %v773 = vunpack.c.l.bf16 %v772
    %v774 = vunpack.c.h.bf16 %v772
    %v775 = vlaneseq
    %v776 = vand.u32 %v775, 127
    %vm778 = vcmp.lt.s32.totalorder %v776, 32
    %v779 = vsel %vm778, %v773, %v15
    %s780 = scalar_lea.vmem [#allocation37], 124
    %v781 = vpack.c.bf16 0.0, %v779
    %s783 = ssub.s32 16, 1
    %784 = vst [vmem:[%s780] sm:%s783] %v781
    %s785 = scalar_lea.vmem %s0, 128
    %s787 = sor.u32 255, 127
    %s788 = sand.u32 %s787, 85
    %s789 = sshrl.u32 %s788, 1
    %s790 = sor.u32 %s788, %s789
    %s791 = sand.u32 51, %s790
    %s792 = sshrl.u32 %s791, 2
    %s793 = sor.u32 %s791, %s792
    %s794 = sand.u32 15, %s793
    %v795 = vld [vmem:[%s785] sm:%s794]
    %v796 = vunpack.c.l.bf16 %v795
    %v797 = vunpack.c.h.bf16 %v795
    %v798 = vlaneseq
    %v799 = vand.u32 %v798, 127
    %vm801 = vcmp.lt.s32.totalorder %v799, 32
    %v802 = vsel %vm801, %v796, %v15
    %s803 = scalar_lea.vmem [#allocation37], 128
    %v804 = vpack.c.bf16 0.0, %v802
    %s806 = ssub.s32 16, 1
    %807 = vst [vmem:[%s803] sm:%s806] %v804
    %s808 = scalar_lea.vmem %s0, 132
    %s810 = sor.u32 255, 127
    %s811 = sand.u32 %s810, 85
    %s812 = sshrl.u32 %s811, 1
    %s813 = sor.u32 %s811, %s812
    %s814 = sand.u32 51, %s813
    %s815 = sshrl.u32 %s814, 2
    %s816 = sor.u32 %s814, %s815
    %s817 = sand.u32 15, %s816
    %v818 = vld [vmem:[%s808] sm:%s817]
    %v819 = vunpack.c.l.bf16 %v818
    %v820 = vunpack.c.h.bf16 %v818
    %v821 = vlaneseq
    %v822 = vand.u32 %v821, 127
    %vm824 = vcmp.lt.s32.totalorder %v822, 32
    %v825 = vsel %vm824, %v819, %v15
    %s826 = scalar_lea.vmem [#allocation37], 132
    %v827 = vpack.c.bf16 0.0, %v825
    %s829 = ssub.s32 16, 1
    %830 = vst [vmem:[%s826] sm:%s829] %v827
    %s831 = scalar_lea.vmem %s0, 136
    %s833 = sor.u32 255, 127
    %s834 = sand.u32 %s833, 85
    %s835 = sshrl.u32 %s834, 1
    %s836 = sor.u32 %s834, %s835
    %s837 = sand.u32 51, %s836
    %s838 = sshrl.u32 %s837, 2
    %s839 = sor.u32 %s837, %s838
    %s840 = sand.u32 15, %s839
    %v841 = vld [vmem:[%s831] sm:%s840]
    %v842 = vunpack.c.l.bf16 %v841
    %v843 = vunpack.c.h.bf16 %v841
    %v844 = vlaneseq
    %v845 = vand.u32 %v844, 127
    %vm847 = vcmp.lt.s32.totalorder %v845, 32
    %v848 = vsel %vm847, %v842, %v15
    %s849 = scalar_lea.vmem [#allocation37], 136
    %v850 = vpack.c.bf16 0.0, %v848
    %s852 = ssub.s32 16, 1
    %853 = vst [vmem:[%s849] sm:%s852] %v850
    %s854 = scalar_lea.vmem %s0, 140
    %s856 = sor.u32 255, 127
    %s857 = sand.u32 %s856, 85
    %s858 = sshrl.u32 %s857, 1
    %s859 = sor.u32 %s857, %s858
    %s860 = sand.u32 51, %s859
    %s861 = sshrl.u32 %s860, 2
    %s862 = sor.u32 %s860, %s861
    %s863 = sand.u32 15, %s862
    %v864 = vld [vmem:[%s854] sm:%s863]
    %v865 = vunpack.c.l.bf16 %v864
    %v866 = vunpack.c.h.bf16 %v864
    %v867 = vlaneseq
    %v868 = vand.u32 %v867, 127
    %vm870 = vcmp.lt.s32.totalorder %v868, 32
    %v871 = vsel %vm870, %v865, %v15
    %s872 = scalar_lea.vmem [#allocation37], 140
    %v873 = vpack.c.bf16 0.0, %v871
    %s875 = ssub.s32 16, 1
    %876 = vst [vmem:[%s872] sm:%s875] %v873
    %s877 = scalar_lea.vmem %s0, 144
    %s879 = sor.u32 255, 127
    %s880 = sand.u32 %s879, 85
    %s881 = sshrl.u32 %s880, 1
    %s882 = sor.u32 %s880, %s881
    %s883 = sand.u32 51, %s882
    %s884 = sshrl.u32 %s883, 2
    %s885 = sor.u32 %s883, %s884
    %s886 = sand.u32 15, %s885
    %v887 = vld [vmem:[%s877] sm:%s886]
    %v888 = vunpack.c.l.bf16 %v887
    %v889 = vunpack.c.h.bf16 %v887
    %v890 = vlaneseq
    %v891 = vand.u32 %v890, 127
    %vm893 = vcmp.lt.s32.totalorder %v891, 32
    %v894 = vsel %vm893, %v888, %v15
    %s895 = scalar_lea.vmem [#allocation37], 144
    %v896 = vpack.c.bf16 0.0, %v894
    %s898 = ssub.s32 16, 1
    %899 = vst [vmem:[%s895] sm:%s898] %v896
    %s900 = scalar_lea.vmem %s0, 148
    %s902 = sor.u32 255, 127
    %s903 = sand.u32 %s902, 85
    %s904 = sshrl.u32 %s903, 1
    %s905 = sor.u32 %s903, %s904
    %s906 = sand.u32 51, %s905
    %s907 = sshrl.u32 %s906, 2
    %s908 = sor.u32 %s906, %s907
    %s909 = sand.u32 15, %s908
    %v910 = vld [vmem:[%s900] sm:%s909]
    %v911 = vunpack.c.l.bf16 %v910
    %v912 = vunpack.c.h.bf16 %v910
    %v913 = vlaneseq
    %v914 = vand.u32 %v913, 127
    %vm916 = vcmp.lt.s32.totalorder %v914, 32
    %v917 = vsel %vm916, %v911, %v15
    %s918 = scalar_lea.vmem [#allocation37], 148
    %v919 = vpack.c.bf16 0.0, %v917
    %s921 = ssub.s32 16, 1
    %922 = vst [vmem:[%s918] sm:%s921] %v919
    %s923 = scalar_lea.vmem %s0, 152
    %s925 = sor.u32 255, 127
    %s926 = sand.u32 %s925, 85
    %s927 = sshrl.u32 %s926, 1
    %s928 = sor.u32 %s926, %s927
    %s929 = sand.u32 51, %s928
    %s930 = sshrl.u32 %s929, 2
    %s931 = sor.u32 %s929, %s930
    %s932 = sand.u32 15, %s931
    %v933 = vld [vmem:[%s923] sm:%s932]
    %v934 = vunpack.c.l.bf16 %v933
    %v935 = vunpack.c.h.bf16 %v933
    %v936 = vlaneseq
    %v937 = vand.u32 %v936, 127
    %vm939 = vcmp.lt.s32.totalorder %v937, 32
    %v940 = vsel %vm939, %v934, %v15
    %s941 = scalar_lea.vmem [#allocation37], 152
    %v942 = vpack.c.bf16 0.0, %v940
    %s944 = ssub.s32 16, 1
    %945 = vst [vmem:[%s941] sm:%s944] %v942
    %s946 = scalar_lea.vmem %s0, 156
    %s948 = sor.u32 255, 127
    %s949 = sand.u32 %s948, 85
    %s950 = sshrl.u32 %s949, 1
    %s951 = sor.u32 %s949, %s950
    %s952 = sand.u32 51, %s951
    %s953 = sshrl.u32 %s952, 2
    %s954 = sor.u32 %s952, %s953
    %s955 = sand.u32 15, %s954
    %v956 = vld [vmem:[%s946] sm:%s955]
    %v957 = vunpack.c.l.bf16 %v956
    %v958 = vunpack.c.h.bf16 %v956
    %v959 = vlaneseq
    %v960 = vand.u32 %v959, 127
    %vm962 = vcmp.lt.s32.totalorder %v960, 32
    %v963 = vsel %vm962, %v957, %v15
    %s964 = scalar_lea.vmem [#allocation37], 156
    %v965 = vpack.c.bf16 0.0, %v963
    %s967 = ssub.s32 16, 1
    %968 = vst [vmem:[%s964] sm:%s967] %v965
    %s969 = scalar_lea.vmem %s0, 160
    %s971 = sor.u32 255, 127
    %s972 = sand.u32 %s971, 85
    %s973 = sshrl.u32 %s972, 1
    %s974 = sor.u32 %s972, %s973
    %s975 = sand.u32 51, %s974
    %s976 = sshrl.u32 %s975, 2
    %s977 = sor.u32 %s975, %s976
    %s978 = sand.u32 15, %s977
    %v979 = vld [vmem:[%s969] sm:%s978]
    %v980 = vunpack.c.l.bf16 %v979
    %v981 = vunpack.c.h.bf16 %v979
    %v982 = vlaneseq
    %v983 = vand.u32 %v982, 127
    %vm985 = vcmp.lt.s32.totalorder %v983, 32
    %v986 = vsel %vm985, %v980, %v15
    %s987 = scalar_lea.vmem [#allocation37], 160
    %v988 = vpack.c.bf16 0.0, %v986
    %s990 = ssub.s32 16, 1
    %991 = vst [vmem:[%s987] sm:%s990] %v988
    %s992 = scalar_lea.vmem %s0, 164
    %s994 = sor.u32 255, 127
    %s995 = sand.u32 %s994, 85
    %s996 = sshrl.u32 %s995, 1
    %s997 = sor.u32 %s995, %s996
    %s998 = sand.u32 51, %s997
    %s999 = sshrl.u32 %s998, 2
    %s1000 = sor.u32 %s998, %s999
    %s1001 = sand.u32 15, %s1000
    %v1002 = vld [vmem:[%s992] sm:%s1001]
    %v1003 = vunpack.c.l.bf16 %v1002
    %v1004 = vunpack.c.h.bf16 %v1002
    %v1005 = vlaneseq
    %v1006 = vand.u32 %v1005, 127
    %vm1008 = vcmp.lt.s32.totalorder %v1006, 32
    %v1009 = vsel %vm1008, %v1003, %v15
    %s1010 = scalar_lea.vmem [#allocation37], 164
    %v1011 = vpack.c.bf16 0.0, %v1009
    %s1013 = ssub.s32 16, 1
    %1014 = vst [vmem:[%s1010] sm:%s1013] %v1011
    %s1015 = scalar_lea.vmem %s0, 168
    %s1017 = sor.u32 255, 127
    %s1018 = sand.u32 %s1017, 85
    %s1019 = sshrl.u32 %s1018, 1
    %s1020 = sor.u32 %s1018, %s1019
    %s1021 = sand.u32 51, %s1020
    %s1022 = sshrl.u32 %s1021, 2
    %s1023 = sor.u32 %s1021, %s1022
    %s1024 = sand.u32 15, %s1023
    %v1025 = vld [vmem:[%s1015] sm:%s1024]
    %v1026 = vunpack.c.l.bf16 %v1025
    %v1027 = vunpack.c.h.bf16 %v1025
    %v1028 = vlaneseq
    %v1029 = vand.u32 %v1028, 127
    %vm1031 = vcmp.lt.s32.totalorder %v1029, 32
    %v1032 = vsel %vm1031, %v1026, %v15
    %s1033 = scalar_lea.vmem [#allocation37], 168
    %v1034 = vpack.c.bf16 0.0, %v1032
    %s1036 = ssub.s32 16, 1
    %1037 = vst [vmem:[%s1033] sm:%s1036] %v1034
    %s1038 = scalar_lea.vmem %s0, 172
    %s1040 = sor.u32 255, 127
    %s1041 = sand.u32 %s1040, 85
    %s1042 = sshrl.u32 %s1041, 1
    %s1043 = sor.u32 %s1041, %s1042
    %s1044 = sand.u32 51, %s1043
    %s1045 = sshrl.u32 %s1044, 2
    %s1046 = sor.u32 %s1044, %s1045
    %s1047 = sand.u32 15, %s1046
    %v1048 = vld [vmem:[%s1038] sm:%s1047]
    %v1049 = vunpack.c.l.bf16 %v1048
    %v1050 = vunpack.c.h.bf16 %v1048
    %v1051 = vlaneseq
    %v1052 = vand.u32 %v1051, 127
    %vm1054 = vcmp.lt.s32.totalorder %v1052, 32
    %v1055 = vsel %vm1054, %v1049, %v15
    %s1056 = scalar_lea.vmem [#allocation37], 172
    %v1057 = vpack.c.bf16 0.0, %v1055
    %s1059 = ssub.s32 16, 1
    %1060 = vst [vmem:[%s1056] sm:%s1059] %v1057
    %s1061 = scalar_lea.vmem %s0, 176
    %s1063 = sor.u32 255, 127
    %s1064 = sand.u32 %s1063, 85
    %s1065 = sshrl.u32 %s1064, 1
    %s1066 = sor.u32 %s1064, %s1065
    %s1067 = sand.u32 51, %s1066
    %s1068 = sshrl.u32 %s1067, 2
    %s1069 = sor.u32 %s1067, %s1068
    %s1070 = sand.u32 15, %s1069
    %v1071 = vld [vmem:[%s1061] sm:%s1070]
    %v1072 = vunpack.c.l.bf16 %v1071
    %v1073 = vunpack.c.h.bf16 %v1071
    %v1074 = vlaneseq
    %v1075 = vand.u32 %v1074, 127
    %vm1077 = vcmp.lt.s32.totalorder %v1075, 32
    %v1078 = vsel %vm1077, %v1072, %v15
    %s1079 = scalar_lea.vmem [#allocation37], 176
    %v1080 = vpack.c.bf16 0.0, %v1078
    %s1082 = ssub.s32 16, 1
    %1083 = vst [vmem:[%s1079] sm:%s1082] %v1080
    %s1084 = scalar_lea.vmem %s0, 180
    %s1086 = sor.u32 255, 127
    %s1087 = sand.u32 %s1086, 85
    %s1088 = sshrl.u32 %s1087, 1
    %s1089 = sor.u32 %s1087, %s1088
    %s1090 = sand.u32 51, %s1089
    %s1091 = sshrl.u32 %s1090, 2
    %s1092 = sor.u32 %s1090, %s1091
    %s1093 = sand.u32 15, %s1092
    %v1094 = vld [vmem:[%s1084] sm:%s1093]
    %v1095 = vunpack.c.l.bf16 %v1094
    %v1096 = vunpack.c.h.bf16 %v1094
    %v1097 = vlaneseq
    %v1098 = vand.u32 %v1097, 127
    %vm1100 = vcmp.lt.s32.totalorder %v1098, 32
    %v1101 = vsel %vm1100, %v1095, %v15
    %s1102 = scalar_lea.vmem [#allocation37], 180
    %v1103 = vpack.c.bf16 0.0, %v1101
    %s1105 = ssub.s32 16, 1
    %1106 = vst [vmem:[%s1102] sm:%s1105] %v1103
    %s1107 = scalar_lea.vmem %s0, 184
    %s1109 = sor.u32 255, 127
    %s1110 = sand.u32 %s1109, 85
    %s1111 = sshrl.u32 %s1110, 1
    %s1112 = sor.u32 %s1110, %s1111
    %s1113 = sand.u32 51, %s1112
    %s1114 = sshrl.u32 %s1113, 2
    %s1115 = sor.u32 %s1113, %s1114
    %s1116 = sand.u32 15, %s1115
    %v1117 = vld [vmem:[%s1107] sm:%s1116]
    %v1118 = vunpack.c.l.bf16 %v1117
    %v1119 = vunpack.c.h.bf16 %v1117
    %v1120 = vlaneseq
    %v1121 = vand.u32 %v1120, 127
    %vm1123 = vcmp.lt.s32.totalorder %v1121, 32
    %v1124 = vsel %vm1123, %v1118, %v15
    %s1125 = scalar_lea.vmem [#allocation37], 184
    %v1126 = vpack.c.bf16 0.0, %v1124
    %s1128 = ssub.s32 16, 1
    %1129 = vst [vmem:[%s1125] sm:%s1128] %v1126
    %s1130 = scalar_lea.vmem %s0, 188
    %s1132 = sor.u32 255, 127
    %s1133 = sand.u32 %s1132, 85
    %s1134 = sshrl.u32 %s1133, 1
    %s1135 = sor.u32 %s1133, %s1134
    %s1136 = sand.u32 51, %s1135
    %s1137 = sshrl.u32 %s1136, 2
    %s1138 = sor.u32 %s1136, %s1137
    %s1139 = sand.u32 15, %s1138
    %v1140 = vld [vmem:[%s1130] sm:%s1139]
    %v1141 = vunpack.c.l.bf16 %v1140
    %v1142 = vunpack.c.h.bf16 %v1140
    %v1143 = vlaneseq
    %v1144 = vand.u32 %v1143, 127
    %vm1146 = vcmp.lt.s32.totalorder %v1144, 32
    %v1147 = vsel %vm1146, %v1141, %v15
    %s1148 = scalar_lea.vmem [#allocation37], 188
    %v1149 = vpack.c.bf16 0.0, %v1147
    %s1151 = ssub.s32 16, 1
    %1152 = vst [vmem:[%s1148] sm:%s1151] %v1149
    %s1153 = scalar_lea.vmem %s0, 192
    %s1155 = sor.u32 255, 127
    %s1156 = sand.u32 %s1155, 85
    %s1157 = sshrl.u32 %s1156, 1
    %s1158 = sor.u32 %s1156, %s1157
    %s1159 = sand.u32 51, %s1158
    %s1160 = sshrl.u32 %s1159, 2
    %s1161 = sor.u32 %s1159, %s1160
    %s1162 = sand.u32 15, %s1161
    %v1163 = vld [vmem:[%s1153] sm:%s1162]
    %v1164 = vunpack.c.l.bf16 %v1163
    %v1165 = vunpack.c.h.bf16 %v1163
    %v1166 = vlaneseq
    %v1167 = vand.u32 %v1166, 127
    %vm1169 = vcmp.lt.s32.totalorder %v1167, 32
    %v1170 = vsel %vm1169, %v1164, %v15
    %s1171 = scalar_lea.vmem [#allocation37], 192
    %v1172 = vpack.c.bf16 0.0, %v1170
    %s1174 = ssub.s32 16, 1
    %1175 = vst [vmem:[%s1171] sm:%s1174] %v1172
    %s1176 = scalar_lea.vmem %s0, 196
    %s1178 = sor.u32 255, 127
    %s1179 = sand.u32 %s1178, 85
    %s1180 = sshrl.u32 %s1179, 1
    %s1181 = sor.u32 %s1179, %s1180
    %s1182 = sand.u32 51, %s1181
    %s1183 = sshrl.u32 %s1182, 2
    %s1184 = sor.u32 %s1182, %s1183
    %s1185 = sand.u32 15, %s1184
    %v1186 = vld [vmem:[%s1176] sm:%s1185]
    %v1187 = vunpack.c.l.bf16 %v1186
    %v1188 = vunpack.c.h.bf16 %v1186
    %v1189 = vlaneseq
    %v1190 = vand.u32 %v1189, 127
    %vm1192 = vcmp.lt.s32.totalorder %v1190, 32
    %v1193 = vsel %vm1192, %v1187, %v15
    %s1194 = scalar_lea.vmem [#allocation37], 196
    %v1195 = vpack.c.bf16 0.0, %v1193
    %s1197 = ssub.s32 16, 1
    %1198 = vst [vmem:[%s1194] sm:%s1197] %v1195
    %s1199 = scalar_lea.vmem %s0, 200
    %s1201 = sor.u32 255, 127
    %s1202 = sand.u32 %s1201, 85
    %s1203 = sshrl.u32 %s1202, 1
    %s1204 = sor.u32 %s1202, %s1203
    %s1205 = sand.u32 51, %s1204
    %s1206 = sshrl.u32 %s1205, 2
    %s1207 = sor.u32 %s1205, %s1206
    %s1208 = sand.u32 15, %s1207
    %v1209 = vld [vmem:[%s1199] sm:%s1208]
    %v1210 = vunpack.c.l.bf16 %v1209
    %v1211 = vunpack.c.h.bf16 %v1209
    %v1212 = vlaneseq
    %v1213 = vand.u32 %v1212, 127
    %vm1215 = vcmp.lt.s32.totalorder %v1213, 32
    %v1216 = vsel %vm1215, %v1210, %v15
    %s1217 = scalar_lea.vmem [#allocation37], 200
    %v1218 = vpack.c.bf16 0.0, %v1216
    %s1220 = ssub.s32 16, 1
    %1221 = vst [vmem:[%s1217] sm:%s1220] %v1218
    %s1222 = scalar_lea.vmem %s0, 204
    %s1224 = sor.u32 255, 127
    %s1225 = sand.u32 %s1224, 85
    %s1226 = sshrl.u32 %s1225, 1
    %s1227 = sor.u32 %s1225, %s1226
    %s1228 = sand.u32 51, %s1227
    %s1229 = sshrl.u32 %s1228, 2
    %s1230 = sor.u32 %s1228, %s1229
    %s1231 = sand.u32 15, %s1230
    %v1232 = vld [vmem:[%s1222] sm:%s1231]
    %v1233 = vunpack.c.l.bf16 %v1232
    %v1234 = vunpack.c.h.bf16 %v1232
    %v1235 = vlaneseq
    %v1236 = vand.u32 %v1235, 127
    %vm1238 = vcmp.lt.s32.totalorder %v1236, 32
    %v1239 = vsel %vm1238, %v1233, %v15
    %s1240 = scalar_lea.vmem [#allocation37], 204
    %v1241 = vpack.c.bf16 0.0, %v1239
    %s1243 = ssub.s32 16, 1
    %1244 = vst [vmem:[%s1240] sm:%s1243] %v1241
    %s1245 = scalar_lea.vmem %s0, 208
    %s1247 = sor.u32 255, 127
    %s1248 = sand.u32 %s1247, 85
    %s1249 = sshrl.u32 %s1248, 1
    %s1250 = sor.u32 %s1248, %s1249
    %s1251 = sand.u32 51, %s1250
    %s1252 = sshrl.u32 %s1251, 2
    %s1253 = sor.u32 %s1251, %s1252
    %s1254 = sand.u32 15, %s1253
    %v1255 = vld [vmem:[%s1245] sm:%s1254]
    %v1256 = vunpack.c.l.bf16 %v1255
    %v1257 = vunpack.c.h.bf16 %v1255
    %v1258 = vlaneseq
    %v1259 = vand.u32 %v1258, 127
    %vm1261 = vcmp.lt.s32.totalorder %v1259, 32
    %v1262 = vsel %vm1261, %v1256, %v15
    %s1263 = scalar_lea.vmem [#allocation37], 208
    %v1264 = vpack.c.bf16 0.0, %v1262
    %s1266 = ssub.s32 16, 1
    %1267 = vst [vmem:[%s1263] sm:%s1266] %v1264
    %s1268 = scalar_lea.vmem %s0, 212
    %s1270 = sor.u32 255, 127
    %s1271 = sand.u32 %s1270, 85
    %s1272 = sshrl.u32 %s1271, 1
    %s1273 = sor.u32 %s1271, %s1272
    %s1274 = sand.u32 51, %s1273
    %s1275 = sshrl.u32 %s1274, 2
    %s1276 = sor.u32 %s1274, %s1275
    %s1277 = sand.u32 15, %s1276
    %v1278 = vld [vmem:[%s1268] sm:%s1277]
    %v1279 = vunpack.c.l.bf16 %v1278
    %v1280 = vunpack.c.h.bf16 %v1278
    %v1281 = vlaneseq
    %v1282 = vand.u32 %v1281, 127
    %vm1284 = vcmp.lt.s32.totalorder %v1282, 32
    %v1285 = vsel %vm1284, %v1279, %v15
    %s1286 = scalar_lea.vmem [#allocation37], 212
    %v1287 = vpack.c.bf16 0.0, %v1285
    %s1289 = ssub.s32 16, 1
    %1290 = vst [vmem:[%s1286] sm:%s1289] %v1287
    %s1291 = scalar_lea.vmem %s0, 216
    %s1293 = sor.u32 255, 127
    %s1294 = sand.u32 %s1293, 85
    %s1295 = sshrl.u32 %s1294, 1
    %s1296 = sor.u32 %s1294, %s1295
    %s1297 = sand.u32 51, %s1296
    %s1298 = sshrl.u32 %s1297, 2
    %s1299 = sor.u32 %s1297, %s1298
    %s1300 = sand.u32 15, %s1299
    %v1301 = vld [vmem:[%s1291] sm:%s1300]
    %v1302 = vunpack.c.l.bf16 %v1301
    %v1303 = vunpack.c.h.bf16 %v1301
    %v1304 = vlaneseq
    %v1305 = vand.u32 %v1304, 127
    %vm1307 = vcmp.lt.s32.totalorder %v1305, 32
    %v1308 = vsel %vm1307, %v1302, %v15
    %s1309 = scalar_lea.vmem [#allocation37], 216
    %v1310 = vpack.c.bf16 0.0, %v1308
    %s1312 = ssub.s32 16, 1
    %1313 = vst [vmem:[%s1309] sm:%s1312] %v1310
    %s1314 = scalar_lea.vmem %s0, 220
    %s1316 = sor.u32 255, 127
    %s1317 = sand.u32 %s1316, 85
    %s1318 = sshrl.u32 %s1317, 1
    %s1319 = sor.u32 %s1317, %s1318
    %s1320 = sand.u32 51, %s1319
    %s1321 = sshrl.u32 %s1320, 2
    %s1322 = sor.u32 %s1320, %s1321
    %s1323 = sand.u32 15, %s1322
    %v1324 = vld [vmem:[%s1314] sm:%s1323]
    %v1325 = vunpack.c.l.bf16 %v1324
    %v1326 = vunpack.c.h.bf16 %v1324
    %v1327 = vlaneseq
    %v1328 = vand.u32 %v1327, 127
    %vm1330 = vcmp.lt.s32.totalorder %v1328, 32
    %v1331 = vsel %vm1330, %v1325, %v15
    %s1332 = scalar_lea.vmem [#allocation37], 220
    %v1333 = vpack.c.bf16 0.0, %v1331
    %s1335 = ssub.s32 16, 1
    %1336 = vst [vmem:[%s1332] sm:%s1335] %v1333
    %s1337 = scalar_lea.vmem %s0, 224
    %s1339 = sor.u32 255, 127
    %s1340 = sand.u32 %s1339, 85
    %s1341 = sshrl.u32 %s1340, 1
    %s1342 = sor.u32 %s1340, %s1341
    %s1343 = sand.u32 51, %s1342
    %s1344 = sshrl.u32 %s1343, 2
    %s1345 = sor.u32 %s1343, %s1344
    %s1346 = sand.u32 15, %s1345
    %v1347 = vld [vmem:[%s1337] sm:%s1346]
    %v1348 = vunpack.c.l.bf16 %v1347
    %v1349 = vunpack.c.h.bf16 %v1347
    %v1350 = vlaneseq
    %v1351 = vand.u32 %v1350, 127
    %vm1353 = vcmp.lt.s32.totalorder %v1351, 32
    %v1354 = vsel %vm1353, %v1348, %v15
    %s1355 = scalar_lea.vmem [#allocation37], 224
    %v1356 = vpack.c.bf16 0.0, %v1354
    %s1358 = ssub.s32 16, 1
    %1359 = vst [vmem:[%s1355] sm:%s1358] %v1356
    %s1360 = scalar_lea.vmem %s0, 228
    %s1362 = sor.u32 255, 127
    %s1363 = sand.u32 %s1362, 85
    %s1364 = sshrl.u32 %s1363, 1
    %s1365 = sor.u32 %s1363, %s1364
    %s1366 = sand.u32 51, %s1365
    %s1367 = sshrl.u32 %s1366, 2
    %s1368 = sor.u32 %s1366, %s1367
    %s1369 = sand.u32 15, %s1368
    %v1370 = vld [vmem:[%s1360] sm:%s1369]
    %v1371 = vunpack.c.l.bf16 %v1370
    %v1372 = vunpack.c.h.bf16 %v1370
    %v1373 = vlaneseq
    %v1374 = vand.u32 %v1373, 127
    %vm1376 = vcmp.lt.s32.totalorder %v1374, 32
    %v1377 = vsel %vm1376, %v1371, %v15
    %s1378 = scalar_lea.vmem [#allocation37], 228
    %v1379 = vpack.c.bf16 0.0, %v1377
    %s1381 = ssub.s32 16, 1
    %1382 = vst [vmem:[%s1378] sm:%s1381] %v1379
    %s1383 = scalar_lea.vmem %s0, 232
    %s1385 = sor.u32 255, 127
    %s1386 = sand.u32 %s1385, 85
    %s1387 = sshrl.u32 %s1386, 1
    %s1388 = sor.u32 %s1386, %s1387
    %s1389 = sand.u32 51, %s1388
    %s1390 = sshrl.u32 %s1389, 2
    %s1391 = sor.u32 %s1389, %s1390
    %s1392 = sand.u32 15, %s1391
    %v1393 = vld [vmem:[%s1383] sm:%s1392]
    %v1394 = vunpack.c.l.bf16 %v1393
    %v1395 = vunpack.c.h.bf16 %v1393
    %v1396 = vlaneseq
    %v1397 = vand.u32 %v1396, 127
    %vm1399 = vcmp.lt.s32.totalorder %v1397, 32
    %v1400 = vsel %vm1399, %v1394, %v15
    %s1401 = scalar_lea.vmem [#allocation37], 232
    %v1402 = vpack.c.bf16 0.0, %v1400
    %s1404 = ssub.s32 16, 1
    %1405 = vst [vmem:[%s1401] sm:%s1404] %v1402
    %s1406 = scalar_lea.vmem %s0, 236
    %s1408 = sor.u32 255, 127
    %s1409 = sand.u32 %s1408, 85
    %s1410 = sshrl.u32 %s1409, 1
    %s1411 = sor.u32 %s1409, %s1410
    %s1412 = sand.u32 51, %s1411
    %s1413 = sshrl.u32 %s1412, 2
    %s1414 = sor.u32 %s1412, %s1413
    %s1415 = sand.u32 15, %s1414
    %v1416 = vld [vmem:[%s1406] sm:%s1415]
    %v1417 = vunpack.c.l.bf16 %v1416
    %v1418 = vunpack.c.h.bf16 %v1416
    %v1419 = vlaneseq
    %v1420 = vand.u32 %v1419, 127
    %vm1422 = vcmp.lt.s32.totalorder %v1420, 32
    %v1423 = vsel %vm1422, %v1417, %v15
    %s1424 = scalar_lea.vmem [#allocation37], 236
    %v1425 = vpack.c.bf16 0.0, %v1423
    %s1427 = ssub.s32 16, 1
    %1428 = vst [vmem:[%s1424] sm:%s1427] %v1425
    %s1429 = scalar_lea.vmem %s0, 240
    %s1431 = sor.u32 255, 127
    %s1432 = sand.u32 %s1431, 85
    %s1433 = sshrl.u32 %s1432, 1
    %s1434 = sor.u32 %s1432, %s1433
    %s1435 = sand.u32 51, %s1434
    %s1436 = sshrl.u32 %s1435, 2
    %s1437 = sor.u32 %s1435, %s1436
    %s1438 = sand.u32 15, %s1437
    %v1439 = vld [vmem:[%s1429] sm:%s1438]
    %v1440 = vunpack.c.l.bf16 %v1439
    %v1441 = vunpack.c.h.bf16 %v1439
    %v1442 = vlaneseq
    %v1443 = vand.u32 %v1442, 127
    %vm1445 = vcmp.lt.s32.totalorder %v1443, 32
    %v1446 = vsel %vm1445, %v1440, %v15
    %s1447 = scalar_lea.vmem [#allocation37], 240
    %v1448 = vpack.c.bf16 0.0, %v1446
    %s1450 = ssub.s32 16, 1
    %1451 = vst [vmem:[%s1447] sm:%s1450] %v1448
    %s1452 = scalar_lea.vmem %s0, 244
    %s1454 = sor.u32 255, 127
    %s1455 = sand.u32 %s1454, 85
    %s1456 = sshrl.u32 %s1455, 1
    %s1457 = sor.u32 %s1455, %s1456
    %s1458 = sand.u32 51, %s1457
    %s1459 = sshrl.u32 %s1458, 2
    %s1460 = sor.u32 %s1458, %s1459
    %s1461 = sand.u32 15, %s1460
    %v1462 = vld [vmem:[%s1452] sm:%s1461]
    %v1463 = vunpack.c.l.bf16 %v1462
    %v1464 = vunpack.c.h.bf16 %v1462
    %v1465 = vlaneseq
    %v1466 = vand.u32 %v1465, 127
    %vm1468 = vcmp.lt.s32.totalorder %v1466, 32
    %v1469 = vsel %vm1468, %v1463, %v15
    %s1470 = scalar_lea.vmem [#allocation37], 244
    %v1471 = vpack.c.bf16 0.0, %v1469
    %s1473 = ssub.s32 16, 1
    %1474 = vst [vmem:[%s1470] sm:%s1473] %v1471
    %s1475 = scalar_lea.vmem %s0, 248
    %s1477 = sor.u32 255, 127
    %s1478 = sand.u32 %s1477, 85
    %s1479 = sshrl.u32 %s1478, 1
    %s1480 = sor.u32 %s1478, %s1479
    %s1481 = sand.u32 51, %s1480
    %s1482 = sshrl.u32 %s1481, 2
    %s1483 = sor.u32 %s1481, %s1482
    %s1484 = sand.u32 15, %s1483
    %v1485 = vld [vmem:[%s1475] sm:%s1484]
    %v1486 = vunpack.c.l.bf16 %v1485
    %v1487 = vunpack.c.h.bf16 %v1485
    %v1488 = vlaneseq
    %v1489 = vand.u32 %v1488, 127
    %vm1491 = vcmp.lt.s32.totalorder %v1489, 32
    %v1492 = vsel %vm1491, %v1486, %v15
    %s1493 = scalar_lea.vmem [#allocation37], 248
    %v1494 = vpack.c.bf16 0.0, %v1492
    %s1496 = ssub.s32 16, 1
    %1497 = vst [vmem:[%s1493] sm:%s1496] %v1494
    %s1498 = scalar_lea.vmem %s0, 252
    %s1500 = sor.u32 255, 127
    %s1501 = sand.u32 %s1500, 85
    %s1502 = sshrl.u32 %s1501, 1
    %s1503 = sor.u32 %s1501, %s1502
    %s1504 = sand.u32 51, %s1503
    %s1505 = sshrl.u32 %s1504, 2
    %s1506 = sor.u32 %s1504, %s1505
    %s1507 = sand.u32 15, %s1506
    %v1508 = vld [vmem:[%s1498] sm:%s1507]
    %v1509 = vunpack.c.l.bf16 %v1508
    %v1510 = vunpack.c.h.bf16 %v1508
    %v1511 = vlaneseq
    %v1512 = vand.u32 %v1511, 127
    %vm1514 = vcmp.lt.s32.totalorder %v1512, 32
    %v1515 = vsel %vm1514, %v1509, %v15
    %s1516 = scalar_lea.vmem [#allocation37], 252
    %v1517 = vpack.c.bf16 0.0, %v1515
    %s1519 = ssub.s32 16, 1
    %1520 = vst [vmem:[%s1516] sm:%s1519] %v1517
    %s1521 = scalar_lea.vmem %s0, 256
    %s1523 = sor.u32 255, 127
    %s1524 = sand.u32 %s1523, 85
    %s1525 = sshrl.u32 %s1524, 1
    %s1526 = sor.u32 %s1524, %s1525
    %s1527 = sand.u32 51, %s1526
    %s1528 = sshrl.u32 %s1527, 2
    %s1529 = sor.u32 %s1527, %s1528
    %s1530 = sand.u32 15, %s1529
    %v1531 = vld [vmem:[%s1521] sm:%s1530]
    %v1532 = vunpack.c.l.bf16 %v1531
    %v1533 = vunpack.c.h.bf16 %v1531
    %v1534 = vlaneseq
    %v1535 = vand.u32 %v1534, 127
    %vm1537 = vcmp.lt.s32.totalorder %v1535, 32
    %v1538 = vsel %vm1537, %v1532, %v15
    %s1539 = scalar_lea.vmem [#allocation37], 256
    %v1540 = vpack.c.bf16 0.0, %v1538
    %s1542 = ssub.s32 16, 1
    %1543 = vst [vmem:[%s1539] sm:%s1542] %v1540
    %s1544 = scalar_lea.vmem %s0, 260
    %s1546 = sor.u32 255, 127
    %s1547 = sand.u32 %s1546, 85
    %s1548 = sshrl.u32 %s1547, 1
    %s1549 = sor.u32 %s1547, %s1548
    %s1550 = sand.u32 51, %s1549
    %s1551 = sshrl.u32 %s1550, 2
    %s1552 = sor.u32 %s1550, %s1551
    %s1553 = sand.u32 15, %s1552
    %v1554 = vld [vmem:[%s1544] sm:%s1553]
    %v1555 = vunpack.c.l.bf16 %v1554
    %v1556 = vunpack.c.h.bf16 %v1554
    %v1557 = vlaneseq
    %v1558 = vand.u32 %v1557, 127
    %vm1560 = vcmp.lt.s32.totalorder %v1558, 32
    %v1561 = vsel %vm1560, %v1555, %v15
    %s1562 = scalar_lea.vmem [#allocation37], 260
    %v1563 = vpack.c.bf16 0.0, %v1561
    %s1565 = ssub.s32 16, 1
    %1566 = vst [vmem:[%s1562] sm:%s1565] %v1563
    %s1567 = scalar_lea.vmem %s0, 264
    %s1569 = sor.u32 255, 127
    %s1570 = sand.u32 %s1569, 85
    %s1571 = sshrl.u32 %s1570, 1
    %s1572 = sor.u32 %s1570, %s1571
    %s1573 = sand.u32 51, %s1572
    %s1574 = sshrl.u32 %s1573, 2
    %s1575 = sor.u32 %s1573, %s1574
    %s1576 = sand.u32 15, %s1575
    %v1577 = vld [vmem:[%s1567] sm:%s1576]
    %v1578 = vunpack.c.l.bf16 %v1577
    %v1579 = vunpack.c.h.bf16 %v1577
    %v1580 = vlaneseq
    %v1581 = vand.u32 %v1580, 127
    %vm1583 = vcmp.lt.s32.totalorder %v1581, 32
    %v1584 = vsel %vm1583, %v1578, %v15
    %s1585 = scalar_lea.vmem [#allocation37], 264
    %v1586 = vpack.c.bf16 0.0, %v1584
    %s1588 = ssub.s32 16, 1
    %1589 = vst [vmem:[%s1585] sm:%s1588] %v1586
    %s1590 = scalar_lea.vmem %s0, 268
    %s1592 = sor.u32 255, 127
    %s1593 = sand.u32 %s1592, 85
    %s1594 = sshrl.u32 %s1593, 1
    %s1595 = sor.u32 %s1593, %s1594
    %s1596 = sand.u32 51, %s1595
    %s1597 = sshrl.u32 %s1596, 2
    %s1598 = sor.u32 %s1596, %s1597
    %s1599 = sand.u32 15, %s1598
    %v1600 = vld [vmem:[%s1590] sm:%s1599]
    %v1601 = vunpack.c.l.bf16 %v1600
    %v1602 = vunpack.c.h.bf16 %v1600
    %v1603 = vlaneseq
    %v1604 = vand.u32 %v1603, 127
    %vm1606 = vcmp.lt.s32.totalorder %v1604, 32
    %v1607 = vsel %vm1606, %v1601, %v15
    %s1608 = scalar_lea.vmem [#allocation37], 268
    %v1609 = vpack.c.bf16 0.0, %v1607
    %s1611 = ssub.s32 16, 1
    %1612 = vst [vmem:[%s1608] sm:%s1611] %v1609
    %s1613 = scalar_lea.vmem %s0, 272
    %s1615 = sor.u32 255, 127
    %s1616 = sand.u32 %s1615, 85
    %s1617 = sshrl.u32 %s1616, 1
    %s1618 = sor.u32 %s1616, %s1617
    %s1619 = sand.u32 51, %s1618
    %s1620 = sshrl.u32 %s1619, 2
    %s1621 = sor.u32 %s1619, %s1620
    %s1622 = sand.u32 15, %s1621
    %v1623 = vld [vmem:[%s1613] sm:%s1622]
    %v1624 = vunpack.c.l.bf16 %v1623
    %v1625 = vunpack.c.h.bf16 %v1623
    %v1626 = vlaneseq
    %v1627 = vand.u32 %v1626, 127
    %vm1629 = vcmp.lt.s32.totalorder %v1627, 32
    %v1630 = vsel %vm1629, %v1624, %v15
    %s1631 = scalar_lea.vmem [#allocation37], 272
    %v1632 = vpack.c.bf16 0.0, %v1630
    %s1634 = ssub.s32 16, 1
    %1635 = vst [vmem:[%s1631] sm:%s1634] %v1632
    %s1636 = scalar_lea.vmem %s0, 276
    %s1638 = sor.u32 255, 127
    %s1639 = sand.u32 %s1638, 85
    %s1640 = sshrl.u32 %s1639, 1
    %s1641 = sor.u32 %s1639, %s1640
    %s1642 = sand.u32 51, %s1641
    %s1643 = sshrl.u32 %s1642, 2
    %s1644 = sor.u32 %s1642, %s1643
    %s1645 = sand.u32 15, %s1644
    %v1646 = vld [vmem:[%s1636] sm:%s1645]
    %v1647 = vunpack.c.l.bf16 %v1646
    %v1648 = vunpack.c.h.bf16 %v1646
    %v1649 = vlaneseq
    %v1650 = vand.u32 %v1649, 127
    %vm1652 = vcmp.lt.s32.totalorder %v1650, 32
    %v1653 = vsel %vm1652, %v1647, %v15
    %s1654 = scalar_lea.vmem [#allocation37], 276
    %v1655 = vpack.c.bf16 0.0, %v1653
    %s1657 = ssub.s32 16, 1
    %1658 = vst [vmem:[%s1654] sm:%s1657] %v1655
    %s1659 = scalar_lea.vmem %s0, 280
    %s1661 = sor.u32 255, 127
    %s1662 = sand.u32 %s1661, 85
    %s1663 = sshrl.u32 %s1662, 1
    %s1664 = sor.u32 %s1662, %s1663
    %s1665 = sand.u32 51, %s1664
    %s1666 = sshrl.u32 %s1665, 2
    %s1667 = sor.u32 %s1665, %s1666
    %s1668 = sand.u32 15, %s1667
    %v1669 = vld [vmem:[%s1659] sm:%s1668]
    %v1670 = vunpack.c.l.bf16 %v1669
    %v1671 = vunpack.c.h.bf16 %v1669
    %v1672 = vlaneseq
    %v1673 = vand.u32 %v1672, 127
    %vm1675 = vcmp.lt.s32.totalorder %v1673, 32
    %v1676 = vsel %vm1675, %v1670, %v15
    %s1677 = scalar_lea.vmem [#allocation37], 280
    %v1678 = vpack.c.bf16 0.0, %v1676
    %s1680 = ssub.s32 16, 1
    %1681 = vst [vmem:[%s1677] sm:%s1680] %v1678
    %s1682 = scalar_lea.vmem %s0, 284
    %s1684 = sor.u32 255, 127
    %s1685 = sand.u32 %s1684, 85
    %s1686 = sshrl.u32 %s1685, 1
    %s1687 = sor.u32 %s1685, %s1686
    %s1688 = sand.u32 51, %s1687
    %s1689 = sshrl.u32 %s1688, 2
    %s1690 = sor.u32 %s1688, %s1689
    %s1691 = sand.u32 15, %s1690
    %v1692 = vld [vmem:[%s1682] sm:%s1691]
    %v1693 = vunpack.c.l.bf16 %v1692
    %v1694 = vunpack.c.h.bf16 %v1692
    %v1695 = vlaneseq
    %v1696 = vand.u32 %v1695, 127
    %vm1698 = vcmp.lt.s32.totalorder %v1696, 32
    %v1699 = vsel %vm1698, %v1693, %v15
    %s1700 = scalar_lea.vmem [#allocation37], 284
    %v1701 = vpack.c.bf16 0.0, %v1699
    %s1703 = ssub.s32 16, 1
    %1704 = vst [vmem:[%s1700] sm:%s1703] %v1701
    %s1705 = scalar_lea.vmem %s0, 288
    %s1707 = sor.u32 255, 127
    %s1708 = sand.u32 %s1707, 85
    %s1709 = sshrl.u32 %s1708, 1
    %s1710 = sor.u32 %s1708, %s1709
    %s1711 = sand.u32 51, %s1710
    %s1712 = sshrl.u32 %s1711, 2
    %s1713 = sor.u32 %s1711, %s1712
    %s1714 = sand.u32 15, %s1713
    %v1715 = vld [vmem:[%s1705] sm:%s1714]
    %v1716 = vunpack.c.l.bf16 %v1715
    %v1717 = vunpack.c.h.bf16 %v1715
    %v1718 = vlaneseq
    %v1719 = vand.u32 %v1718, 127
    %vm1721 = vcmp.lt.s32.totalorder %v1719, 32
    %v1722 = vsel %vm1721, %v1716, %v15
    %s1723 = scalar_lea.vmem [#allocation37], 288
    %v1724 = vpack.c.bf16 0.0, %v1722
    %s1726 = ssub.s32 16, 1
    %1727 = vst [vmem:[%s1723] sm:%s1726] %v1724
    %s1728 = scalar_lea.vmem %s0, 292
    %s1730 = sor.u32 255, 127
    %s1731 = sand.u32 %s1730, 85
    %s1732 = sshrl.u32 %s1731, 1
    %s1733 = sor.u32 %s1731, %s1732
    %s1734 = sand.u32 51, %s1733
    %s1735 = sshrl.u32 %s1734, 2
    %s1736 = sor.u32 %s1734, %s1735
    %s1737 = sand.u32 15, %s1736
    %v1738 = vld [vmem:[%s1728] sm:%s1737]
    %v1739 = vunpack.c.l.bf16 %v1738
    %v1740 = vunpack.c.h.bf16 %v1738
    %v1741 = vlaneseq
    %v1742 = vand.u32 %v1741, 127
    %vm1744 = vcmp.lt.s32.totalorder %v1742, 32
    %v1745 = vsel %vm1744, %v1739, %v15
    %s1746 = scalar_lea.vmem [#allocation37], 292
    %v1747 = vpack.c.bf16 0.0, %v1745
    %s1749 = ssub.s32 16, 1
    %1750 = vst [vmem:[%s1746] sm:%s1749] %v1747
    %s1751 = scalar_lea.vmem %s0, 296
    %s1753 = sor.u32 255, 127
    %s1754 = sand.u32 %s1753, 85
    %s1755 = sshrl.u32 %s1754, 1
    %s1756 = sor.u32 %s1754, %s1755
    %s1757 = sand.u32 51, %s1756
    %s1758 = sshrl.u32 %s1757, 2
    %s1759 = sor.u32 %s1757, %s1758
    %s1760 = sand.u32 15, %s1759
    %v1761 = vld [vmem:[%s1751] sm:%s1760]
    %v1762 = vunpack.c.l.bf16 %v1761
    %v1763 = vunpack.c.h.bf16 %v1761
    %v1764 = vlaneseq
    %v1765 = vand.u32 %v1764, 127
    %vm1767 = vcmp.lt.s32.totalorder %v1765, 32
    %v1768 = vsel %vm1767, %v1762, %v15
    %s1769 = scalar_lea.vmem [#allocation37], 296
    %v1770 = vpack.c.bf16 0.0, %v1768
    %s1772 = ssub.s32 16, 1
    %1773 = vst [vmem:[%s1769] sm:%s1772] %v1770
    %s1774 = scalar_lea.vmem %s0, 300
    %s1776 = sor.u32 255, 127
    %s1777 = sand.u32 %s1776, 85
    %s1778 = sshrl.u32 %s1777, 1
    %s1779 = sor.u32 %s1777, %s1778
    %s1780 = sand.u32 51, %s1779
    %s1781 = sshrl.u32 %s1780, 2
    %s1782 = sor.u32 %s1780, %s1781
    %s1783 = sand.u32 15, %s1782
    %v1784 = vld [vmem:[%s1774] sm:%s1783]
    %v1785 = vunpack.c.l.bf16 %v1784
    %v1786 = vunpack.c.h.bf16 %v1784
    %v1787 = vlaneseq
    %v1788 = vand.u32 %v1787, 127
    %vm1790 = vcmp.lt.s32.totalorder %v1788, 32
    %v1791 = vsel %vm1790, %v1785, %v15
    %s1792 = scalar_lea.vmem [#allocation37], 300
    %v1793 = vpack.c.bf16 0.0, %v1791
    %s1795 = ssub.s32 16, 1
    %1796 = vst [vmem:[%s1792] sm:%s1795] %v1793
    %s1797 = scalar_lea.vmem %s0, 304
    %s1799 = sor.u32 255, 127
    %s1800 = sand.u32 %s1799, 85
    %s1801 = sshrl.u32 %s1800, 1
    %s1802 = sor.u32 %s1800, %s1801
    %s1803 = sand.u32 51, %s1802
    %s1804 = sshrl.u32 %s1803, 2
    %s1805 = sor.u32 %s1803, %s1804
    %s1806 = sand.u32 15, %s1805
    %v1807 = vld [vmem:[%s1797] sm:%s1806]
    %v1808 = vunpack.c.l.bf16 %v1807
    %v1809 = vunpack.c.h.bf16 %v1807
    %v1810 = vlaneseq
    %v1811 = vand.u32 %v1810, 127
    %vm1813 = vcmp.lt.s32.totalorder %v1811, 32
    %v1814 = vsel %vm1813, %v1808, %v15
    %s1815 = scalar_lea.vmem [#allocation37], 304
    %v1816 = vpack.c.bf16 0.0, %v1814
    %s1818 = ssub.s32 16, 1
    %1819 = vst [vmem:[%s1815] sm:%s1818] %v1816
    %s1820 = scalar_lea.vmem %s0, 308
    %s1822 = sor.u32 255, 127
    %s1823 = sand.u32 %s1822, 85
    %s1824 = sshrl.u32 %s1823, 1
    %s1825 = sor.u32 %s1823, %s1824
    %s1826 = sand.u32 51, %s1825
    %s1827 = sshrl.u32 %s1826, 2
    %s1828 = sor.u32 %s1826, %s1827
    %s1829 = sand.u32 15, %s1828
    %v1830 = vld [vmem:[%s1820] sm:%s1829]
    %v1831 = vunpack.c.l.bf16 %v1830
    %v1832 = vunpack.c.h.bf16 %v1830
    %v1833 = vlaneseq
    %v1834 = vand.u32 %v1833, 127
    %vm1836 = vcmp.lt.s32.totalorder %v1834, 32
    %v1837 = vsel %vm1836, %v1831, %v15
    %s1838 = scalar_lea.vmem [#allocation37], 308
    %v1839 = vpack.c.bf16 0.0, %v1837
    %s1841 = ssub.s32 16, 1
    %1842 = vst [vmem:[%s1838] sm:%s1841] %v1839
    %s1843 = scalar_lea.vmem %s0, 312
    %s1845 = sor.u32 255, 127
    %s1846 = sand.u32 %s1845, 85
    %s1847 = sshrl.u32 %s1846, 1
    %s1848 = sor.u32 %s1846, %s1847
    %s1849 = sand.u32 51, %s1848
    %s1850 = sshrl.u32 %s1849, 2
    %s1851 = sor.u32 %s1849, %s1850
    %s1852 = sand.u32 15, %s1851
    %v1853 = vld [vmem:[%s1843] sm:%s1852]
    %v1854 = vunpack.c.l.bf16 %v1853
    %v1855 = vunpack.c.h.bf16 %v1853
    %v1856 = vlaneseq
    %v1857 = vand.u32 %v1856, 127
    %vm1859 = vcmp.lt.s32.totalorder %v1857, 32
    %v1860 = vsel %vm1859, %v1854, %v15
    %s1861 = scalar_lea.vmem [#allocation37], 312
    %v1862 = vpack.c.bf16 0.0, %v1860
    %s1864 = ssub.s32 16, 1
    %1865 = vst [vmem:[%s1861] sm:%s1864] %v1862
    %s1866 = scalar_lea.vmem %s0, 316
    %s1868 = sor.u32 255, 127
    %s1869 = sand.u32 %s1868, 85
    %s1870 = sshrl.u32 %s1869, 1
    %s1871 = sor.u32 %s1869, %s1870
    %s1872 = sand.u32 51, %s1871
    %s1873 = sshrl.u32 %s1872, 2
    %s1874 = sor.u32 %s1872, %s1873
    %s1875 = sand.u32 15, %s1874
    %v1876 = vld [vmem:[%s1866] sm:%s1875]
    %v1877 = vunpack.c.l.bf16 %v1876
    %v1878 = vunpack.c.h.bf16 %v1876
    %v1879 = vlaneseq
    %v1880 = vand.u32 %v1879, 127
    %vm1882 = vcmp.lt.s32.totalorder %v1880, 32
    %v1883 = vsel %vm1882, %v1877, %v15
    %s1884 = scalar_lea.vmem [#allocation37], 316
    %v1885 = vpack.c.bf16 0.0, %v1883
    %s1887 = ssub.s32 16, 1
    %1888 = vst [vmem:[%s1884] sm:%s1887] %v1885
    %s1889 = scalar_lea.vmem %s0, 320
    %s1891 = sor.u32 255, 127
    %s1892 = sand.u32 %s1891, 85
    %s1893 = sshrl.u32 %s1892, 1
    %s1894 = sor.u32 %s1892, %s1893
    %s1895 = sand.u32 51, %s1894
    %s1896 = sshrl.u32 %s1895, 2
    %s1897 = sor.u32 %s1895, %s1896
    %s1898 = sand.u32 15, %s1897
    %v1899 = vld [vmem:[%s1889] sm:%s1898]
    %v1900 = vunpack.c.l.bf16 %v1899
    %v1901 = vunpack.c.h.bf16 %v1899
    %v1902 = vlaneseq
    %v1903 = vand.u32 %v1902, 127
    %vm1905 = vcmp.lt.s32.totalorder %v1903, 32
    %v1906 = vsel %vm1905, %v1900, %v15
    %s1907 = scalar_lea.vmem [#allocation37], 320
    %v1908 = vpack.c.bf16 0.0, %v1906
    %s1910 = ssub.s32 16, 1
    %1911 = vst [vmem:[%s1907] sm:%s1910] %v1908
    %s1912 = scalar_lea.vmem %s0, 324
    %s1914 = sor.u32 255, 127
    %s1915 = sand.u32 %s1914, 85
    %s1916 = sshrl.u32 %s1915, 1
    %s1917 = sor.u32 %s1915, %s1916
    %s1918 = sand.u32 51, %s1917
    %s1919 = sshrl.u32 %s1918, 2
    %s1920 = sor.u32 %s1918, %s1919
    %s1921 = sand.u32 15, %s1920
    %v1922 = vld [vmem:[%s1912] sm:%s1921]
    %v1923 = vunpack.c.l.bf16 %v1922
    %v1924 = vunpack.c.h.bf16 %v1922
    %v1925 = vlaneseq
    %v1926 = vand.u32 %v1925, 127
    %vm1928 = vcmp.lt.s32.totalorder %v1926, 32
    %v1929 = vsel %vm1928, %v1923, %v15
    %s1930 = scalar_lea.vmem [#allocation37], 324
    %v1931 = vpack.c.bf16 0.0, %v1929
    %s1933 = ssub.s32 16, 1
    %1934 = vst [vmem:[%s1930] sm:%s1933] %v1931
    %s1935 = scalar_lea.vmem %s0, 328
    %s1937 = sor.u32 255, 127
    %s1938 = sand.u32 %s1937, 85
    %s1939 = sshrl.u32 %s1938, 1
    %s1940 = sor.u32 %s1938, %s1939
    %s1941 = sand.u32 51, %s1940
    %s1942 = sshrl.u32 %s1941, 2
    %s1943 = sor.u32 %s1941, %s1942
    %s1944 = sand.u32 15, %s1943
    %v1945 = vld [vmem:[%s1935] sm:%s1944]
    %v1946 = vunpack.c.l.bf16 %v1945
    %v1947 = vunpack.c.h.bf16 %v1945
    %v1948 = vlaneseq
    %v1949 = vand.u32 %v1948, 127
    %vm1951 = vcmp.lt.s32.totalorder %v1949, 32
    %v1952 = vsel %vm1951, %v1946, %v15
    %s1953 = scalar_lea.vmem [#allocation37], 328
    %v1954 = vpack.c.bf16 0.0, %v1952
    %s1956 = ssub.s32 16, 1
    %1957 = vst [vmem:[%s1953] sm:%s1956] %v1954
    %s1958 = scalar_lea.vmem %s0, 332
    %s1960 = sor.u32 255, 127
    %s1961 = sand.u32 %s1960, 85
    %s1962 = sshrl.u32 %s1961, 1
    %s1963 = sor.u32 %s1961, %s1962
    %s1964 = sand.u32 51, %s1963
    %s1965 = sshrl.u32 %s1964, 2
    %s1966 = sor.u32 %s1964, %s1965
    %s1967 = sand.u32 15, %s1966
    %v1968 = vld [vmem:[%s1958] sm:%s1967]
    %v1969 = vunpack.c.l.bf16 %v1968
    %v1970 = vunpack.c.h.bf16 %v1968
    %v1971 = vlaneseq
    %v1972 = vand.u32 %v1971, 127
    %vm1974 = vcmp.lt.s32.totalorder %v1972, 32
    %v1975 = vsel %vm1974, %v1969, %v15
    %s1976 = scalar_lea.vmem [#allocation37], 332
    %v1977 = vpack.c.bf16 0.0, %v1975
    %s1979 = ssub.s32 16, 1
    %1980 = vst [vmem:[%s1976] sm:%s1979] %v1977
    %s1981 = scalar_lea.vmem %s0, 336
    %s1983 = sor.u32 255, 127
    %s1984 = sand.u32 %s1983, 85
    %s1985 = sshrl.u32 %s1984, 1
    %s1986 = sor.u32 %s1984, %s1985
    %s1987 = sand.u32 51, %s1986
    %s1988 = sshrl.u32 %s1987, 2
    %s1989 = sor.u32 %s1987, %s1988
    %s1990 = sand.u32 15, %s1989
    %v1991 = vld [vmem:[%s1981] sm:%s1990]
    %v1992 = vunpack.c.l.bf16 %v1991
    %v1993 = vunpack.c.h.bf16 %v1991
    %v1994 = vlaneseq
    %v1995 = vand.u32 %v1994, 127
    %vm1997 = vcmp.lt.s32.totalorder %v1995, 32
    %v1998 = vsel %vm1997, %v1992, %v15
    %s1999 = scalar_lea.vmem [#allocation37], 336
    %v2000 = vpack.c.bf16 0.0, %v1998
    %s2002 = ssub.s32 16, 1
    %2003 = vst [vmem:[%s1999] sm:%s2002] %v2000
    %s2004 = scalar_lea.vmem %s0, 340
    %s2006 = sor.u32 255, 127
    %s2007 = sand.u32 %s2006, 85
    %s2008 = sshrl.u32 %s2007, 1
    %s2009 = sor.u32 %s2007, %s2008
    %s2010 = sand.u32 51, %s2009
    %s2011 = sshrl.u32 %s2010, 2
    %s2012 = sor.u32 %s2010, %s2011
    %s2013 = sand.u32 15, %s2012
    %v2014 = vld [vmem:[%s2004] sm:%s2013]
    %v2015 = vunpack.c.l.bf16 %v2014
    %v2016 = vunpack.c.h.bf16 %v2014
    %v2017 = vlaneseq
    %v2018 = vand.u32 %v2017, 127
    %vm2020 = vcmp.lt.s32.totalorder %v2018, 32
    %v2021 = vsel %vm2020, %v2015, %v15
    %s2022 = scalar_lea.vmem [#allocation37], 340
    %v2023 = vpack.c.bf16 0.0, %v2021
    %s2025 = ssub.s32 16, 1
    %2026 = vst [vmem:[%s2022] sm:%s2025] %v2023
    %s2027 = scalar_lea.vmem %s0, 344
    %s2029 = sor.u32 255, 127
    %s2030 = sand.u32 %s2029, 85
    %s2031 = sshrl.u32 %s2030, 1
    %s2032 = sor.u32 %s2030, %s2031
    %s2033 = sand.u32 51, %s2032
    %s2034 = sshrl.u32 %s2033, 2
    %s2035 = sor.u32 %s2033, %s2034
    %s2036 = sand.u32 15, %s2035
    %v2037 = vld [vmem:[%s2027] sm:%s2036]
    %v2038 = vunpack.c.l.bf16 %v2037
    %v2039 = vunpack.c.h.bf16 %v2037
    %v2040 = vlaneseq
    %v2041 = vand.u32 %v2040, 127
    %vm2043 = vcmp.lt.s32.totalorder %v2041, 32
    %v2044 = vsel %vm2043, %v2038, %v15
    %s2045 = scalar_lea.vmem [#allocation37], 344
    %v2046 = vpack.c.bf16 0.0, %v2044
    %s2048 = ssub.s32 16, 1
    %2049 = vst [vmem:[%s2045] sm:%s2048] %v2046
    %s2050 = scalar_lea.vmem %s0, 348
    %s2052 = sor.u32 255, 127
    %s2053 = sand.u32 %s2052, 85
    %s2054 = sshrl.u32 %s2053, 1
    %s2055 = sor.u32 %s2053, %s2054
    %s2056 = sand.u32 51, %s2055
    %s2057 = sshrl.u32 %s2056, 2
    %s2058 = sor.u32 %s2056, %s2057
    %s2059 = sand.u32 15, %s2058
    %v2060 = vld [vmem:[%s2050] sm:%s2059]
    %v2061 = vunpack.c.l.bf16 %v2060
    %v2062 = vunpack.c.h.bf16 %v2060
    %v2063 = vlaneseq
    %v2064 = vand.u32 %v2063, 127
    %vm2066 = vcmp.lt.s32.totalorder %v2064, 32
    %v2067 = vsel %vm2066, %v2061, %v15
    %s2068 = scalar_lea.vmem [#allocation37], 348
    %v2069 = vpack.c.bf16 0.0, %v2067
    %s2071 = ssub.s32 16, 1
    %2072 = vst [vmem:[%s2068] sm:%s2071] %v2069
    %s2073 = scalar_lea.vmem %s0, 352
    %s2075 = sor.u32 255, 127
    %s2076 = sand.u32 %s2075, 85
    %s2077 = sshrl.u32 %s2076, 1
    %s2078 = sor.u32 %s2076, %s2077
    %s2079 = sand.u32 51, %s2078
    %s2080 = sshrl.u32 %s2079, 2
    %s2081 = sor.u32 %s2079, %s2080
    %s2082 = sand.u32 15, %s2081
    %v2083 = vld [vmem:[%s2073] sm:%s2082]
    %v2084 = vunpack.c.l.bf16 %v2083
    %v2085 = vunpack.c.h.bf16 %v2083
    %v2086 = vlaneseq
    %v2087 = vand.u32 %v2086, 127
    %vm2089 = vcmp.lt.s32.totalorder %v2087, 32
    %v2090 = vsel %vm2089, %v2084, %v15
    %s2091 = scalar_lea.vmem [#allocation37], 352
    %v2092 = vpack.c.bf16 0.0, %v2090
    %s2094 = ssub.s32 16, 1
    %2095 = vst [vmem:[%s2091] sm:%s2094] %v2092
    %s2096 = scalar_lea.vmem %s0, 356
    %s2098 = sor.u32 255, 127
    %s2099 = sand.u32 %s2098, 85
    %s2100 = sshrl.u32 %s2099, 1
    %s2101 = sor.u32 %s2099, %s2100
    %s2102 = sand.u32 51, %s2101
    %s2103 = sshrl.u32 %s2102, 2
    %s2104 = sor.u32 %s2102, %s2103
    %s2105 = sand.u32 15, %s2104
    %v2106 = vld [vmem:[%s2096] sm:%s2105]
    %v2107 = vunpack.c.l.bf16 %v2106
    %v2108 = vunpack.c.h.bf16 %v2106
    %v2109 = vlaneseq
    %v2110 = vand.u32 %v2109, 127
    %vm2112 = vcmp.lt.s32.totalorder %v2110, 32
    %v2113 = vsel %vm2112, %v2107, %v15
    %s2114 = scalar_lea.vmem [#allocation37], 356
    %v2115 = vpack.c.bf16 0.0, %v2113
    %s2117 = ssub.s32 16, 1
    %2118 = vst [vmem:[%s2114] sm:%s2117] %v2115
    %s2119 = scalar_lea.vmem %s0, 360
    %s2121 = sor.u32 255, 127
    %s2122 = sand.u32 %s2121, 85
    %s2123 = sshrl.u32 %s2122, 1
    %s2124 = sor.u32 %s2122, %s2123
    %s2125 = sand.u32 51, %s2124
    %s2126 = sshrl.u32 %s2125, 2
    %s2127 = sor.u32 %s2125, %s2126
    %s2128 = sand.u32 15, %s2127
    %v2129 = vld [vmem:[%s2119] sm:%s2128]
    %v2130 = vunpack.c.l.bf16 %v2129
    %v2131 = vunpack.c.h.bf16 %v2129
    %v2132 = vlaneseq
    %v2133 = vand.u32 %v2132, 127
    %vm2135 = vcmp.lt.s32.totalorder %v2133, 32
    %v2136 = vsel %vm2135, %v2130, %v15
    %s2137 = scalar_lea.vmem [#allocation37], 360
    %v2138 = vpack.c.bf16 0.0, %v2136
    %s2140 = ssub.s32 16, 1
    %2141 = vst [vmem:[%s2137] sm:%s2140] %v2138
    %s2142 = scalar_lea.vmem %s0, 364
    %s2144 = sor.u32 255, 127
    %s2145 = sand.u32 %s2144, 85
    %s2146 = sshrl.u32 %s2145, 1
    %s2147 = sor.u32 %s2145, %s2146
    %s2148 = sand.u32 51, %s2147
    %s2149 = sshrl.u32 %s2148, 2
    %s2150 = sor.u32 %s2148, %s2149
    %s2151 = sand.u32 15, %s2150
    %v2152 = vld [vmem:[%s2142] sm:%s2151]
    %v2153 = vunpack.c.l.bf16 %v2152
    %v2154 = vunpack.c.h.bf16 %v2152
    %v2155 = vlaneseq
    %v2156 = vand.u32 %v2155, 127
    %vm2158 = vcmp.lt.s32.totalorder %v2156, 32
    %v2159 = vsel %vm2158, %v2153, %v15
    %s2160 = scalar_lea.vmem [#allocation37], 364
    %v2161 = vpack.c.bf16 0.0, %v2159
    %s2163 = ssub.s32 16, 1
    %2164 = vst [vmem:[%s2160] sm:%s2163] %v2161
    %s2165 = scalar_lea.vmem %s0, 368
    %s2167 = sor.u32 255, 127
    %s2168 = sand.u32 %s2167, 85
    %s2169 = sshrl.u32 %s2168, 1
    %s2170 = sor.u32 %s2168, %s2169
    %s2171 = sand.u32 51, %s2170
    %s2172 = sshrl.u32 %s2171, 2
    %s2173 = sor.u32 %s2171, %s2172
    %s2174 = sand.u32 15, %s2173
    %v2175 = vld [vmem:[%s2165] sm:%s2174]
    %v2176 = vunpack.c.l.bf16 %v2175
    %v2177 = vunpack.c.h.bf16 %v2175
    %v2178 = vlaneseq
    %v2179 = vand.u32 %v2178, 127
    %vm2181 = vcmp.lt.s32.totalorder %v2179, 32
    %v2182 = vsel %vm2181, %v2176, %v15
    %s2183 = scalar_lea.vmem [#allocation37], 368
    %v2184 = vpack.c.bf16 0.0, %v2182
    %s2186 = ssub.s32 16, 1
    %2187 = vst [vmem:[%s2183] sm:%s2186] %v2184
    %s2188 = scalar_lea.vmem %s0, 372
    %s2190 = sor.u32 255, 127
    %s2191 = sand.u32 %s2190, 85
    %s2192 = sshrl.u32 %s2191, 1
    %s2193 = sor.u32 %s2191, %s2192
    %s2194 = sand.u32 51, %s2193
    %s2195 = sshrl.u32 %s2194, 2
    %s2196 = sor.u32 %s2194, %s2195
    %s2197 = sand.u32 15, %s2196
    %v2198 = vld [vmem:[%s2188] sm:%s2197]
    %v2199 = vunpack.c.l.bf16 %v2198
    %v2200 = vunpack.c.h.bf16 %v2198
    %v2201 = vlaneseq
    %v2202 = vand.u32 %v2201, 127
    %vm2204 = vcmp.lt.s32.totalorder %v2202, 32
    %v2205 = vsel %vm2204, %v2199, %v15
    %s2206 = scalar_lea.vmem [#allocation37], 372
    %v2207 = vpack.c.bf16 0.0, %v2205
    %s2209 = ssub.s32 16, 1
    %2210 = vst [vmem:[%s2206] sm:%s2209] %v2207
    %s2211 = scalar_lea.vmem %s0, 376
    %s2213 = sor.u32 255, 127
    %s2214 = sand.u32 %s2213, 85
    %s2215 = sshrl.u32 %s2214, 1
    %s2216 = sor.u32 %s2214, %s2215
    %s2217 = sand.u32 51, %s2216
    %s2218 = sshrl.u32 %s2217, 2
    %s2219 = sor.u32 %s2217, %s2218
    %s2220 = sand.u32 15, %s2219
    %v2221 = vld [vmem:[%s2211] sm:%s2220]
    %v2222 = vunpack.c.l.bf16 %v2221
    %v2223 = vunpack.c.h.bf16 %v2221
    %v2224 = vlaneseq
    %v2225 = vand.u32 %v2224, 127
    %vm2227 = vcmp.lt.s32.totalorder %v2225, 32
    %v2228 = vsel %vm2227, %v2222, %v15
    %s2229 = scalar_lea.vmem [#allocation37], 376
    %v2230 = vpack.c.bf16 0.0, %v2228
    %s2232 = ssub.s32 16, 1
    %2233 = vst [vmem:[%s2229] sm:%s2232] %v2230
    %s2234 = scalar_lea.vmem %s0, 380
    %s2236 = sor.u32 255, 127
    %s2237 = sand.u32 %s2236, 85
    %s2238 = sshrl.u32 %s2237, 1
    %s2239 = sor.u32 %s2237, %s2238
    %s2240 = sand.u32 51, %s2239
    %s2241 = sshrl.u32 %s2240, 2
    %s2242 = sor.u32 %s2240, %s2241
    %s2243 = sand.u32 15, %s2242
    %v2244 = vld [vmem:[%s2234] sm:%s2243]
    %v2245 = vunpack.c.l.bf16 %v2244
    %v2246 = vunpack.c.h.bf16 %v2244
    %v2247 = vlaneseq
    %v2248 = vand.u32 %v2247, 127
    %vm2250 = vcmp.lt.s32.totalorder %v2248, 32
    %v2251 = vsel %vm2250, %v2245, %v15
    %s2252 = scalar_lea.vmem [#allocation37], 380
    %v2253 = vpack.c.bf16 0.0, %v2251
    %s2255 = ssub.s32 16, 1
    %2256 = vst [vmem:[%s2252] sm:%s2255] %v2253
    %s2257 = scalar_lea.vmem %s0, 384
    %s2259 = sor.u32 255, 127
    %s2260 = sand.u32 %s2259, 85
    %s2261 = sshrl.u32 %s2260, 1
    %s2262 = sor.u32 %s2260, %s2261
    %s2263 = sand.u32 51, %s2262
    %s2264 = sshrl.u32 %s2263, 2
    %s2265 = sor.u32 %s2263, %s2264
    %s2266 = sand.u32 15, %s2265
    %v2267 = vld [vmem:[%s2257] sm:%s2266]
    %v2268 = vunpack.c.l.bf16 %v2267
    %v2269 = vunpack.c.h.bf16 %v2267
    %v2270 = vlaneseq
    %v2271 = vand.u32 %v2270, 127
    %vm2273 = vcmp.lt.s32.totalorder %v2271, 32
    %v2274 = vsel %vm2273, %v2268, %v15
    %s2275 = scalar_lea.vmem [#allocation37], 384
    %v2276 = vpack.c.bf16 0.0, %v2274
    %s2278 = ssub.s32 16, 1
    %2279 = vst [vmem:[%s2275] sm:%s2278] %v2276
    %s2280 = scalar_lea.vmem %s0, 388
    %s2282 = sor.u32 255, 127
    %s2283 = sand.u32 %s2282, 85
    %s2284 = sshrl.u32 %s2283, 1
    %s2285 = sor.u32 %s2283, %s2284
    %s2286 = sand.u32 51, %s2285
    %s2287 = sshrl.u32 %s2286, 2
    %s2288 = sor.u32 %s2286, %s2287
    %s2289 = sand.u32 15, %s2288
    %v2290 = vld [vmem:[%s2280] sm:%s2289]
    %v2291 = vunpack.c.l.bf16 %v2290
    %v2292 = vunpack.c.h.bf16 %v2290
    %v2293 = vlaneseq
    %v2294 = vand.u32 %v2293, 127
    %vm2296 = vcmp.lt.s32.totalorder %v2294, 32
    %v2297 = vsel %vm2296, %v2291, %v15
    %s2298 = scalar_lea.vmem [#allocation37], 388
    %v2299 = vpack.c.bf16 0.0, %v2297
    %s2301 = ssub.s32 16, 1
    %2302 = vst [vmem:[%s2298] sm:%s2301] %v2299
    %s2303 = scalar_lea.vmem %s0, 392
    %s2305 = sor.u32 255, 127
    %s2306 = sand.u32 %s2305, 85
    %s2307 = sshrl.u32 %s2306, 1
    %s2308 = sor.u32 %s2306, %s2307
    %s2309 = sand.u32 51, %s2308
    %s2310 = sshrl.u32 %s2309, 2
    %s2311 = sor.u32 %s2309, %s2310
    %s2312 = sand.u32 15, %s2311
    %v2313 = vld [vmem:[%s2303] sm:%s2312]
    %v2314 = vunpack.c.l.bf16 %v2313
    %v2315 = vunpack.c.h.bf16 %v2313
    %v2316 = vlaneseq
    %v2317 = vand.u32 %v2316, 127
    %vm2319 = vcmp.lt.s32.totalorder %v2317, 32
    %v2320 = vsel %vm2319, %v2314, %v15
    %s2321 = scalar_lea.vmem [#allocation37], 392
    %v2322 = vpack.c.bf16 0.0, %v2320
    %s2324 = ssub.s32 16, 1
    %2325 = vst [vmem:[%s2321] sm:%s2324] %v2322
    %s2326 = scalar_lea.vmem %s0, 396
    %s2328 = sor.u32 255, 127
    %s2329 = sand.u32 %s2328, 85
    %s2330 = sshrl.u32 %s2329, 1
    %s2331 = sor.u32 %s2329, %s2330
    %s2332 = sand.u32 51, %s2331
    %s2333 = sshrl.u32 %s2332, 2
    %s2334 = sor.u32 %s2332, %s2333
    %s2335 = sand.u32 15, %s2334
    %v2336 = vld [vmem:[%s2326] sm:%s2335]
    %v2337 = vunpack.c.l.bf16 %v2336
    %v2338 = vunpack.c.h.bf16 %v2336
    %v2339 = vlaneseq
    %v2340 = vand.u32 %v2339, 127
    %vm2342 = vcmp.lt.s32.totalorder %v2340, 32
    %v2343 = vsel %vm2342, %v2337, %v15
    %s2344 = scalar_lea.vmem [#allocation37], 396
    %v2345 = vpack.c.bf16 0.0, %v2343
    %s2347 = ssub.s32 16, 1
    %2348 = vst [vmem:[%s2344] sm:%s2347] %v2345
    %s2349 = scalar_lea.vmem %s0, 400
    %s2351 = sor.u32 255, 127
    %s2352 = sand.u32 %s2351, 85
    %s2353 = sshrl.u32 %s2352, 1
    %s2354 = sor.u32 %s2352, %s2353
    %s2355 = sand.u32 51, %s2354
    %s2356 = sshrl.u32 %s2355, 2
    %s2357 = sor.u32 %s2355, %s2356
    %s2358 = sand.u32 15, %s2357
    %v2359 = vld [vmem:[%s2349] sm:%s2358]
    %v2360 = vunpack.c.l.bf16 %v2359
    %v2361 = vunpack.c.h.bf16 %v2359
    %v2362 = vlaneseq
    %v2363 = vand.u32 %v2362, 127
    %vm2365 = vcmp.lt.s32.totalorder %v2363, 32
    %v2366 = vsel %vm2365, %v2360, %v15
    %s2367 = scalar_lea.vmem [#allocation37], 400
    %v2368 = vpack.c.bf16 0.0, %v2366
    %s2370 = ssub.s32 16, 1
    %2371 = vst [vmem:[%s2367] sm:%s2370] %v2368
    %s2372 = scalar_lea.vmem %s0, 404
    %s2374 = sor.u32 255, 127
    %s2375 = sand.u32 %s2374, 85
    %s2376 = sshrl.u32 %s2375, 1
    %s2377 = sor.u32 %s2375, %s2376
    %s2378 = sand.u32 51, %s2377
    %s2379 = sshrl.u32 %s2378, 2
    %s2380 = sor.u32 %s2378, %s2379
    %s2381 = sand.u32 15, %s2380
    %v2382 = vld [vmem:[%s2372] sm:%s2381]
    %v2383 = vunpack.c.l.bf16 %v2382
    %v2384 = vunpack.c.h.bf16 %v2382
    %v2385 = vlaneseq
    %v2386 = vand.u32 %v2385, 127
    %vm2388 = vcmp.lt.s32.totalorder %v2386, 32
    %v2389 = vsel %vm2388, %v2383, %v15
    %s2390 = scalar_lea.vmem [#allocation37], 404
    %v2391 = vpack.c.bf16 0.0, %v2389
    %s2393 = ssub.s32 16, 1
    %2394 = vst [vmem:[%s2390] sm:%s2393] %v2391
    %s2395 = scalar_lea.vmem %s0, 408
    %s2397 = sor.u32 255, 127
    %s2398 = sand.u32 %s2397, 85
    %s2399 = sshrl.u32 %s2398, 1
    %s2400 = sor.u32 %s2398, %s2399
    %s2401 = sand.u32 51, %s2400
    %s2402 = sshrl.u32 %s2401, 2
    %s2403 = sor.u32 %s2401, %s2402
    %s2404 = sand.u32 15, %s2403
    %v2405 = vld [vmem:[%s2395] sm:%s2404]
    %v2406 = vunpack.c.l.bf16 %v2405
    %v2407 = vunpack.c.h.bf16 %v2405
    %v2408 = vlaneseq
    %v2409 = vand.u32 %v2408, 127
    %vm2411 = vcmp.lt.s32.totalorder %v2409, 32
    %v2412 = vsel %vm2411, %v2406, %v15
    %s2413 = scalar_lea.vmem [#allocation37], 408
    %v2414 = vpack.c.bf16 0.0, %v2412
    %s2416 = ssub.s32 16, 1
    %2417 = vst [vmem:[%s2413] sm:%s2416] %v2414
    %s2418 = scalar_lea.vmem %s0, 412
    %s2420 = sor.u32 255, 127
    %s2421 = sand.u32 %s2420, 85
    %s2422 = sshrl.u32 %s2421, 1
    %s2423 = sor.u32 %s2421, %s2422
    %s2424 = sand.u32 51, %s2423
    %s2425 = sshrl.u32 %s2424, 2
    %s2426 = sor.u32 %s2424, %s2425
    %s2427 = sand.u32 15, %s2426
    %v2428 = vld [vmem:[%s2418] sm:%s2427]
    %v2429 = vunpack.c.l.bf16 %v2428
    %v2430 = vunpack.c.h.bf16 %v2428
    %v2431 = vlaneseq
    %v2432 = vand.u32 %v2431, 127
    %vm2434 = vcmp.lt.s32.totalorder %v2432, 32
    %v2435 = vsel %vm2434, %v2429, %v15
    %s2436 = scalar_lea.vmem [#allocation37], 412
    %v2437 = vpack.c.bf16 0.0, %v2435
    %s2439 = ssub.s32 16, 1
    %2440 = vst [vmem:[%s2436] sm:%s2439] %v2437
    %s2441 = scalar_lea.vmem %s0, 416
    %s2443 = sor.u32 255, 127
    %s2444 = sand.u32 %s2443, 85
    %s2445 = sshrl.u32 %s2444, 1
    %s2446 = sor.u32 %s2444, %s2445
    %s2447 = sand.u32 51, %s2446
    %s2448 = sshrl.u32 %s2447, 2
    %s2449 = sor.u32 %s2447, %s2448
    %s2450 = sand.u32 15, %s2449
    %v2451 = vld [vmem:[%s2441] sm:%s2450]
    %v2452 = vunpack.c.l.bf16 %v2451
    %v2453 = vunpack.c.h.bf16 %v2451
    %v2454 = vlaneseq
    %v2455 = vand.u32 %v2454, 127
    %vm2457 = vcmp.lt.s32.totalorder %v2455, 32
    %v2458 = vsel %vm2457, %v2452, %v15
    %s2459 = scalar_lea.vmem [#allocation37], 416
    %v2460 = vpack.c.bf16 0.0, %v2458
    %s2462 = ssub.s32 16, 1
    %2463 = vst [vmem:[%s2459] sm:%s2462] %v2460
    %s2464 = scalar_lea.vmem %s0, 420
    %s2466 = sor.u32 255, 127
    %s2467 = sand.u32 %s2466, 85
    %s2468 = sshrl.u32 %s2467, 1
    %s2469 = sor.u32 %s2467, %s2468
    %s2470 = sand.u32 51, %s2469
    %s2471 = sshrl.u32 %s2470, 2
    %s2472 = sor.u32 %s2470, %s2471
    %s2473 = sand.u32 15, %s2472
    %v2474 = vld [vmem:[%s2464] sm:%s2473]
    %v2475 = vunpack.c.l.bf16 %v2474
    %v2476 = vunpack.c.h.bf16 %v2474
    %v2477 = vlaneseq
    %v2478 = vand.u32 %v2477, 127
    %vm2480 = vcmp.lt.s32.totalorder %v2478, 32
    %v2481 = vsel %vm2480, %v2475, %v15
    %s2482 = scalar_lea.vmem [#allocation37], 420
    %v2483 = vpack.c.bf16 0.0, %v2481
    %s2485 = ssub.s32 16, 1
    %2486 = vst [vmem:[%s2482] sm:%s2485] %v2483
    %s2487 = scalar_lea.vmem %s0, 424
    %s2489 = sor.u32 255, 127
    %s2490 = sand.u32 %s2489, 85
    %s2491 = sshrl.u32 %s2490, 1
    %s2492 = sor.u32 %s2490, %s2491
    %s2493 = sand.u32 51, %s2492
    %s2494 = sshrl.u32 %s2493, 2
    %s2495 = sor.u32 %s2493, %s2494
    %s2496 = sand.u32 15, %s2495
    %v2497 = vld [vmem:[%s2487] sm:%s2496]
    %v2498 = vunpack.c.l.bf16 %v2497
    %v2499 = vunpack.c.h.bf16 %v2497
    %v2500 = vlaneseq
    %v2501 = vand.u32 %v2500, 127
    %vm2503 = vcmp.lt.s32.totalorder %v2501, 32
    %v2504 = vsel %vm2503, %v2498, %v15
    %s2505 = scalar_lea.vmem [#allocation37], 424
    %v2506 = vpack.c.bf16 0.0, %v2504
    %s2508 = ssub.s32 16, 1
    %2509 = vst [vmem:[%s2505] sm:%s2508] %v2506
    %s2510 = scalar_lea.vmem %s0, 428
    %s2512 = sor.u32 255, 127
    %s2513 = sand.u32 %s2512, 85
    %s2514 = sshrl.u32 %s2513, 1
    %s2515 = sor.u32 %s2513, %s2514
    %s2516 = sand.u32 51, %s2515
    %s2517 = sshrl.u32 %s2516, 2
    %s2518 = sor.u32 %s2516, %s2517
    %s2519 = sand.u32 15, %s2518
    %v2520 = vld [vmem:[%s2510] sm:%s2519]
    %v2521 = vunpack.c.l.bf16 %v2520
    %v2522 = vunpack.c.h.bf16 %v2520
    %v2523 = vlaneseq
    %v2524 = vand.u32 %v2523, 127
    %vm2526 = vcmp.lt.s32.totalorder %v2524, 32
    %v2527 = vsel %vm2526, %v2521, %v15
    %s2528 = scalar_lea.vmem [#allocation37], 428
    %v2529 = vpack.c.bf16 0.0, %v2527
    %s2531 = ssub.s32 16, 1
    %2532 = vst [vmem:[%s2528] sm:%s2531] %v2529
    %s2533 = scalar_lea.vmem %s0, 432
    %s2535 = sor.u32 255, 127
    %s2536 = sand.u32 %s2535, 85
    %s2537 = sshrl.u32 %s2536, 1
    %s2538 = sor.u32 %s2536, %s2537
    %s2539 = sand.u32 51, %s2538
    %s2540 = sshrl.u32 %s2539, 2
    %s2541 = sor.u32 %s2539, %s2540
    %s2542 = sand.u32 15, %s2541
    %v2543 = vld [vmem:[%s2533] sm:%s2542]
    %v2544 = vunpack.c.l.bf16 %v2543
    %v2545 = vunpack.c.h.bf16 %v2543
    %v2546 = vlaneseq
    %v2547 = vand.u32 %v2546, 127
    %vm2549 = vcmp.lt.s32.totalorder %v2547, 32
    %v2550 = vsel %vm2549, %v2544, %v15
    %s2551 = scalar_lea.vmem [#allocation37], 432
    %v2552 = vpack.c.bf16 0.0, %v2550
    %s2554 = ssub.s32 16, 1
    %2555 = vst [vmem:[%s2551] sm:%s2554] %v2552
    %s2556 = scalar_lea.vmem %s0, 436
    %s2558 = sor.u32 255, 127
    %s2559 = sand.u32 %s2558, 85
    %s2560 = sshrl.u32 %s2559, 1
    %s2561 = sor.u32 %s2559, %s2560
    %s2562 = sand.u32 51, %s2561
    %s2563 = sshrl.u32 %s2562, 2
    %s2564 = sor.u32 %s2562, %s2563
    %s2565 = sand.u32 15, %s2564
    %v2566 = vld [vmem:[%s2556] sm:%s2565]
    %v2567 = vunpack.c.l.bf16 %v2566
    %v2568 = vunpack.c.h.bf16 %v2566
    %v2569 = vlaneseq
    %v2570 = vand.u32 %v2569, 127
    %vm2572 = vcmp.lt.s32.totalorder %v2570, 32
    %v2573 = vsel %vm2572, %v2567, %v15
    %s2574 = scalar_lea.vmem [#allocation37], 436
    %v2575 = vpack.c.bf16 0.0, %v2573
    %s2577 = ssub.s32 16, 1
    %2578 = vst [vmem:[%s2574] sm:%s2577] %v2575
    %s2579 = scalar_lea.vmem %s0, 440
    %s2581 = sor.u32 255, 127
    %s2582 = sand.u32 %s2581, 85
    %s2583 = sshrl.u32 %s2582, 1
    %s2584 = sor.u32 %s2582, %s2583
    %s2585 = sand.u32 51, %s2584
    %s2586 = sshrl.u32 %s2585, 2
    %s2587 = sor.u32 %s2585, %s2586
    %s2588 = sand.u32 15, %s2587
    %v2589 = vld [vmem:[%s2579] sm:%s2588]
    %v2590 = vunpack.c.l.bf16 %v2589
    %v2591 = vunpack.c.h.bf16 %v2589
    %v2592 = vlaneseq
    %v2593 = vand.u32 %v2592, 127
    %vm2595 = vcmp.lt.s32.totalorder %v2593, 32
    %v2596 = vsel %vm2595, %v2590, %v15
    %s2597 = scalar_lea.vmem [#allocation37], 440
    %v2598 = vpack.c.bf16 0.0, %v2596
    %s2600 = ssub.s32 16, 1
    %2601 = vst [vmem:[%s2597] sm:%s2600] %v2598
    %s2602 = scalar_lea.vmem %s0, 444
    %s2604 = sor.u32 255, 127
    %s2605 = sand.u32 %s2604, 85
    %s2606 = sshrl.u32 %s2605, 1
    %s2607 = sor.u32 %s2605, %s2606
    %s2608 = sand.u32 51, %s2607
    %s2609 = sshrl.u32 %s2608, 2
    %s2610 = sor.u32 %s2608, %s2609
    %s2611 = sand.u32 15, %s2610
    %v2612 = vld [vmem:[%s2602] sm:%s2611]
    %v2613 = vunpack.c.l.bf16 %v2612
    %v2614 = vunpack.c.h.bf16 %v2612
    %v2615 = vlaneseq
    %v2616 = vand.u32 %v2615, 127
    %vm2618 = vcmp.lt.s32.totalorder %v2616, 32
    %v2619 = vsel %vm2618, %v2613, %v15
    %s2620 = scalar_lea.vmem [#allocation37], 444
    %v2621 = vpack.c.bf16 0.0, %v2619
    %s2623 = ssub.s32 16, 1
    %2624 = vst [vmem:[%s2620] sm:%s2623] %v2621
    %s2625 = scalar_lea.vmem %s0, 448
    %s2627 = sor.u32 255, 127
    %s2628 = sand.u32 %s2627, 85
    %s2629 = sshrl.u32 %s2628, 1
    %s2630 = sor.u32 %s2628, %s2629
    %s2631 = sand.u32 51, %s2630
    %s2632 = sshrl.u32 %s2631, 2
    %s2633 = sor.u32 %s2631, %s2632
    %s2634 = sand.u32 15, %s2633
    %v2635 = vld [vmem:[%s2625] sm:%s2634]
    %v2636 = vunpack.c.l.bf16 %v2635
    %v2637 = vunpack.c.h.bf16 %v2635
    %v2638 = vlaneseq
    %v2639 = vand.u32 %v2638, 127
    %vm2641 = vcmp.lt.s32.totalorder %v2639, 32
    %v2642 = vsel %vm2641, %v2636, %v15
    %s2643 = scalar_lea.vmem [#allocation37], 448
    %v2644 = vpack.c.bf16 0.0, %v2642
    %s2646 = ssub.s32 16, 1
    %2647 = vst [vmem:[%s2643] sm:%s2646] %v2644
    %s2648 = scalar_lea.vmem %s0, 452
    %s2650 = sor.u32 255, 127
    %s2651 = sand.u32 %s2650, 85
    %s2652 = sshrl.u32 %s2651, 1
    %s2653 = sor.u32 %s2651, %s2652
    %s2654 = sand.u32 51, %s2653
    %s2655 = sshrl.u32 %s2654, 2
    %s2656 = sor.u32 %s2654, %s2655
    %s2657 = sand.u32 15, %s2656
    %v2658 = vld [vmem:[%s2648] sm:%s2657]
    %v2659 = vunpack.c.l.bf16 %v2658
    %v2660 = vunpack.c.h.bf16 %v2658
    %v2661 = vlaneseq
    %v2662 = vand.u32 %v2661, 127
    %vm2664 = vcmp.lt.s32.totalorder %v2662, 32
    %v2665 = vsel %vm2664, %v2659, %v15
    %s2666 = scalar_lea.vmem [#allocation37], 452
    %v2667 = vpack.c.bf16 0.0, %v2665
    %s2669 = ssub.s32 16, 1
    %2670 = vst [vmem:[%s2666] sm:%s2669] %v2667
    %s2671 = scalar_lea.vmem %s0, 456
    %s2673 = sor.u32 255, 127
    %s2674 = sand.u32 %s2673, 85
    %s2675 = sshrl.u32 %s2674, 1
    %s2676 = sor.u32 %s2674, %s2675
    %s2677 = sand.u32 51, %s2676
    %s2678 = sshrl.u32 %s2677, 2
    %s2679 = sor.u32 %s2677, %s2678
    %s2680 = sand.u32 15, %s2679
    %v2681 = vld [vmem:[%s2671] sm:%s2680]
    %v2682 = vunpack.c.l.bf16 %v2681
    %v2683 = vunpack.c.h.bf16 %v2681
    %v2684 = vlaneseq
    %v2685 = vand.u32 %v2684, 127
    %vm2687 = vcmp.lt.s32.totalorder %v2685, 32
    %v2688 = vsel %vm2687, %v2682, %v15
    %s2689 = scalar_lea.vmem [#allocation37], 456
    %v2690 = vpack.c.bf16 0.0, %v2688
    %s2692 = ssub.s32 16, 1
    %2693 = vst [vmem:[%s2689] sm:%s2692] %v2690
    %s2694 = scalar_lea.vmem %s0, 460
    %s2696 = sor.u32 255, 127
    %s2697 = sand.u32 %s2696, 85
    %s2698 = sshrl.u32 %s2697, 1
    %s2699 = sor.u32 %s2697, %s2698
    %s2700 = sand.u32 51, %s2699
    %s2701 = sshrl.u32 %s2700, 2
    %s2702 = sor.u32 %s2700, %s2701
    %s2703 = sand.u32 15, %s2702
    %v2704 = vld [vmem:[%s2694] sm:%s2703]
    %v2705 = vunpack.c.l.bf16 %v2704
    %v2706 = vunpack.c.h.bf16 %v2704
    %v2707 = vlaneseq
    %v2708 = vand.u32 %v2707, 127
    %vm2710 = vcmp.lt.s32.totalorder %v2708, 32
    %v2711 = vsel %vm2710, %v2705, %v15
    %s2712 = scalar_lea.vmem [#allocation37], 460
    %v2713 = vpack.c.bf16 0.0, %v2711
    %s2715 = ssub.s32 16, 1
    %2716 = vst [vmem:[%s2712] sm:%s2715] %v2713
    %s2717 = scalar_lea.vmem %s0, 464
    %s2719 = sor.u32 255, 127
    %s2720 = sand.u32 %s2719, 85
    %s2721 = sshrl.u32 %s2720, 1
    %s2722 = sor.u32 %s2720, %s2721
    %s2723 = sand.u32 51, %s2722
    %s2724 = sshrl.u32 %s2723, 2
    %s2725 = sor.u32 %s2723, %s2724
    %s2726 = sand.u32 15, %s2725
    %v2727 = vld [vmem:[%s2717] sm:%s2726]
    %v2728 = vunpack.c.l.bf16 %v2727
    %v2729 = vunpack.c.h.bf16 %v2727
    %v2730 = vlaneseq
    %v2731 = vand.u32 %v2730, 127
    %vm2733 = vcmp.lt.s32.totalorder %v2731, 32
    %v2734 = vsel %vm2733, %v2728, %v15
    %s2735 = scalar_lea.vmem [#allocation37], 464
    %v2736 = vpack.c.bf16 0.0, %v2734
    %s2738 = ssub.s32 16, 1
    %2739 = vst [vmem:[%s2735] sm:%s2738] %v2736
    %s2740 = scalar_lea.vmem %s0, 468
    %s2742 = sor.u32 255, 127
    %s2743 = sand.u32 %s2742, 85
    %s2744 = sshrl.u32 %s2743, 1
    %s2745 = sor.u32 %s2743, %s2744
    %s2746 = sand.u32 51, %s2745
    %s2747 = sshrl.u32 %s2746, 2
    %s2748 = sor.u32 %s2746, %s2747
    %s2749 = sand.u32 15, %s2748
    %v2750 = vld [vmem:[%s2740] sm:%s2749]
    %v2751 = vunpack.c.l.bf16 %v2750
    %v2752 = vunpack.c.h.bf16 %v2750
    %v2753 = vlaneseq
    %v2754 = vand.u32 %v2753, 127
    %vm2756 = vcmp.lt.s32.totalorder %v2754, 32
    %v2757 = vsel %vm2756, %v2751, %v15
    %s2758 = scalar_lea.vmem [#allocation37], 468
    %v2759 = vpack.c.bf16 0.0, %v2757
    %s2761 = ssub.s32 16, 1
    %2762 = vst [vmem:[%s2758] sm:%s2761] %v2759
    %s2763 = scalar_lea.vmem %s0, 472
    %s2765 = sor.u32 255, 127
    %s2766 = sand.u32 %s2765, 85
    %s2767 = sshrl.u32 %s2766, 1
    %s2768 = sor.u32 %s2766, %s2767
    %s2769 = sand.u32 51, %s2768
    %s2770 = sshrl.u32 %s2769, 2
    %s2771 = sor.u32 %s2769, %s2770
    %s2772 = sand.u32 15, %s2771
    %v2773 = vld [vmem:[%s2763] sm:%s2772]
    %v2774 = vunpack.c.l.bf16 %v2773
    %v2775 = vunpack.c.h.bf16 %v2773
    %v2776 = vlaneseq
    %v2777 = vand.u32 %v2776, 127
    %vm2779 = vcmp.lt.s32.totalorder %v2777, 32
    %v2780 = vsel %vm2779, %v2774, %v15
    %s2781 = scalar_lea.vmem [#allocation37], 472
    %v2782 = vpack.c.bf16 0.0, %v2780
    %s2784 = ssub.s32 16, 1
    %2785 = vst [vmem:[%s2781] sm:%s2784] %v2782
    %s2786 = scalar_lea.vmem %s0, 476
    %s2788 = sor.u32 255, 127
    %s2789 = sand.u32 %s2788, 85
    %s2790 = sshrl.u32 %s2789, 1
    %s2791 = sor.u32 %s2789, %s2790
    %s2792 = sand.u32 51, %s2791
    %s2793 = sshrl.u32 %s2792, 2
    %s2794 = sor.u32 %s2792, %s2793
    %s2795 = sand.u32 15, %s2794
    %v2796 = vld [vmem:[%s2786] sm:%s2795]
    %v2797 = vunpack.c.l.bf16 %v2796
    %v2798 = vunpack.c.h.bf16 %v2796
    %v2799 = vlaneseq
    %v2800 = vand.u32 %v2799, 127
    %vm2802 = vcmp.lt.s32.totalorder %v2800, 32
    %v2803 = vsel %vm2802, %v2797, %v15
    %s2804 = scalar_lea.vmem [#allocation37], 476
    %v2805 = vpack.c.bf16 0.0, %v2803
    %s2807 = ssub.s32 16, 1
    %2808 = vst [vmem:[%s2804] sm:%s2807] %v2805
    %s2809 = scalar_lea.vmem %s0, 480
    %s2811 = sor.u32 255, 127
    %s2812 = sand.u32 %s2811, 85
    %s2813 = sshrl.u32 %s2812, 1
    %s2814 = sor.u32 %s2812, %s2813
    %s2815 = sand.u32 51, %s2814
    %s2816 = sshrl.u32 %s2815, 2
    %s2817 = sor.u32 %s2815, %s2816
    %s2818 = sand.u32 15, %s2817
    %v2819 = vld [vmem:[%s2809] sm:%s2818]
    %v2820 = vunpack.c.l.bf16 %v2819
    %v2821 = vunpack.c.h.bf16 %v2819
    %v2822 = vlaneseq
    %v2823 = vand.u32 %v2822, 127
    %vm2825 = vcmp.lt.s32.totalorder %v2823, 32
    %v2826 = vsel %vm2825, %v2820, %v15
    %s2827 = scalar_lea.vmem [#allocation37], 480
    %v2828 = vpack.c.bf16 0.0, %v2826
    %s2830 = ssub.s32 16, 1
    %2831 = vst [vmem:[%s2827] sm:%s2830] %v2828
    %s2832 = scalar_lea.vmem %s0, 484
    %s2834 = sor.u32 255, 127
    %s2835 = sand.u32 %s2834, 85
    %s2836 = sshrl.u32 %s2835, 1
    %s2837 = sor.u32 %s2835, %s2836
    %s2838 = sand.u32 51, %s2837
    %s2839 = sshrl.u32 %s2838, 2
    %s2840 = sor.u32 %s2838, %s2839
    %s2841 = sand.u32 15, %s2840
    %v2842 = vld [vmem:[%s2832] sm:%s2841]
    %v2843 = vunpack.c.l.bf16 %v2842
    %v2844 = vunpack.c.h.bf16 %v2842
    %v2845 = vlaneseq
    %v2846 = vand.u32 %v2845, 127
    %vm2848 = vcmp.lt.s32.totalorder %v2846, 32
    %v2849 = vsel %vm2848, %v2843, %v15
    %s2850 = scalar_lea.vmem [#allocation37], 484
    %v2851 = vpack.c.bf16 0.0, %v2849
    %s2853 = ssub.s32 16, 1
    %2854 = vst [vmem:[%s2850] sm:%s2853] %v2851
    %s2855 = scalar_lea.vmem %s0, 488
    %s2857 = sor.u32 255, 127
    %s2858 = sand.u32 %s2857, 85
    %s2859 = sshrl.u32 %s2858, 1
    %s2860 = sor.u32 %s2858, %s2859
    %s2861 = sand.u32 51, %s2860
    %s2862 = sshrl.u32 %s2861, 2
    %s2863 = sor.u32 %s2861, %s2862
    %s2864 = sand.u32 15, %s2863
    %v2865 = vld [vmem:[%s2855] sm:%s2864]
    %v2866 = vunpack.c.l.bf16 %v2865
    %v2867 = vunpack.c.h.bf16 %v2865
    %v2868 = vlaneseq
    %v2869 = vand.u32 %v2868, 127
    %vm2871 = vcmp.lt.s32.totalorder %v2869, 32
    %v2872 = vsel %vm2871, %v2866, %v15
    %s2873 = scalar_lea.vmem [#allocation37], 488
    %v2874 = vpack.c.bf16 0.0, %v2872
    %s2876 = ssub.s32 16, 1
    %2877 = vst [vmem:[%s2873] sm:%s2876] %v2874
    %s2878 = scalar_lea.vmem %s0, 492
    %s2880 = sor.u32 255, 127
    %s2881 = sand.u32 %s2880, 85
    %s2882 = sshrl.u32 %s2881, 1
    %s2883 = sor.u32 %s2881, %s2882
    %s2884 = sand.u32 51, %s2883
    %s2885 = sshrl.u32 %s2884, 2
    %s2886 = sor.u32 %s2884, %s2885
    %s2887 = sand.u32 15, %s2886
    %v2888 = vld [vmem:[%s2878] sm:%s2887]
    %v2889 = vunpack.c.l.bf16 %v2888
    %v2890 = vunpack.c.h.bf16 %v2888
    %v2891 = vlaneseq
    %v2892 = vand.u32 %v2891, 127
    %vm2894 = vcmp.lt.s32.totalorder %v2892, 32
    %v2895 = vsel %vm2894, %v2889, %v15
    %s2896 = scalar_lea.vmem [#allocation37], 492
    %v2897 = vpack.c.bf16 0.0, %v2895
    %s2899 = ssub.s32 16, 1
    %2900 = vst [vmem:[%s2896] sm:%s2899] %v2897
    %s2901 = scalar_lea.vmem %s0, 496
    %s2903 = sor.u32 255, 127
    %s2904 = sand.u32 %s2903, 85
    %s2905 = sshrl.u32 %s2904, 1
    %s2906 = sor.u32 %s2904, %s2905
    %s2907 = sand.u32 51, %s2906
    %s2908 = sshrl.u32 %s2907, 2
    %s2909 = sor.u32 %s2907, %s2908
    %s2910 = sand.u32 15, %s2909
    %v2911 = vld [vmem:[%s2901] sm:%s2910]
    %v2912 = vunpack.c.l.bf16 %v2911
    %v2913 = vunpack.c.h.bf16 %v2911
    %v2914 = vlaneseq
    %v2915 = vand.u32 %v2914, 127
    %vm2917 = vcmp.lt.s32.totalorder %v2915, 32
    %v2918 = vsel %vm2917, %v2912, %v15
    %s2919 = scalar_lea.vmem [#allocation37], 496
    %v2920 = vpack.c.bf16 0.0, %v2918
    %s2922 = ssub.s32 16, 1
    %2923 = vst [vmem:[%s2919] sm:%s2922] %v2920
    %s2924 = scalar_lea.vmem [#allocation37], 500
    %v2925 = vpack.c.bf16 0.0, %v15
    %s2927 = ssub.s32 16, 1
    %2928 = vst [vmem:[%s2924] sm:%s2927] %v2925
    %s2930 = sor.u32 255, 127
    %s2931 = sand.u32 %s2930, 85
    %s2932 = sshrl.u32 %s2931, 1
    %s2933 = sor.u32 %s2931, %s2932
    %s2934 = sand.u32 51, %s2933
    %s2935 = sshrl.u32 %s2934, 2
    %s2936 = sor.u32 %s2934, %s2935
    %s2937 = sand.u32 15, %s2936
    %v2938 = vld [vmem:[%s4] sm:%s2937]
    %v2939 = vunpack.c.l.bf16 %v2938
    %v2940 = vunpack.c.h.bf16 %v2938
    %v2941 = vlaneseq
    %v2942 = vand.u32 %v2941, 127
    %vm2944 = vcmp.lt.s32.totalorder %v2942, 32
    %v2945 = vsel %vm2944, %v2939, %v20
    %v2946 = vpack.c.bf16 0.0, %v2945
    %s2948 = ssub.s32 16, 1
    %2949 = vst [vmem:[#allocation38] sm:%s2948] %v2946
    %s2950 = scalar_lea.vmem %s4, 4
    %s2952 = sor.u32 255, 127
    %s2953 = sand.u32 %s2952, 85
    %s2954 = sshrl.u32 %s2953, 1
    %s2955 = sor.u32 %s2953, %s2954
    %s2956 = sand.u32 51, %s2955
    %s2957 = sshrl.u32 %s2956, 2
    %s2958 = sor.u32 %s2956, %s2957
    %s2959 = sand.u32 15, %s2958
    %v2960 = vld [vmem:[%s2950] sm:%s2959]
    %v2961 = vunpack.c.l.bf16 %v2960
    %v2962 = vunpack.c.h.bf16 %v2960
    %v2963 = vlaneseq
    %v2964 = vand.u32 %v2963, 127
    %vm2966 = vcmp.lt.s32.totalorder %v2964, 32
    %v2967 = vsel %vm2966, %v2961, %v20
    %s2968 = scalar_lea.vmem [#allocation38], 4
    %v2969 = vpack.c.bf16 0.0, %v2967
    %s2971 = ssub.s32 16, 1
    %2972 = vst [vmem:[%s2968] sm:%s2971] %v2969
    %s2973 = scalar_lea.vmem %s4, 8
    %s2975 = sor.u32 255, 127
    %s2976 = sand.u32 %s2975, 85
    %s2977 = sshrl.u32 %s2976, 1
    %s2978 = sor.u32 %s2976, %s2977
    %s2979 = sand.u32 51, %s2978
    %s2980 = sshrl.u32 %s2979, 2
    %s2981 = sor.u32 %s2979, %s2980
    %s2982 = sand.u32 15, %s2981
    %v2983 = vld [vmem:[%s2973] sm:%s2982]
    %v2984 = vunpack.c.l.bf16 %v2983
    %v2985 = vunpack.c.h.bf16 %v2983
    %v2986 = vlaneseq
    %v2987 = vand.u32 %v2986, 127
    %vm2989 = vcmp.lt.s32.totalorder %v2987, 32
    %v2990 = vsel %vm2989, %v2984, %v20
    %s2991 = scalar_lea.vmem [#allocation38], 8
    %v2992 = vpack.c.bf16 0.0, %v2990
    %s2994 = ssub.s32 16, 1
    %2995 = vst [vmem:[%s2991] sm:%s2994] %v2992
    %s2996 = scalar_lea.vmem %s4, 12
    %s2998 = sor.u32 255, 127
    %s2999 = sand.u32 %s2998, 85
    %s3000 = sshrl.u32 %s2999, 1
    %s3001 = sor.u32 %s2999, %s3000
    %s3002 = sand.u32 51, %s3001
    %s3003 = sshrl.u32 %s3002, 2
    %s3004 = sor.u32 %s3002, %s3003
    %s3005 = sand.u32 15, %s3004
    %v3006 = vld [vmem:[%s2996] sm:%s3005]
    %v3007 = vunpack.c.l.bf16 %v3006
    %v3008 = vunpack.c.h.bf16 %v3006
    %v3009 = vlaneseq
    %v3010 = vand.u32 %v3009, 127
    %vm3012 = vcmp.lt.s32.totalorder %v3010, 32
    %v3013 = vsel %vm3012, %v3007, %v20
    %s3014 = scalar_lea.vmem [#allocation38], 12
    %v3015 = vpack.c.bf16 0.0, %v3013
    %s3017 = ssub.s32 16, 1
    %3018 = vst [vmem:[%s3014] sm:%s3017] %v3015
    %s3019 = scalar_lea.vmem [#allocation38], 16
    %v3020 = vpack.c.bf16 0.0, %v20
    %s3022 = ssub.s32 16, 1
    %3023 = vst [vmem:[%s3019] sm:%s3022] %v3020
    %s3024 = scalar_lea.vmem [#allocation38], 20
    %v3025 = vpack.c.bf16 0.0, %v20
    %s3027 = ssub.s32 16, 1
    %3028 = vst [vmem:[%s3024] sm:%s3027] %v3025
    %s3029 = scalar_lea.vmem [#allocation38], 24
    %v3030 = vpack.c.bf16 0.0, %v20
    %s3032 = ssub.s32 16, 1
    %3033 = vst [vmem:[%s3029] sm:%s3032] %v3030
    %s3034 = scalar_lea.vmem [#allocation38], 28
    %v3035 = vpack.c.bf16 0.0, %v20
    %s3037 = ssub.s32 16, 1
    %3038 = vst [vmem:[%s3034] sm:%s3037] %v3035
    %s3039 = scalar_lea.vmem [#allocation38], 32
    %v3040 = vpack.c.bf16 0.0, %v20
    %s3042 = ssub.s32 16, 1
    %3043 = vst [vmem:[%s3039] sm:%s3042] %v3040
    %s3044 = scalar_lea.vmem [#allocation38], 36
    %v3045 = vpack.c.bf16 0.0, %v20
    %s3047 = ssub.s32 16, 1
    %3048 = vst [vmem:[%s3044] sm:%s3047] %v3045
    %s3049 = scalar_lea.vmem [#allocation38], 40
    %v3050 = vpack.c.bf16 0.0, %v20
    %s3052 = ssub.s32 16, 1
    %3053 = vst [vmem:[%s3049] sm:%s3052] %v3050
    %s3054 = scalar_lea.vmem [#allocation38], 44
    %v3055 = vpack.c.bf16 0.0, %v20
    %s3057 = ssub.s32 16, 1
    %3058 = vst [vmem:[%s3054] sm:%s3057] %v3055
    %s3059 = scalar_lea.vmem [#allocation38], 48
    %v3060 = vpack.c.bf16 0.0, %v20
    %s3062 = ssub.s32 16, 1
    %3063 = vst [vmem:[%s3059] sm:%s3062] %v3060
    %s3064 = scalar_lea.vmem [#allocation38], 52
    %v3065 = vpack.c.bf16 0.0, %v20
    %s3067 = ssub.s32 16, 1
    %3068 = vst [vmem:[%s3064] sm:%s3067] %v3065
    %s3069 = scalar_lea.vmem [#allocation38], 56
    %v3070 = vpack.c.bf16 0.0, %v20
    %s3072 = ssub.s32 16, 1
    %3073 = vst [vmem:[%s3069] sm:%s3072] %v3070
    %s3074 = scalar_lea.vmem [#allocation38], 60
    %v3075 = vpack.c.bf16 0.0, %v20
    %s3077 = ssub.s32 16, 1
    %3078 = vst [vmem:[%s3074] sm:%s3077] %v3075
    %v3079 = vld [vmem:[%s8] sm:$0x1]
    %v3080 = vlaneseq
    %v3081 = vshrl.u32 %v3080, 7
    %vm3083 = vcmp.lt.s32.totalorder %v3081, 1
    %v3084 = vsel %vm3083, %v3079, %v24
    %v3085 = vlaneseq
    %v3086 = vand.u32 %v3085, 127
    %vm3088 = vcmp.lt.s32.totalorder %v3086, 32
    %v3089 = vsel %vm3088, %v3084, %v24
    %s3091 = ssub.s32 2, 1
    %3092 = vst [vmem:[#allocation39] sm:%s3091] %v3089
    %s3094 = sor.u32 255, 127
    %s3095 = sand.u32 %s3094, 85
    %s3096 = sshrl.u32 %s3095, 1
    %s3097 = sor.u32 %s3095, %s3096
    %s3098 = sand.u32 51, %s3097
    %s3099 = sshrl.u32 %s3098, 2
    %s3100 = sor.u32 %s3098, %s3099
    %s3101 = sand.u32 15, %s3100
    %v3102 = vld [vmem:[%s3] sm:%s3101]
    %v3103 = vunpack.c.l.bf16 %v3102
    %v3104 = vunpack.c.h.bf16 %v3102
    %v3105 = vlaneseq
    %v3106 = vand.u32 %v3105, 127
    %vm3108 = vcmp.lt.s32.totalorder %v3106, 32
    %v3109 = vsel %vm3108, %v3103, %v26
    %v3110 = vpack.c.bf16 0.0, %v3109
    %s3112 = ssub.s32 16, 1
    %3113 = vst [vmem:[#allocation40] sm:%s3112] %v3110
    %s3114 = scalar_lea.vmem %s3, 4
    %s3116 = sor.u32 255, 127
    %s3117 = sand.u32 %s3116, 85
    %s3118 = sshrl.u32 %s3117, 1
    %s3119 = sor.u32 %s3117, %s3118
    %s3120 = sand.u32 51, %s3119
    %s3121 = sshrl.u32 %s3120, 2
    %s3122 = sor.u32 %s3120, %s3121
    %s3123 = sand.u32 15, %s3122
    %v3124 = vld [vmem:[%s3114] sm:%s3123]
    %v3125 = vunpack.c.l.bf16 %v3124
    %v3126 = vunpack.c.h.bf16 %v3124
    %v3127 = vlaneseq
    %v3128 = vand.u32 %v3127, 127
    %vm3130 = vcmp.lt.s32.totalorder %v3128, 32
    %v3131 = vsel %vm3130, %v3125, %v26
    %s3132 = scalar_lea.vmem [#allocation40], 4
    %v3133 = vpack.c.bf16 0.0, %v3131
    %s3135 = ssub.s32 16, 1
    %3136 = vst [vmem:[%s3132] sm:%s3135] %v3133
    %s3137 = scalar_lea.vmem %s3, 8
    %s3139 = sor.u32 255, 127
    %s3140 = sand.u32 %s3139, 85
    %s3141 = sshrl.u32 %s3140, 1
    %s3142 = sor.u32 %s3140, %s3141
    %s3143 = sand.u32 51, %s3142
    %s3144 = sshrl.u32 %s3143, 2
    %s3145 = sor.u32 %s3143, %s3144
    %s3146 = sand.u32 15, %s3145
    %v3147 = vld [vmem:[%s3137] sm:%s3146]
    %v3148 = vunpack.c.l.bf16 %v3147
    %v3149 = vunpack.c.h.bf16 %v3147
    %v3150 = vlaneseq
    %v3151 = vand.u32 %v3150, 127
    %vm3153 = vcmp.lt.s32.totalorder %v3151, 32
    %v3154 = vsel %vm3153, %v3148, %v26
    %s3155 = scalar_lea.vmem [#allocation40], 8
    %v3156 = vpack.c.bf16 0.0, %v3154
    %s3158 = ssub.s32 16, 1
    %3159 = vst [vmem:[%s3155] sm:%s3158] %v3156
    %s3160 = scalar_lea.vmem %s3, 12
    %s3162 = sor.u32 255, 127
    %s3163 = sand.u32 %s3162, 85
    %s3164 = sshrl.u32 %s3163, 1
    %s3165 = sor.u32 %s3163, %s3164
    %s3166 = sand.u32 51, %s3165
    %s3167 = sshrl.u32 %s3166, 2
    %s3168 = sor.u32 %s3166, %s3167
    %s3169 = sand.u32 15, %s3168
    %v3170 = vld [vmem:[%s3160] sm:%s3169]
    %v3171 = vunpack.c.l.bf16 %v3170
    %v3172 = vunpack.c.h.bf16 %v3170
    %v3173 = vlaneseq
    %v3174 = vand.u32 %v3173, 127
    %vm3176 = vcmp.lt.s32.totalorder %v3174, 32
    %v3177 = vsel %vm3176, %v3171, %v26
    %s3178 = scalar_lea.vmem [#allocation40], 12
    %v3179 = vpack.c.bf16 0.0, %v3177
    %s3181 = ssub.s32 16, 1
    %3182 = vst [vmem:[%s3178] sm:%s3181] %v3179
    %s3183 = scalar_lea.vmem [#allocation40], 16
    %v3184 = vpack.c.bf16 0.0, %v26
    %s3186 = ssub.s32 16, 1
    %3187 = vst [vmem:[%s3183] sm:%s3186] %v3184
    %s3188 = scalar_lea.vmem [#allocation40], 20
    %v3189 = vpack.c.bf16 0.0, %v26
    %s3191 = ssub.s32 16, 1
    %3192 = vst [vmem:[%s3188] sm:%s3191] %v3189
    %s3193 = scalar_lea.vmem [#allocation40], 24
    %v3194 = vpack.c.bf16 0.0, %v26
    %s3196 = ssub.s32 16, 1
    %3197 = vst [vmem:[%s3193] sm:%s3196] %v3194
    %s3198 = scalar_lea.vmem [#allocation40], 28
    %v3199 = vpack.c.bf16 0.0, %v26
    %s3201 = ssub.s32 16, 1
    %3202 = vst [vmem:[%s3198] sm:%s3201] %v3199
    %s3203 = scalar_lea.vmem [#allocation40], 32
    %v3204 = vpack.c.bf16 0.0, %v26
    %s3206 = ssub.s32 16, 1
    %3207 = vst [vmem:[%s3203] sm:%s3206] %v3204
    %s3208 = scalar_lea.vmem [#allocation40], 36
    %v3209 = vpack.c.bf16 0.0, %v26
    %s3211 = ssub.s32 16, 1
    %3212 = vst [vmem:[%s3208] sm:%s3211] %v3209
    %s3213 = scalar_lea.vmem [#allocation40], 40
    %v3214 = vpack.c.bf16 0.0, %v26
    %s3216 = ssub.s32 16, 1
    %3217 = vst [vmem:[%s3213] sm:%s3216] %v3214
    %s3218 = scalar_lea.vmem [#allocation40], 44
    %v3219 = vpack.c.bf16 0.0, %v26
    %s3221 = ssub.s32 16, 1
    %3222 = vst [vmem:[%s3218] sm:%s3221] %v3219
    %s3223 = scalar_lea.vmem [#allocation40], 48
    %v3224 = vpack.c.bf16 0.0, %v26
    %s3226 = ssub.s32 16, 1
    %3227 = vst [vmem:[%s3223] sm:%s3226] %v3224
    %s3228 = scalar_lea.vmem [#allocation40], 52
    %v3229 = vpack.c.bf16 0.0, %v26
    %s3231 = ssub.s32 16, 1
    %3232 = vst [vmem:[%s3228] sm:%s3231] %v3229
    %s3233 = scalar_lea.vmem [#allocation40], 56
    %v3234 = vpack.c.bf16 0.0, %v26
    %s3236 = ssub.s32 16, 1
    %3237 = vst [vmem:[%s3233] sm:%s3236] %v3234
    %s3238 = scalar_lea.vmem [#allocation40], 60
    %v3239 = vpack.c.bf16 0.0, %v26
    %s3241 = ssub.s32 16, 1
    %3242 = vst [vmem:[%s3238] sm:%s3241] %v3239
    %v3243 = vld [vmem:[%s7] sm:$0x1]
    %v3244 = vlaneseq
    %v3245 = vshrl.u32 %v3244, 7
    %vm3247 = vcmp.lt.s32.totalorder %v3245, 1
    %v3248 = vsel %vm3247, %v3243, %v30
    %v3249 = vlaneseq
    %v3250 = vand.u32 %v3249, 127
    %vm3252 = vcmp.lt.s32.totalorder %v3250, 32
    %v3253 = vsel %vm3252, %v3248, %v30
    %s3255 = ssub.s32 2, 1
    %3256 = vst [vmem:[#allocation41] sm:%s3255] %v3253
    %s3258 = sor.u32 255, 127
    %s3259 = sand.u32 %s3258, 85
    %s3260 = sshrl.u32 %s3259, 1
    %s3261 = sor.u32 %s3259, %s3260
    %s3262 = sand.u32 51, %s3261
    %s3263 = sshrl.u32 %s3262, 2
    %s3264 = sor.u32 %s3262, %s3263
    %s3265 = sand.u32 15, %s3264
    %v3266 = vld [vmem:[%s2] sm:%s3265]
    %v3267 = vunpack.c.l.bf16 %v3266
    %v3268 = vunpack.c.h.bf16 %v3266
    %v3269 = vlaneseq
    %v3270 = vand.u32 %v3269, 127
    %vm3272 = vcmp.lt.s32.totalorder %v3270, 8
    %v3273 = vsel %vm3272, %v3267, %v32
    %v3274 = vpack.c.bf16 0.0, %v3273
    %s3276 = ssub.s32 16, 1
    %3277 = vst [vmem:[#allocation42] sm:%s3276] %v3274
    %s3278 = scalar_lea.vmem %s2, 4
    %s3280 = sor.u32 255, 127
    %s3281 = sand.u32 %s3280, 85
    %s3282 = sshrl.u32 %s3281, 1
    %s3283 = sor.u32 %s3281, %s3282
    %s3284 = sand.u32 51, %s3283
    %s3285 = sshrl.u32 %s3284, 2
    %s3286 = sor.u32 %s3284, %s3285
    %s3287 = sand.u32 15, %s3286
    %v3288 = vld [vmem:[%s3278] sm:%s3287]
    %v3289 = vunpack.c.l.bf16 %v3288
    %v3290 = vunpack.c.h.bf16 %v3288
    %v3291 = vlaneseq
    %v3292 = vand.u32 %v3291, 127
    %vm3294 = vcmp.lt.s32.totalorder %v3292, 8
    %v3295 = vsel %vm3294, %v3289, %v32
    %s3296 = scalar_lea.vmem [#allocation42], 4
    %v3297 = vpack.c.bf16 0.0, %v3295
    %s3299 = ssub.s32 16, 1
    %3300 = vst [vmem:[%s3296] sm:%s3299] %v3297
    %s3301 = scalar_lea.vmem %s2, 8
    %s3303 = sor.u32 255, 127
    %s3304 = sand.u32 %s3303, 85
    %s3305 = sshrl.u32 %s3304, 1
    %s3306 = sor.u32 %s3304, %s3305
    %s3307 = sand.u32 51, %s3306
    %s3308 = sshrl.u32 %s3307, 2
    %s3309 = sor.u32 %s3307, %s3308
    %s3310 = sand.u32 15, %s3309
    %v3311 = vld [vmem:[%s3301] sm:%s3310]
    %v3312 = vunpack.c.l.bf16 %v3311
    %v3313 = vunpack.c.h.bf16 %v3311
    %v3314 = vlaneseq
    %v3315 = vand.u32 %v3314, 127
    %vm3317 = vcmp.lt.s32.totalorder %v3315, 8
    %v3318 = vsel %vm3317, %v3312, %v32
    %s3319 = scalar_lea.vmem [#allocation42], 8
    %v3320 = vpack.c.bf16 0.0, %v3318
    %s3322 = ssub.s32 16, 1
    %3323 = vst [vmem:[%s3319] sm:%s3322] %v3320
    %s3324 = scalar_lea.vmem %s2, 12
    %s3326 = sor.u32 255, 127
    %s3327 = sand.u32 %s3326, 85
    %s3328 = sshrl.u32 %s3327, 1
    %s3329 = sor.u32 %s3327, %s3328
    %s3330 = sand.u32 51, %s3329
    %s3331 = sshrl.u32 %s3330, 2
    %s3332 = sor.u32 %s3330, %s3331
    %s3333 = sand.u32 15, %s3332
    %v3334 = vld [vmem:[%s3324] sm:%s3333]
    %v3335 = vunpack.c.l.bf16 %v3334
    %v3336 = vunpack.c.h.bf16 %v3334
    %v3337 = vlaneseq
    %v3338 = vand.u32 %v3337, 127
    %vm3340 = vcmp.lt.s32.totalorder %v3338, 8
    %v3341 = vsel %vm3340, %v3335, %v32
    %s3342 = scalar_lea.vmem [#allocation42], 12
    %v3343 = vpack.c.bf16 0.0, %v3341
    %s3345 = ssub.s32 16, 1
    %3346 = vst [vmem:[%s3342] sm:%s3345] %v3343
    %s3347 = scalar_lea.vmem [#allocation42], 16
    %v3348 = vpack.c.bf16 0.0, %v32
    %s3350 = ssub.s32 16, 1
    %3351 = vst [vmem:[%s3347] sm:%s3350] %v3348
    %s3352 = scalar_lea.vmem [#allocation42], 20
    %v3353 = vpack.c.bf16 0.0, %v32
    %s3355 = ssub.s32 16, 1
    %3356 = vst [vmem:[%s3352] sm:%s3355] %v3353
    %s3357 = scalar_lea.vmem [#allocation42], 24
    %v3358 = vpack.c.bf16 0.0, %v32
    %s3360 = ssub.s32 16, 1
    %3361 = vst [vmem:[%s3357] sm:%s3360] %v3358
    %s3362 = scalar_lea.vmem [#allocation42], 28
    %v3363 = vpack.c.bf16 0.0, %v32
    %s3365 = ssub.s32 16, 1
    %3366 = vst [vmem:[%s3362] sm:%s3365] %v3363
    %s3367 = scalar_lea.vmem [#allocation42], 32
    %v3368 = vpack.c.bf16 0.0, %v32
    %s3370 = ssub.s32 16, 1
    %3371 = vst [vmem:[%s3367] sm:%s3370] %v3368
    %s3372 = scalar_lea.vmem [#allocation42], 36
    %v3373 = vpack.c.bf16 0.0, %v32
    %s3375 = ssub.s32 16, 1
    %3376 = vst [vmem:[%s3372] sm:%s3375] %v3373
    %s3377 = scalar_lea.vmem [#allocation42], 40
    %v3378 = vpack.c.bf16 0.0, %v32
    %s3380 = ssub.s32 16, 1
    %3381 = vst [vmem:[%s3377] sm:%s3380] %v3378
    %s3382 = scalar_lea.vmem [#allocation42], 44
    %v3383 = vpack.c.bf16 0.0, %v32
    %s3385 = ssub.s32 16, 1
    %3386 = vst [vmem:[%s3382] sm:%s3385] %v3383
    %s3387 = scalar_lea.vmem [#allocation42], 48
    %v3388 = vpack.c.bf16 0.0, %v32
    %s3390 = ssub.s32 16, 1
    %3391 = vst [vmem:[%s3387] sm:%s3390] %v3388
    %s3392 = scalar_lea.vmem [#allocation42], 52
    %v3393 = vpack.c.bf16 0.0, %v32
    %s3395 = ssub.s32 16, 1
    %3396 = vst [vmem:[%s3392] sm:%s3395] %v3393
    %s3397 = scalar_lea.vmem [#allocation42], 56
    %v3398 = vpack.c.bf16 0.0, %v32
    %s3400 = ssub.s32 16, 1
    %3401 = vst [vmem:[%s3397] sm:%s3400] %v3398
    %s3402 = scalar_lea.vmem [#allocation42], 60
    %v3403 = vpack.c.bf16 0.0, %v32
    %s3405 = ssub.s32 16, 1
    %3406 = vst [vmem:[%s3402] sm:%s3405] %v3403
    %v3407 = vld [vmem:[%s5] sm:$0x1]
    %v3408 = vlaneseq
    %v3409 = vshrl.u32 %v3408, 7
    %vm3411 = vcmp.lt.s32.totalorder %v3409, 1
    %v3412 = vsel %vm3411, %v3407, %v36
    %v3413 = vlaneseq
    %v3414 = vand.u32 %v3413, 127
    %vm3416 = vcmp.lt.s32.totalorder %v3414, 8
    %v3417 = vsel %vm3416, %v3412, %v36
    %s3419 = ssub.s32 2, 1
    %3420 = vst [vmem:[#allocation43] sm:%s3419] %v3417
    %v3422 = vld [vmem:[#allocation37] sm:$0xf]
    %v3423 = vld [vmem:[#allocation37 + $0x4] sm:$0xf]
    %v3424 = vld [vmem:[#allocation37 + $0x8] sm:$0xf]
    %v3425 = vld [vmem:[#allocation37 + $0xc] sm:$0xf]
    %v3426 = vld [vmem:[#allocation37 + $0x10] sm:$0xf]
    %v3427 = vld [vmem:[#allocation37 + $0x14] sm:$0xf]
    %v3428 = vld [vmem:[#allocation37 + $0x18] sm:$0xf]
    %v3429 = vld [vmem:[#allocation37 + $0x1c] sm:$0xf]
    %v3430 = vld [vmem:[#allocation37 + $0x20] sm:$0xf]
    %v3431 = vld [vmem:[#allocation37 + $0x24] sm:$0xf]
    %v3432 = vld [vmem:[#allocation37 + $0x28] sm:$0xf]
    %v3433 = vld [vmem:[#allocation37 + $0x2c] sm:$0xf]
    %v3434 = vld [vmem:[#allocation37 + $0x30] sm:$0xf]
    %v3435 = vld [vmem:[#allocation37 + $0x34] sm:$0xf]
    %v3436 = vld [vmem:[#allocation37 + $0x38] sm:$0xf]
    %v3437 = vld [vmem:[#allocation37 + $0x3c] sm:$0xf]
    %v3438 = vld [vmem:[#allocation37 + $0x40] sm:$0xf]
    %v3439 = vld [vmem:[#allocation37 + $0x44] sm:$0xf]
    %v3440 = vld [vmem:[#allocation37 + $0x48] sm:$0xf]
    %v3441 = vld [vmem:[#allocation37 + $0x4c] sm:$0xf]
    %v3442 = vld [vmem:[#allocation37 + $0x50] sm:$0xf]
    %v3443 = vld [vmem:[#allocation37 + $0x54] sm:$0xf]
    %v3444 = vld [vmem:[#allocation37 + $0x58] sm:$0xf]
    %v3445 = vld [vmem:[#allocation37 + $0x5c] sm:$0xf]
    %v3446 = vld [vmem:[#allocation37 + $0x60] sm:$0xf]
    %v3447 = vld [vmem:[#allocation37 + $0x64] sm:$0xf]
    %v3448 = vld [vmem:[#allocation37 + $0x68] sm:$0xf]
    %v3449 = vld [vmem:[#allocation37 + $0x6c] sm:$0xf]
    %v3450 = vld [vmem:[#allocation37 + $0x70] sm:$0xf]
    %v3451 = vld [vmem:[#allocation37 + $0x74] sm:$0xf]
    %v3452 = vld [vmem:[#allocation37 + $0x78] sm:$0xf]
    %v3453 = vld [vmem:[#allocation37 + $0x7c] sm:$0xf]
    %v3454 = vld [vmem:[#allocation37 + $0x80] sm:$0xf]
    %v3455 = vld [vmem:[#allocation37 + $0x84] sm:$0xf]
    %v3456 = vld [vmem:[#allocation37 + $0x88] sm:$0xf]
    %v3457 = vld [vmem:[#allocation37 + $0x8c] sm:$0xf]
    %v3458 = vld [vmem:[#allocation37 + $0x90] sm:$0xf]
    %v3459 = vld [vmem:[#allocation37 + $0x94] sm:$0xf]
    %v3460 = vld [vmem:[#allocation37 + $0x98] sm:$0xf]
    %v3461 = vld [vmem:[#allocation37 + $0x9c] sm:$0xf]
    %v3462 = vld [vmem:[#allocation37 + $0xa0] sm:$0xf]
    %v3463 = vld [vmem:[#allocation37 + $0xa4] sm:$0xf]
    %v3464 = vld [vmem:[#allocation37 + $0xa8] sm:$0xf]
    %v3465 = vld [vmem:[#allocation37 + $0xac] sm:$0xf]
    %v3466 = vld [vmem:[#allocation37 + $0xb0] sm:$0xf]
    %v3467 = vld [vmem:[#allocation37 + $0xb4] sm:$0xf]
    %v3468 = vld [vmem:[#allocation37 + $0xb8] sm:$0xf]
    %v3469 = vld [vmem:[#allocation37 + $0xbc] sm:$0xf]
    %v3470 = vld [vmem:[#allocation37 + $0xc0] sm:$0xf]
    %v3471 = vld [vmem:[#allocation37 + $0xc4] sm:$0xf]
    %v3472 = vld [vmem:[#allocation37 + $0xc8] sm:$0xf]
    %v3473 = vld [vmem:[#allocation37 + $0xcc] sm:$0xf]
    %v3474 = vld [vmem:[#allocation37 + $0xd0] sm:$0xf]
    %v3475 = vld [vmem:[#allocation37 + $0xd4] sm:$0xf]
    %v3476 = vld [vmem:[#allocation37 + $0xd8] sm:$0xf]
    %v3477 = vld [vmem:[#allocation37 + $0xdc] sm:$0xf]
    %v3478 = vld [vmem:[#allocation37 + $0xe0] sm:$0xf]
    %v3479 = vld [vmem:[#allocation37 + $0xe4] sm:$0xf]
    %v3480 = vld [vmem:[#allocation37 + $0xe8] sm:$0xf]
    %v3481 = vld [vmem:[#allocation37 + $0xec] sm:$0xf]
    %v3482 = vld [vmem:[#allocation37 + $0xf0] sm:$0xf]
    %v3483 = vld [vmem:[#allocation37 + $0xf4] sm:$0xf]
    %v3484 = vld [vmem:[#allocation37 + $0xf8] sm:$0xf]
    %v3485 = vld [vmem:[#allocation37 + $0xfc] sm:$0xf]
    %v3486 = vld [vmem:[#allocation37 + $0x100] sm:$0xf]
    %v3487 = vld [vmem:[#allocation37 + $0x104] sm:$0xf]
    %v3488 = vld [vmem:[#allocation37 + $0x108] sm:$0xf]
    %v3489 = vld [vmem:[#allocation37 + $0x10c] sm:$0xf]
    %v3490 = vld [vmem:[#allocation37 + $0x110] sm:$0xf]
    %v3491 = vld [vmem:[#allocation37 + $0x114] sm:$0xf]
    %v3492 = vld [vmem:[#allocation37 + $0x118] sm:$0xf]
    %v3493 = vld [vmem:[#allocation37 + $0x11c] sm:$0xf]
    %v3494 = vld [vmem:[#allocation37 + $0x120] sm:$0xf]
    %v3495 = vld [vmem:[#allocation37 + $0x124] sm:$0xf]
    %v3496 = vld [vmem:[#allocation37 + $0x128] sm:$0xf]
    %v3497 = vld [vmem:[#allocation37 + $0x12c] sm:$0xf]
    %v3498 = vld [vmem:[#allocation37 + $0x130] sm:$0xf]
    %v3499 = vld [vmem:[#allocation37 + $0x134] sm:$0xf]
    %v3500 = vld [vmem:[#allocation37 + $0x138] sm:$0xf]
    %v3501 = vld [vmem:[#allocation37 + $0x13c] sm:$0xf]
    %v3502 = vld [vmem:[#allocation37 + $0x140] sm:$0xf]
    %v3503 = vld [vmem:[#allocation37 + $0x144] sm:$0xf]
    %v3504 = vld [vmem:[#allocation37 + $0x148] sm:$0xf]
    %v3505 = vld [vmem:[#allocation37 + $0x14c] sm:$0xf]
    %v3506 = vld [vmem:[#allocation37 + $0x150] sm:$0xf]
    %v3507 = vld [vmem:[#allocation37 + $0x154] sm:$0xf]
    %v3508 = vld [vmem:[#allocation37 + $0x158] sm:$0xf]
    %v3509 = vld [vmem:[#allocation37 + $0x15c] sm:$0xf]
    %v3510 = vld [vmem:[#allocation37 + $0x160] sm:$0xf]
    %v3511 = vld [vmem:[#allocation37 + $0x164] sm:$0xf]
    %v3512 = vld [vmem:[#allocation37 + $0x168] sm:$0xf]
    %v3513 = vld [vmem:[#allocation37 + $0x16c] sm:$0xf]
    %v3514 = vld [vmem:[#allocation37 + $0x170] sm:$0xf]
    %v3515 = vld [vmem:[#allocation37 + $0x174] sm:$0xf]
    %v3516 = vld [vmem:[#allocation37 + $0x178] sm:$0xf]
    %v3517 = vld [vmem:[#allocation37 + $0x17c] sm:$0xf]
    %v3518 = vld [vmem:[#allocation37 + $0x180] sm:$0xf]
    %v3519 = vld [vmem:[#allocation37 + $0x184] sm:$0xf]
    %v3520 = vld [vmem:[#allocation37 + $0x188] sm:$0xf]
    %v3521 = vld [vmem:[#allocation37 + $0x18c] sm:$0xf]
    %v3522 = vld [vmem:[#allocation37 + $0x190] sm:$0xf]
    %v3523 = vld [vmem:[#allocation37 + $0x194] sm:$0xf]
    %v3524 = vld [vmem:[#allocation37 + $0x198] sm:$0xf]
    %v3525 = vld [vmem:[#allocation37 + $0x19c] sm:$0xf]
    %v3526 = vld [vmem:[#allocation37 + $0x1a0] sm:$0xf]
    %v3527 = vld [vmem:[#allocation37 + $0x1a4] sm:$0xf]
    %v3528 = vld [vmem:[#allocation37 + $0x1a8] sm:$0xf]
    %v3529 = vld [vmem:[#allocation37 + $0x1ac] sm:$0xf]
    %v3530 = vld [vmem:[#allocation37 + $0x1b0] sm:$0xf]
    %v3531 = vld [vmem:[#allocation37 + $0x1b4] sm:$0xf]
    %v3532 = vld [vmem:[#allocation37 + $0x1b8] sm:$0xf]
    %v3533 = vld [vmem:[#allocation37 + $0x1bc] sm:$0xf]
    %v3534 = vld [vmem:[#allocation37 + $0x1c0] sm:$0xf]
    %v3535 = vld [vmem:[#allocation37 + $0x1c4] sm:$0xf]
    %v3536 = vld [vmem:[#allocation37 + $0x1c8] sm:$0xf]
    %v3537 = vld [vmem:[#allocation37 + $0x1cc] sm:$0xf]
    %v3538 = vld [vmem:[#allocation37 + $0x1d0] sm:$0xf]
    %v3539 = vld [vmem:[#allocation37 + $0x1d4] sm:$0xf]
    %v3540 = vld [vmem:[#allocation37 + $0x1d8] sm:$0xf]
    %v3541 = vld [vmem:[#allocation37 + $0x1dc] sm:$0xf]
    %v3542 = vld [vmem:[#allocation37 + $0x1e0] sm:$0xf]
    %v3543 = vld [vmem:[#allocation37 + $0x1e4] sm:$0xf]
    %v3544 = vld [vmem:[#allocation37 + $0x1e8] sm:$0xf]
    %v3545 = vld [vmem:[#allocation37 + $0x1ec] sm:$0xf]
    %v3546 = vld [vmem:[#allocation37 + $0x1f0] sm:$0xf]
    %v3547 = vld [vmem:[#allocation37 + $0x1f4] sm:$0xf]
    %v3548 = vld [vmem:[#allocation38] sm:$0xf]
    %v3549 = vld [vmem:[#allocation38 + $0x4] sm:$0xf]
    %v3550 = vld [vmem:[#allocation38 + $0x8] sm:$0xf]
    %v3551 = vld [vmem:[#allocation38 + $0xc] sm:$0xf]
    %v3552 = vld [vmem:[#allocation38 + $0x10] sm:$0xf]
    %v3553 = vld [vmem:[#allocation38 + $0x14] sm:$0xf]
    %v3554 = vld [vmem:[#allocation38 + $0x18] sm:$0xf]
    %v3555 = vld [vmem:[#allocation38 + $0x1c] sm:$0xf]
    %v3556 = vld [vmem:[#allocation38 + $0x20] sm:$0xf]
    %v3557 = vld [vmem:[#allocation38 + $0x24] sm:$0xf]
    %v3558 = vld [vmem:[#allocation38 + $0x28] sm:$0xf]
    %v3559 = vld [vmem:[#allocation38 + $0x2c] sm:$0xf]
    %v3560 = vld [vmem:[#allocation38 + $0x30] sm:$0xf]
    %v3561 = vld [vmem:[#allocation38 + $0x34] sm:$0xf]
    %v3562 = vld [vmem:[#allocation38 + $0x38] sm:$0xf]
    %v3563 = vld [vmem:[#allocation38 + $0x3c] sm:$0xf]
    %v3564 = vld [vmem:[#allocation39] sm:$0x1]
    %v3566 = vlaneseq
    %v3567 = vshrl.u32 %v3566, 7
    %v3568 = vsub.s32 0, %v3567
    %v3569 = vrot.slane %v3564, %v3568
    %v3697 = vunpack.c.l.b16 %v3422
    %v3698 = vunpack.c.l.b16 %v3423
    %v3699 = vunpack.c.l.b16 %v3424
    %v3700 = vunpack.c.l.b16 %v3425
    %v3701 = vunpack.c.l.b16 %v3426
    %v3702 = vunpack.c.l.b16 %v3427
    %v3703 = vunpack.c.l.b16 %v3428
    %v3704 = vunpack.c.l.b16 %v3429
    %v3705 = vunpack.c.l.b16 %v3430
    %v3706 = vunpack.c.l.b16 %v3431
    %v3707 = vunpack.c.l.b16 %v3432
    %v3708 = vunpack.c.l.b16 %v3433
    %v3709 = vunpack.c.l.b16 %v3434
    %v3710 = vunpack.c.l.b16 %v3435
    %v3711 = vunpack.c.l.b16 %v3436
    %v3712 = vunpack.c.l.b16 %v3437
    %v3713 = vunpack.c.l.b16 %v3438
    %v3714 = vunpack.c.l.b16 %v3439
    %v3715 = vunpack.c.l.b16 %v3440
    %v3716 = vunpack.c.l.b16 %v3441
    %v3717 = vunpack.c.l.b16 %v3442
    %v3718 = vunpack.c.l.b16 %v3443
    %v3719 = vunpack.c.l.b16 %v3444
    %v3720 = vunpack.c.l.b16 %v3445
    %v3721 = vunpack.c.l.b16 %v3446
    %v3722 = vunpack.c.l.b16 %v3447
    %v3723 = vunpack.c.l.b16 %v3448
    %v3724 = vunpack.c.l.b16 %v3449
    %v3725 = vunpack.c.l.b16 %v3450
    %v3726 = vunpack.c.l.b16 %v3451
    %v3727 = vunpack.c.l.b16 %v3452
    %v3728 = vunpack.c.l.b16 %v3453
    %v3729 = vunpack.c.l.b16 %v3454
    %v3730 = vunpack.c.l.b16 %v3455
    %v3731 = vunpack.c.l.b16 %v3456
    %v3732 = vunpack.c.l.b16 %v3457
    %v3733 = vunpack.c.l.b16 %v3458
    %v3734 = vunpack.c.l.b16 %v3459
    %v3735 = vunpack.c.l.b16 %v3460
    %v3736 = vunpack.c.l.b16 %v3461
    %v3737 = vunpack.c.l.b16 %v3462
    %v3738 = vunpack.c.l.b16 %v3463
    %v3739 = vunpack.c.l.b16 %v3464
    %v3740 = vunpack.c.l.b16 %v3465
    %v3741 = vunpack.c.l.b16 %v3466
    %v3742 = vunpack.c.l.b16 %v3467
    %v3743 = vunpack.c.l.b16 %v3468
    %v3744 = vunpack.c.l.b16 %v3469
    %v3745 = vunpack.c.l.b16 %v3470
    %v3746 = vunpack.c.l.b16 %v3471
    %v3747 = vunpack.c.l.b16 %v3472
    %v3748 = vunpack.c.l.b16 %v3473
    %v3749 = vunpack.c.l.b16 %v3474
    %v3750 = vunpack.c.l.b16 %v3475
    %v3751 = vunpack.c.l.b16 %v3476
    %v3752 = vunpack.c.l.b16 %v3477
    %v3753 = vunpack.c.l.b16 %v3478
    %v3754 = vunpack.c.l.b16 %v3479
    %v3755 = vunpack.c.l.b16 %v3480
    %v3756 = vunpack.c.l.b16 %v3481
    %v3757 = vunpack.c.l.b16 %v3482
    %v3758 = vunpack.c.l.b16 %v3483
    %v3759 = vunpack.c.l.b16 %v3484
    %v3760 = vunpack.c.l.b16 %v3485
    %v3761 = vunpack.c.l.b16 %v3486
    %v3762 = vunpack.c.l.b16 %v3487
    %v3763 = vunpack.c.l.b16 %v3488
    %v3764 = vunpack.c.l.b16 %v3489
    %v3765 = vunpack.c.l.b16 %v3490
    %v3766 = vunpack.c.l.b16 %v3491
    %v3767 = vunpack.c.l.b16 %v3492
    %v3768 = vunpack.c.l.b16 %v3493
    %v3769 = vunpack.c.l.b16 %v3494
    %v3770 = vunpack.c.l.b16 %v3495
    %v3771 = vunpack.c.l.b16 %v3496
    %v3772 = vunpack.c.l.b16 %v3497
    %v3773 = vunpack.c.l.b16 %v3498
    %v3774 = vunpack.c.l.b16 %v3499
    %v3775 = vunpack.c.l.b16 %v3500
    %v3776 = vunpack.c.l.b16 %v3501
    %v3777 = vunpack.c.l.b16 %v3502
    %v3778 = vunpack.c.l.b16 %v3503
    %v3779 = vunpack.c.l.b16 %v3504
    %v3780 = vunpack.c.l.b16 %v3505
    %v3781 = vunpack.c.l.b16 %v3506
    %v3782 = vunpack.c.l.b16 %v3507
    %v3783 = vunpack.c.l.b16 %v3508
    %v3784 = vunpack.c.l.b16 %v3509
    %v3785 = vunpack.c.l.b16 %v3510
    %v3786 = vunpack.c.l.b16 %v3511
    %v3787 = vunpack.c.l.b16 %v3512
    %v3788 = vunpack.c.l.b16 %v3513
    %v3789 = vunpack.c.l.b16 %v3514
    %v3790 = vunpack.c.l.b16 %v3515
    %v3791 = vunpack.c.l.b16 %v3516
    %v3792 = vunpack.c.l.b16 %v3517
    %v3793 = vunpack.c.l.b16 %v3518
    %v3794 = vunpack.c.l.b16 %v3519
    %v3795 = vunpack.c.l.b16 %v3520
    %v3796 = vunpack.c.l.b16 %v3521
    %v3797 = vunpack.c.l.b16 %v3522
    %v3798 = vunpack.c.l.b16 %v3523
    %v3799 = vunpack.c.l.b16 %v3524
    %v3800 = vunpack.c.l.b16 %v3525
    %v3801 = vunpack.c.l.b16 %v3526
    %v3802 = vunpack.c.l.b16 %v3527
    %v3803 = vunpack.c.l.b16 %v3528
    %v3804 = vunpack.c.l.b16 %v3529
    %v3805 = vunpack.c.l.b16 %v3530
    %v3806 = vunpack.c.l.b16 %v3531
    %v3807 = vunpack.c.l.b16 %v3532
    %v3808 = vunpack.c.l.b16 %v3533
    %v3809 = vunpack.c.l.b16 %v3534
    %v3810 = vunpack.c.l.b16 %v3535
    %v3811 = vunpack.c.l.b16 %v3536
    %v3812 = vunpack.c.l.b16 %v3537
    %v3813 = vunpack.c.l.b16 %v3538
    %v3814 = vunpack.c.l.b16 %v3539
    %v3815 = vunpack.c.l.b16 %v3540
    %v3816 = vunpack.c.l.b16 %v3541
    %v3817 = vunpack.c.l.b16 %v3542
    %v3818 = vunpack.c.l.b16 %v3543
    %v3819 = vunpack.c.l.b16 %v3544
    %v3820 = vunpack.c.l.b16 %v3545
    %v3821 = vunpack.c.l.b16 %v3546
    %v3822 = vunpack.c.l.b16 %v3547
    %v3823 = vpack.c.b16 %v3698, %v3697
    %v3824 = vpack.c.b16 %v3700, %v3699
    %v3825 = vpack.c.b16 %v3702, %v3701
    %v3826 = vpack.c.b16 %v3704, %v3703
    %v3827 = vpack.c.b16 %v3706, %v3705
    %v3828 = vpack.c.b16 %v3708, %v3707
    %v3829 = vpack.c.b16 %v3710, %v3709
    %v3830 = vpack.c.b16 %v3712, %v3711
    %v3831 = vpack.c.b16 %v3714, %v3713
    %v3832 = vpack.c.b16 %v3716, %v3715
    %v3833 = vpack.c.b16 %v3718, %v3717
    %v3834 = vpack.c.b16 %v3720, %v3719
    %v3835 = vpack.c.b16 %v3722, %v3721
    %v3836 = vpack.c.b16 %v3724, %v3723
    %v3837 = vpack.c.b16 %v3726, %v3725
    %v3838 = vpack.c.b16 %v3728, %v3727
    %v3839 = vpack.c.b16 %v3730, %v3729
    %v3840 = vpack.c.b16 %v3732, %v3731
    %v3841 = vpack.c.b16 %v3734, %v3733
    %v3842 = vpack.c.b16 %v3736, %v3735
    %v3843 = vpack.c.b16 %v3738, %v3737
    %v3844 = vpack.c.b16 %v3740, %v3739
    %v3845 = vpack.c.b16 %v3742, %v3741
    %v3846 = vpack.c.b16 %v3744, %v3743
    %v3847 = vpack.c.b16 %v3746, %v3745
    %v3848 = vpack.c.b16 %v3748, %v3747
    %v3849 = vpack.c.b16 %v3750, %v3749
    %v3850 = vpack.c.b16 %v3752, %v3751
    %v3851 = vpack.c.b16 %v3754, %v3753
    %v3852 = vpack.c.b16 %v3756, %v3755
    %v3853 = vpack.c.b16 %v3758, %v3757
    %v3854 = vpack.c.b16 %v3760, %v3759
    %v3855 = vpack.c.b16 %v3762, %v3761
    %v3856 = vpack.c.b16 %v3764, %v3763
    %v3857 = vpack.c.b16 %v3766, %v3765
    %v3858 = vpack.c.b16 %v3768, %v3767
    %v3859 = vpack.c.b16 %v3770, %v3769
    %v3860 = vpack.c.b16 %v3772, %v3771
    %v3861 = vpack.c.b16 %v3774, %v3773
    %v3862 = vpack.c.b16 %v3776, %v3775
    %v3863 = vpack.c.b16 %v3778, %v3777
    %v3864 = vpack.c.b16 %v3780, %v3779
    %v3865 = vpack.c.b16 %v3782, %v3781
    %v3866 = vpack.c.b16 %v3784, %v3783
    %v3867 = vpack.c.b16 %v3786, %v3785
    %v3868 = vpack.c.b16 %v3788, %v3787
    %v3869 = vpack.c.b16 %v3790, %v3789
    %v3870 = vpack.c.b16 %v3792, %v3791
    %v3871 = vpack.c.b16 %v3794, %v3793
    %v3872 = vpack.c.b16 %v3796, %v3795
    %v3873 = vpack.c.b16 %v3798, %v3797
    %v3874 = vpack.c.b16 %v3800, %v3799
    %v3875 = vpack.c.b16 %v3802, %v3801
    %v3876 = vpack.c.b16 %v3804, %v3803
    %v3877 = vpack.c.b16 %v3806, %v3805
    %v3878 = vpack.c.b16 %v3808, %v3807
    %v3879 = vpack.c.b16 %v3810, %v3809
    %v3880 = vpack.c.b16 %v3812, %v3811
    %v3881 = vpack.c.b16 %v3814, %v3813
    %v3882 = vpack.c.b16 %v3816, %v3815
    %v3883 = vpack.c.b16 %v3818, %v3817
    %v3884 = vpack.c.b16 %v3820, %v3819
    %v3885 = vpack.c.b16 %v3822, %v3821
    %v3965 = vunpack.c.l.b16 %v3548
    %v3966 = vunpack.c.l.b16 %v3549
    %v3967 = vunpack.c.l.b16 %v3550
    %v3968 = vunpack.c.l.b16 %v3551
    %v3969 = vunpack.c.l.b16 %v3552
    %v3970 = vunpack.c.l.b16 %v3553
    %v3971 = vunpack.c.l.b16 %v3554
    %v3972 = vunpack.c.l.b16 %v3555
    %v3973 = vunpack.c.l.b16 %v3556
    %v3974 = vunpack.c.l.b16 %v3557
    %v3975 = vunpack.c.l.b16 %v3558
    %v3976 = vunpack.c.l.b16 %v3559
    %v3977 = vunpack.c.l.b16 %v3560
    %v3978 = vunpack.c.l.b16 %v3561
    %v3979 = vunpack.c.l.b16 %v3562
    %v3980 = vunpack.c.l.b16 %v3563
    %v3981 = vpack.c.b16 %v3966, %v3965
    %v3982 = vpack.c.b16 %v3968, %v3967
    %v3983 = vpack.c.b16 %v3970, %v3969
    %v3984 = vpack.c.b16 %v3972, %v3971
    %v3985 = vpack.c.b16 %v3974, %v3973
    %v3986 = vpack.c.b16 %v3976, %v3975
    %v3987 = vpack.c.b16 %v3978, %v3977
    %v3988 = vpack.c.b16 %v3980, %v3979
    %3997 = vmatprep.subr.bf16.mxu0 0
    %3998 = vmatpush1.bf16.msra.mxu0 %v3988
    %3999 = vmatprep.subr.bf16.mxu0 0
    %4000 = vmatpush1.bf16.msra.mxu0 %v3987
    %4001 = vmatprep.subr.bf16.mxu0 0
    %4002 = vmatpush1.bf16.msra.mxu0 %v3986
    %4003 = vmatprep.subr.bf16.mxu0 0
    %4004 = vmatpush1.bf16.msra.mxu0 %v3985
    %4005 = vmatprep.subr.bf16.mxu0 0
    %4006 = vmatpush1.bf16.msra.mxu0 %v3984
    %4007 = vmatprep.subr.bf16.mxu0 0
    %4008 = vmatpush1.bf16.msra.mxu0 %v3983
    %4009 = vmatprep.subr.bf16.mxu0 0
    %4010 = vmatpush1.bf16.msra.mxu0 %v3982
    %4011 = vmatprep.subr.bf16.mxu0 0
    %4012 = vmatpush1.bf16.msra.mxu0 %v3981
    %4013 = vmatprep.subr.bf16.mxu0 0
    %4014 = vmatpush2.bf16.msra.mxu0 0
    %4015 = vmatprep.subr.bf16.mxu0 0
    %4016 = vmatpush2.bf16.msra.mxu0 0
    %4017 = vmatprep.subr.bf16.mxu0 0
    %4018 = vmatpush2.bf16.msra.mxu0 0
    %4019 = vmatprep.subr.bf16.mxu0 0
    %4020 = vmatpush2.bf16.msra.mxu0 0
    %4021 = vmatprep.subr.bf16.mxu0 0
    %4022 = vmatpush2.bf16.msra.mxu0 0
    %4023 = vmatprep.subr.bf16.mxu0 0
    %4024 = vmatpush2.bf16.msra.mxu0 0
    %4025 = vmatprep.subr.bf16.mxu0 0
    %4026 = vmatpush2.bf16.msra.mxu0 0
    %4027 = vmatprep.subr.bf16.mxu0 0
    %4028 = vmatpush2.bf16.msra.mxu0 0
    %4029 = vmatprep.mubr.bf16.mxu0 0
    %4030 = vmatmul.mubr.bf16.gmra.mxu0 %v3823
    %v4031 = vpop.f32.mrf.mxu0
    %v4032 = vadd.f32 %v3569, %v4031
    %v4033 = vpop.f32.mrf.mxu0
    %v4034 = vpop.f32.mrf.mxu0
    %v4035 = vadd.f32 %v3569, %v4034
    %v4036 = vpop.f32.mrf.mxu0
    %4037 = vmatprep.mubr.bf16.mxu0 0
    %4038 = vmatmul.mubr.bf16.gmra.mxu0 %v3824
    %v4039 = vpop.f32.mrf.mxu0
    %v4040 = vadd.f32 %v3569, %v4039
    %v4041 = vpop.f32.mrf.mxu0
    %v4042 = vpop.f32.mrf.mxu0
    %v4043 = vadd.f32 %v3569, %v4042
    %v4044 = vpop.f32.mrf.mxu0
    %4045 = vmatprep.mubr.bf16.mxu0 0
    %4046 = vmatmul.mubr.bf16.gmra.mxu0 %v3825
    %v4047 = vpop.f32.mrf.mxu0
    %v4048 = vadd.f32 %v3569, %v4047
    %v4049 = vpop.f32.mrf.mxu0
    %v4050 = vpop.f32.mrf.mxu0
    %v4051 = vadd.f32 %v3569, %v4050
    %v4052 = vpop.f32.mrf.mxu0
    %4053 = vmatprep.mubr.bf16.mxu0 0
    %4054 = vmatmul.mubr.bf16.gmra.mxu0 %v3826
    %v4055 = vpop.f32.mrf.mxu0
    %v4056 = vadd.f32 %v3569, %v4055
    %v4057 = vpop.f32.mrf.mxu0
    %v4058 = vpop.f32.mrf.mxu0
    %v4059 = vadd.f32 %v3569, %v4058
    %v4060 = vpop.f32.mrf.mxu0
    %4061 = vmatprep.mubr.bf16.mxu0 0
    %4062 = vmatmul.mubr.bf16.gmra.mxu0 %v3827
    %v4063 = vpop.f32.mrf.mxu0
    %v4064 = vadd.f32 %v3569, %v4063
    %v4065 = vpop.f32.mrf.mxu0
    %v4066 = vpop.f32.mrf.mxu0
    %v4067 = vadd.f32 %v3569, %v4066
    %v4068 = vpop.f32.mrf.mxu0
    %4069 = vmatprep.mubr.bf16.mxu0 0
    %4070 = vmatmul.mubr.bf16.gmra.mxu0 %v3828
    %v4071 = vpop.f32.mrf.mxu0
    %v4072 = vadd.f32 %v3569, %v4071
    %v4073 = vpop.f32.mrf.mxu0
    %v4074 = vpop.f32.mrf.mxu0
    %v4075 = vadd.f32 %v3569, %v4074
    %v4076 = vpop.f32.mrf.mxu0
    %4077 = vmatprep.mubr.bf16.mxu0 0
    %4078 = vmatmul.mubr.bf16.gmra.mxu0 %v3829
    %v4079 = vpop.f32.mrf.mxu0
    %v4080 = vadd.f32 %v3569, %v4079
    %v4081 = vpop.f32.mrf.mxu0
    %v4082 = vpop.f32.mrf.mxu0
    %v4083 = vadd.f32 %v3569, %v4082
    %v4084 = vpop.f32.mrf.mxu0
    %4085 = vmatprep.mubr.bf16.mxu0 0
    %4086 = vmatmul.mubr.bf16.gmra.mxu0 %v3830
    %v4087 = vpop.f32.mrf.mxu0
    %v4088 = vadd.f32 %v3569, %v4087
    %v4089 = vpop.f32.mrf.mxu0
    %v4090 = vpop.f32.mrf.mxu0
    %v4091 = vadd.f32 %v3569, %v4090
    %v4092 = vpop.f32.mrf.mxu0
    %4093 = vmatprep.mubr.bf16.mxu0 0
    %4094 = vmatmul.mubr.bf16.gmra.mxu0 %v3831
    %v4095 = vpop.f32.mrf.mxu0
    %v4096 = vadd.f32 %v3569, %v4095
    %v4097 = vpop.f32.mrf.mxu0
    %v4098 = vpop.f32.mrf.mxu0
    %v4099 = vadd.f32 %v3569, %v4098
    %v4100 = vpop.f32.mrf.mxu0
    %4101 = vmatprep.mubr.bf16.mxu0 0
    %4102 = vmatmul.mubr.bf16.gmra.mxu0 %v3832
    %v4103 = vpop.f32.mrf.mxu0
    %v4104 = vadd.f32 %v3569, %v4103
    %v4105 = vpop.f32.mrf.mxu0
    %v4106 = vpop.f32.mrf.mxu0
    %v4107 = vadd.f32 %v3569, %v4106
    %v4108 = vpop.f32.mrf.mxu0
    %4109 = vmatprep.mubr.bf16.mxu0 0
    %4110 = vmatmul.mubr.bf16.gmra.mxu0 %v3833
    %v4111 = vpop.f32.mrf.mxu0
    %v4112 = vadd.f32 %v3569, %v4111
    %v4113 = vpop.f32.mrf.mxu0
    %v4114 = vpop.f32.mrf.mxu0
    %v4115 = vadd.f32 %v3569, %v4114
    %v4116 = vpop.f32.mrf.mxu0
    %4117 = vmatprep.mubr.bf16.mxu0 0
    %4118 = vmatmul.mubr.bf16.gmra.mxu0 %v3834
    %v4119 = vpop.f32.mrf.mxu0
    %v4120 = vadd.f32 %v3569, %v4119
    %v4121 = vpop.f32.mrf.mxu0
    %v4122 = vpop.f32.mrf.mxu0
    %v4123 = vadd.f32 %v3569, %v4122
    %v4124 = vpop.f32.mrf.mxu0
    %4125 = vmatprep.mubr.bf16.mxu0 0
    %4126 = vmatmul.mubr.bf16.gmra.mxu0 %v3835
    %v4127 = vpop.f32.mrf.mxu0
    %v4128 = vadd.f32 %v3569, %v4127
    %v4129 = vpop.f32.mrf.mxu0
    %v4130 = vpop.f32.mrf.mxu0
    %v4131 = vadd.f32 %v3569, %v4130
    %v4132 = vpop.f32.mrf.mxu0
    %4133 = vmatprep.mubr.bf16.mxu0 0
    %4134 = vmatmul.mubr.bf16.gmra.mxu0 %v3836
    %v4135 = vpop.f32.mrf.mxu0
    %v4136 = vadd.f32 %v3569, %v4135
    %v4137 = vpop.f32.mrf.mxu0
    %v4138 = vpop.f32.mrf.mxu0
    %v4139 = vadd.f32 %v3569, %v4138
    %v4140 = vpop.f32.mrf.mxu0
    %4141 = vmatprep.mubr.bf16.mxu0 0
    %4142 = vmatmul.mubr.bf16.gmra.mxu0 %v3837
    %v4143 = vpop.f32.mrf.mxu0
    %v4144 = vadd.f32 %v3569, %v4143
    %v4145 = vpop.f32.mrf.mxu0
    %v4146 = vpop.f32.mrf.mxu0
    %v4147 = vadd.f32 %v3569, %v4146
    %v4148 = vpop.f32.mrf.mxu0
    %4149 = vmatprep.mubr.bf16.mxu0 0
    %4150 = vmatmul.mubr.bf16.gmra.mxu0 %v3838
    %v4151 = vpop.f32.mrf.mxu0
    %v4152 = vadd.f32 %v3569, %v4151
    %v4153 = vpop.f32.mrf.mxu0
    %v4154 = vpop.f32.mrf.mxu0
    %v4155 = vadd.f32 %v3569, %v4154
    %v4156 = vpop.f32.mrf.mxu0
    %4157 = vmatprep.mubr.bf16.mxu0 0
    %4158 = vmatmul.mubr.bf16.gmra.mxu0 %v3839
    %v4159 = vpop.f32.mrf.mxu0
    %v4160 = vadd.f32 %v3569, %v4159
    %v4161 = vpop.f32.mrf.mxu0
    %v4162 = vpop.f32.mrf.mxu0
    %v4163 = vadd.f32 %v3569, %v4162
    %v4164 = vpop.f32.mrf.mxu0
    %4165 = vmatprep.mubr.bf16.mxu0 0
    %4166 = vmatmul.mubr.bf16.gmra.mxu0 %v3840
    %v4167 = vpop.f32.mrf.mxu0
    %v4168 = vadd.f32 %v3569, %v4167
    %v4169 = vpop.f32.mrf.mxu0
    %v4170 = vpop.f32.mrf.mxu0
    %v4171 = vadd.f32 %v3569, %v4170
    %v4172 = vpop.f32.mrf.mxu0
    %4173 = vmatprep.mubr.bf16.mxu0 0
    %4174 = vmatmul.mubr.bf16.gmra.mxu0 %v3841
    %v4175 = vpop.f32.mrf.mxu0
    %v4176 = vadd.f32 %v3569, %v4175
    %v4177 = vpop.f32.mrf.mxu0
    %v4178 = vpop.f32.mrf.mxu0
    %v4179 = vadd.f32 %v3569, %v4178
    %v4180 = vpop.f32.mrf.mxu0
    %4181 = vmatprep.mubr.bf16.mxu0 0
    %4182 = vmatmul.mubr.bf16.gmra.mxu0 %v3842
    %v4183 = vpop.f32.mrf.mxu0
    %v4184 = vadd.f32 %v3569, %v4183
    %v4185 = vpop.f32.mrf.mxu0
    %v4186 = vpop.f32.mrf.mxu0
    %v4187 = vadd.f32 %v3569, %v4186
    %v4188 = vpop.f32.mrf.mxu0
    %4189 = vmatprep.mubr.bf16.mxu0 0
    %4190 = vmatmul.mubr.bf16.gmra.mxu0 %v3843
    %v4191 = vpop.f32.mrf.mxu0
    %v4192 = vadd.f32 %v3569, %v4191
    %v4193 = vpop.f32.mrf.mxu0
    %v4194 = vpop.f32.mrf.mxu0
    %v4195 = vadd.f32 %v3569, %v4194
    %v4196 = vpop.f32.mrf.mxu0
    %4197 = vmatprep.mubr.bf16.mxu0 0
    %4198 = vmatmul.mubr.bf16.gmra.mxu0 %v3844
    %v4199 = vpop.f32.mrf.mxu0
    %v4200 = vadd.f32 %v3569, %v4199
    %v4201 = vpop.f32.mrf.mxu0
    %v4202 = vpop.f32.mrf.mxu0
    %v4203 = vadd.f32 %v3569, %v4202
    %v4204 = vpop.f32.mrf.mxu0
    %4205 = vmatprep.mubr.bf16.mxu0 0
    %4206 = vmatmul.mubr.bf16.gmra.mxu0 %v3845
    %v4207 = vpop.f32.mrf.mxu0
    %v4208 = vadd.f32 %v3569, %v4207
    %v4209 = vpop.f32.mrf.mxu0
    %v4210 = vpop.f32.mrf.mxu0
    %v4211 = vadd.f32 %v3569, %v4210
    %v4212 = vpop.f32.mrf.mxu0
    %4213 = vmatprep.mubr.bf16.mxu0 0
    %4214 = vmatmul.mubr.bf16.gmra.mxu0 %v3846
    %v4215 = vpop.f32.mrf.mxu0
    %v4216 = vadd.f32 %v3569, %v4215
    %v4217 = vpop.f32.mrf.mxu0
    %v4218 = vpop.f32.mrf.mxu0
    %v4219 = vadd.f32 %v3569, %v4218
    %v4220 = vpop.f32.mrf.mxu0
    %4221 = vmatprep.mubr.bf16.mxu0 0
    %4222 = vmatmul.mubr.bf16.gmra.mxu0 %v3847
    %v4223 = vpop.f32.mrf.mxu0
    %v4224 = vadd.f32 %v3569, %v4223
    %v4225 = vpop.f32.mrf.mxu0
    %v4226 = vpop.f32.mrf.mxu0
    %v4227 = vadd.f32 %v3569, %v4226
    %v4228 = vpop.f32.mrf.mxu0
    %4229 = vmatprep.mubr.bf16.mxu0 0
    %4230 = vmatmul.mubr.bf16.gmra.mxu0 %v3848
    %v4231 = vpop.f32.mrf.mxu0
    %v4232 = vadd.f32 %v3569, %v4231
    %v4233 = vpop.f32.mrf.mxu0
    %v4234 = vpop.f32.mrf.mxu0
    %v4235 = vadd.f32 %v3569, %v4234
    %v4236 = vpop.f32.mrf.mxu0
    %4237 = vmatprep.mubr.bf16.mxu0 0
    %4238 = vmatmul.mubr.bf16.gmra.mxu0 %v3849
    %v4239 = vpop.f32.mrf.mxu0
    %v4240 = vadd.f32 %v3569, %v4239
    %v4241 = vpop.f32.mrf.mxu0
    %v4242 = vpop.f32.mrf.mxu0
    %v4243 = vadd.f32 %v3569, %v4242
    %v4244 = vpop.f32.mrf.mxu0
    %4245 = vmatprep.mubr.bf16.mxu0 0
    %4246 = vmatmul.mubr.bf16.gmra.mxu0 %v3850
    %v4247 = vpop.f32.mrf.mxu0
    %v4248 = vadd.f32 %v3569, %v4247
    %v4249 = vpop.f32.mrf.mxu0
    %v4250 = vpop.f32.mrf.mxu0
    %v4251 = vadd.f32 %v3569, %v4250
    %v4252 = vpop.f32.mrf.mxu0
    %4253 = vmatprep.mubr.bf16.mxu0 0
    %4254 = vmatmul.mubr.bf16.gmra.mxu0 %v3851
    %v4255 = vpop.f32.mrf.mxu0
    %v4256 = vadd.f32 %v3569, %v4255
    %v4257 = vpop.f32.mrf.mxu0
    %v4258 = vpop.f32.mrf.mxu0
    %v4259 = vadd.f32 %v3569, %v4258
    %v4260 = vpop.f32.mrf.mxu0
    %4261 = vmatprep.mubr.bf16.mxu0 0
    %4262 = vmatmul.mubr.bf16.gmra.mxu0 %v3852
    %v4263 = vpop.f32.mrf.mxu0
    %v4264 = vadd.f32 %v3569, %v4263
    %v4265 = vpop.f32.mrf.mxu0
    %v4266 = vpop.f32.mrf.mxu0
    %v4267 = vadd.f32 %v3569, %v4266
    %v4268 = vpop.f32.mrf.mxu0
    %4269 = vmatprep.mubr.bf16.mxu0 0
    %4270 = vmatmul.mubr.bf16.gmra.mxu0 %v3853
    %v4271 = vpop.f32.mrf.mxu0
    %v4272 = vadd.f32 %v3569, %v4271
    %v4273 = vpop.f32.mrf.mxu0
    %v4274 = vpop.f32.mrf.mxu0
    %v4275 = vadd.f32 %v3569, %v4274
    %v4276 = vpop.f32.mrf.mxu0
    %4277 = vmatprep.mubr.bf16.mxu0 0
    %4278 = vmatmul.mubr.bf16.gmra.mxu0 %v3854
    %v4279 = vpop.f32.mrf.mxu0
    %v4280 = vadd.f32 %v3569, %v4279
    %v4281 = vpop.f32.mrf.mxu0
    %v4282 = vpop.f32.mrf.mxu0
    %v4283 = vadd.f32 %v3569, %v4282
    %v4284 = vpop.f32.mrf.mxu0
    %4285 = vmatprep.mubr.bf16.mxu0 0
    %4286 = vmatmul.mubr.bf16.gmra.mxu0 %v3855
    %v4287 = vpop.f32.mrf.mxu0
    %v4288 = vadd.f32 %v3569, %v4287
    %v4289 = vpop.f32.mrf.mxu0
    %v4290 = vpop.f32.mrf.mxu0
    %v4291 = vadd.f32 %v3569, %v4290
    %v4292 = vpop.f32.mrf.mxu0
    %4293 = vmatprep.mubr.bf16.mxu0 0
    %4294 = vmatmul.mubr.bf16.gmra.mxu0 %v3856
    %v4295 = vpop.f32.mrf.mxu0
    %v4296 = vadd.f32 %v3569, %v4295
    %v4297 = vpop.f32.mrf.mxu0
    %v4298 = vpop.f32.mrf.mxu0
    %v4299 = vadd.f32 %v3569, %v4298
    %v4300 = vpop.f32.mrf.mxu0
    %4301 = vmatprep.mubr.bf16.mxu0 0
    %4302 = vmatmul.mubr.bf16.gmra.mxu0 %v3857
    %v4303 = vpop.f32.mrf.mxu0
    %v4304 = vadd.f32 %v3569, %v4303
    %v4305 = vpop.f32.mrf.mxu0
    %v4306 = vpop.f32.mrf.mxu0
    %v4307 = vadd.f32 %v3569, %v4306
    %v4308 = vpop.f32.mrf.mxu0
    %4309 = vmatprep.mubr.bf16.mxu0 0
    %4310 = vmatmul.mubr.bf16.gmra.mxu0 %v3858
    %v4311 = vpop.f32.mrf.mxu0
    %v4312 = vadd.f32 %v3569, %v4311
    %v4313 = vpop.f32.mrf.mxu0
    %v4314 = vpop.f32.mrf.mxu0
    %v4315 = vadd.f32 %v3569, %v4314
    %v4316 = vpop.f32.mrf.mxu0
    %4317 = vmatprep.mubr.bf16.mxu0 0
    %4318 = vmatmul.mubr.bf16.gmra.mxu0 %v3859
    %v4319 = vpop.f32.mrf.mxu0
    %v4320 = vadd.f32 %v3569, %v4319
    %v4321 = vpop.f32.mrf.mxu0
    %v4322 = vpop.f32.mrf.mxu0
    %v4323 = vadd.f32 %v3569, %v4322
    %v4324 = vpop.f32.mrf.mxu0
    %4325 = vmatprep.mubr.bf16.mxu0 0
    %4326 = vmatmul.mubr.bf16.gmra.mxu0 %v3860
    %v4327 = vpop.f32.mrf.mxu0
    %v4328 = vadd.f32 %v3569, %v4327
    %v4329 = vpop.f32.mrf.mxu0
    %v4330 = vpop.f32.mrf.mxu0
    %v4331 = vadd.f32 %v3569, %v4330
    %v4332 = vpop.f32.mrf.mxu0
    %4333 = vmatprep.mubr.bf16.mxu0 0
    %4334 = vmatmul.mubr.bf16.gmra.mxu0 %v3861
    %v4335 = vpop.f32.mrf.mxu0
    %v4336 = vadd.f32 %v3569, %v4335
    %v4337 = vpop.f32.mrf.mxu0
    %v4338 = vpop.f32.mrf.mxu0
    %v4339 = vadd.f32 %v3569, %v4338
    %v4340 = vpop.f32.mrf.mxu0
    %4341 = vmatprep.mubr.bf16.mxu0 0
    %4342 = vmatmul.mubr.bf16.gmra.mxu0 %v3862
    %v4343 = vpop.f32.mrf.mxu0
    %v4344 = vadd.f32 %v3569, %v4343
    %v4345 = vpop.f32.mrf.mxu0
    %v4346 = vpop.f32.mrf.mxu0
    %v4347 = vadd.f32 %v3569, %v4346
    %v4348 = vpop.f32.mrf.mxu0
    %4349 = vmatprep.mubr.bf16.mxu0 0
    %4350 = vmatmul.mubr.bf16.gmra.mxu0 %v3863
    %v4351 = vpop.f32.mrf.mxu0
    %v4352 = vadd.f32 %v3569, %v4351
    %v4353 = vpop.f32.mrf.mxu0
    %v4354 = vpop.f32.mrf.mxu0
    %v4355 = vadd.f32 %v3569, %v4354
    %v4356 = vpop.f32.mrf.mxu0
    %4357 = vmatprep.mubr.bf16.mxu0 0
    %4358 = vmatmul.mubr.bf16.gmra.mxu0 %v3864
    %v4359 = vpop.f32.mrf.mxu0
    %v4360 = vadd.f32 %v3569, %v4359
    %v4361 = vpop.f32.mrf.mxu0
    %v4362 = vpop.f32.mrf.mxu0
    %v4363 = vadd.f32 %v3569, %v4362
    %v4364 = vpop.f32.mrf.mxu0
    %4365 = vmatprep.mubr.bf16.mxu0 0
    %4366 = vmatmul.mubr.bf16.gmra.mxu0 %v3865
    %v4367 = vpop.f32.mrf.mxu0
    %v4368 = vadd.f32 %v3569, %v4367
    %v4369 = vpop.f32.mrf.mxu0
    %v4370 = vpop.f32.mrf.mxu0
    %v4371 = vadd.f32 %v3569, %v4370
    %v4372 = vpop.f32.mrf.mxu0
    %4373 = vmatprep.mubr.bf16.mxu0 0
    %4374 = vmatmul.mubr.bf16.gmra.mxu0 %v3866
    %v4375 = vpop.f32.mrf.mxu0
    %v4376 = vadd.f32 %v3569, %v4375
    %v4377 = vpop.f32.mrf.mxu0
    %v4378 = vpop.f32.mrf.mxu0
    %v4379 = vadd.f32 %v3569, %v4378
    %v4380 = vpop.f32.mrf.mxu0
    %4381 = vmatprep.mubr.bf16.mxu0 0
    %4382 = vmatmul.mubr.bf16.gmra.mxu0 %v3867
    %v4383 = vpop.f32.mrf.mxu0
    %v4384 = vadd.f32 %v3569, %v4383
    %v4385 = vpop.f32.mrf.mxu0
    %v4386 = vpop.f32.mrf.mxu0
    %v4387 = vadd.f32 %v3569, %v4386
    %v4388 = vpop.f32.mrf.mxu0
    %4389 = vmatprep.mubr.bf16.mxu0 0
    %4390 = vmatmul.mubr.bf16.gmra.mxu0 %v3868
    %v4391 = vpop.f32.mrf.mxu0
    %v4392 = vadd.f32 %v3569, %v4391
    %v4393 = vpop.f32.mrf.mxu0
    %v4394 = vpop.f32.mrf.mxu0
    %v4395 = vadd.f32 %v3569, %v4394
    %v4396 = vpop.f32.mrf.mxu0
    %4397 = vmatprep.mubr.bf16.mxu0 0
    %4398 = vmatmul.mubr.bf16.gmra.mxu0 %v3869
    %v4399 = vpop.f32.mrf.mxu0
    %v4400 = vadd.f32 %v3569, %v4399
    %v4401 = vpop.f32.mrf.mxu0
    %v4402 = vpop.f32.mrf.mxu0
    %v4403 = vadd.f32 %v3569, %v4402
    %v4404 = vpop.f32.mrf.mxu0
    %4405 = vmatprep.mubr.bf16.mxu0 0
    %4406 = vmatmul.mubr.bf16.gmra.mxu0 %v3870
    %v4407 = vpop.f32.mrf.mxu0
    %v4408 = vadd.f32 %v3569, %v4407
    %v4409 = vpop.f32.mrf.mxu0
    %v4410 = vpop.f32.mrf.mxu0
    %v4411 = vadd.f32 %v3569, %v4410
    %v4412 = vpop.f32.mrf.mxu0
    %4413 = vmatprep.mubr.bf16.mxu0 0
    %4414 = vmatmul.mubr.bf16.gmra.mxu0 %v3871
    %v4415 = vpop.f32.mrf.mxu0
    %v4416 = vadd.f32 %v3569, %v4415
    %v4417 = vpop.f32.mrf.mxu0
    %v4418 = vpop.f32.mrf.mxu0
    %v4419 = vadd.f32 %v3569, %v4418
    %v4420 = vpop.f32.mrf.mxu0
    %4421 = vmatprep.mubr.bf16.mxu0 0
    %4422 = vmatmul.mubr.bf16.gmra.mxu0 %v3872
    %v4423 = vpop.f32.mrf.mxu0
    %v4424 = vadd.f32 %v3569, %v4423
    %v4425 = vpop.f32.mrf.mxu0
    %v4426 = vpop.f32.mrf.mxu0
    %v4427 = vadd.f32 %v3569, %v4426
    %v4428 = vpop.f32.mrf.mxu0
    %4429 = vmatprep.mubr.bf16.mxu0 0
    %4430 = vmatmul.mubr.bf16.gmra.mxu0 %v3873
    %v4431 = vpop.f32.mrf.mxu0
    %v4432 = vadd.f32 %v3569, %v4431
    %v4433 = vpop.f32.mrf.mxu0
    %v4434 = vpop.f32.mrf.mxu0
    %v4435 = vadd.f32 %v3569, %v4434
    %v4436 = vpop.f32.mrf.mxu0
    %4437 = vmatprep.mubr.bf16.mxu0 0
    %4438 = vmatmul.mubr.bf16.gmra.mxu0 %v3874
    %v4439 = vpop.f32.mrf.mxu0
    %v4440 = vadd.f32 %v3569, %v4439
    %v4441 = vpop.f32.mrf.mxu0
    %v4442 = vpop.f32.mrf.mxu0
    %v4443 = vadd.f32 %v3569, %v4442
    %v4444 = vpop.f32.mrf.mxu0
    %4445 = vmatprep.mubr.bf16.mxu0 0
    %4446 = vmatmul.mubr.bf16.gmra.mxu0 %v3875
    %v4447 = vpop.f32.mrf.mxu0
    %v4448 = vadd.f32 %v3569, %v4447
    %v4449 = vpop.f32.mrf.mxu0
    %v4450 = vpop.f32.mrf.mxu0
    %v4451 = vadd.f32 %v3569, %v4450
    %v4452 = vpop.f32.mrf.mxu0
    %4453 = vmatprep.mubr.bf16.mxu0 0
    %4454 = vmatmul.mubr.bf16.gmra.mxu0 %v3876
    %v4455 = vpop.f32.mrf.mxu0
    %v4456 = vadd.f32 %v3569, %v4455
    %v4457 = vpop.f32.mrf.mxu0
    %v4458 = vpop.f32.mrf.mxu0
    %v4459 = vadd.f32 %v3569, %v4458
    %v4460 = vpop.f32.mrf.mxu0
    %4461 = vmatprep.mubr.bf16.mxu0 0
    %4462 = vmatmul.mubr.bf16.gmra.mxu0 %v3877
    %v4463 = vpop.f32.mrf.mxu0
    %v4464 = vadd.f32 %v3569, %v4463
    %v4465 = vpop.f32.mrf.mxu0
    %v4466 = vpop.f32.mrf.mxu0
    %v4467 = vadd.f32 %v3569, %v4466
    %v4468 = vpop.f32.mrf.mxu0
    %4469 = vmatprep.mubr.bf16.mxu0 0
    %4470 = vmatmul.mubr.bf16.gmra.mxu0 %v3878
    %v4471 = vpop.f32.mrf.mxu0
    %v4472 = vadd.f32 %v3569, %v4471
    %v4473 = vpop.f32.mrf.mxu0
    %v4474 = vpop.f32.mrf.mxu0
    %v4475 = vadd.f32 %v3569, %v4474
    %v4476 = vpop.f32.mrf.mxu0
    %4477 = vmatprep.mubr.bf16.mxu0 0
    %4478 = vmatmul.mubr.bf16.gmra.mxu0 %v3879
    %v4479 = vpop.f32.mrf.mxu0
    %v4480 = vadd.f32 %v3569, %v4479
    %v4481 = vpop.f32.mrf.mxu0
    %v4482 = vpop.f32.mrf.mxu0
    %v4483 = vadd.f32 %v3569, %v4482
    %v4484 = vpop.f32.mrf.mxu0
    %4485 = vmatprep.mubr.bf16.mxu0 0
    %4486 = vmatmul.mubr.bf16.gmra.mxu0 %v3880
    %v4487 = vpop.f32.mrf.mxu0
    %v4488 = vadd.f32 %v3569, %v4487
    %v4489 = vpop.f32.mrf.mxu0
    %v4490 = vpop.f32.mrf.mxu0
    %v4491 = vadd.f32 %v3569, %v4490
    %v4492 = vpop.f32.mrf.mxu0
    %4493 = vmatprep.mubr.bf16.mxu0 0
    %4494 = vmatmul.mubr.bf16.gmra.mxu0 %v3881
    %v4495 = vpop.f32.mrf.mxu0
    %v4496 = vadd.f32 %v3569, %v4495
    %v4497 = vpop.f32.mrf.mxu0
    %v4498 = vpop.f32.mrf.mxu0
    %v4499 = vadd.f32 %v3569, %v4498
    %v4500 = vpop.f32.mrf.mxu0
    %4501 = vmatprep.mubr.bf16.mxu0 0
    %4502 = vmatmul.mubr.bf16.gmra.mxu0 %v3882
    %v4503 = vpop.f32.mrf.mxu0
    %v4504 = vadd.f32 %v3569, %v4503
    %v4505 = vpop.f32.mrf.mxu0
    %v4506 = vpop.f32.mrf.mxu0
    %v4507 = vadd.f32 %v3569, %v4506
    %v4508 = vpop.f32.mrf.mxu0
    %4509 = vmatprep.mubr.bf16.mxu0 0
    %4510 = vmatmul.mubr.bf16.gmra.mxu0 %v3883
    %v4511 = vpop.f32.mrf.mxu0
    %v4512 = vadd.f32 %v3569, %v4511
    %v4513 = vpop.f32.mrf.mxu0
    %v4514 = vpop.f32.mrf.mxu0
    %v4515 = vadd.f32 %v3569, %v4514
    %v4516 = vpop.f32.mrf.mxu0
    %4517 = vmatprep.mubr.bf16.mxu0 0
    %4518 = vmatmul.mubr.bf16.gmra.mxu0 %v3884
    %v4519 = vpop.f32.mrf.mxu0
    %v4520 = vadd.f32 %v3569, %v4519
    %v4521 = vpop.f32.mrf.mxu0
    %v4522 = vpop.f32.mrf.mxu0
    %v4523 = vadd.f32 %v3569, %v4522
    %v4524 = vpop.f32.mrf.mxu0
    %4525 = vmatprep.mubr.bf16.mxu0 0
    %4526 = vmatmul.mubr.bf16.gmra.mxu0 %v3885
    %v4527 = vpop.f32.mrf.mxu0
    %v4528 = vadd.f32 %v3569, %v4527
    %v4529 = vpop.f32.mrf.mxu0
    %v4530 = vpop.f32.mrf.mxu0
    %v4531 = vadd.f32 %v3569, %v4530
    %v4532 = vpop.f32.mrf.mxu0
    %4533 = vdwg.mxu0
    %v4534 = vmax.f32 %v4032, 0.0
    %v4535 = vmax.f32 %v4035, 0.0
    %v4536 = vmax.f32 %v4040, 0.0
    %v4537 = vmax.f32 %v4043, 0.0
    %v4538 = vmax.f32 %v4048, 0.0
    %v4539 = vmax.f32 %v4051, 0.0
    %v4540 = vmax.f32 %v4056, 0.0
    %v4541 = vmax.f32 %v4059, 0.0
    %v4542 = vmax.f32 %v4064, 0.0
    %v4543 = vmax.f32 %v4067, 0.0
    %v4544 = vmax.f32 %v4072, 0.0
    %v4545 = vmax.f32 %v4075, 0.0
    %v4546 = vmax.f32 %v4080, 0.0
    %v4547 = vmax.f32 %v4083, 0.0
    %v4548 = vmax.f32 %v4088, 0.0
    %v4549 = vmax.f32 %v4091, 0.0
    %v4550 = vmax.f32 %v4096, 0.0
    %v4551 = vmax.f32 %v4099, 0.0
    %v4552 = vmax.f32 %v4104, 0.0
    %v4553 = vmax.f32 %v4107, 0.0
    %v4554 = vmax.f32 %v4112, 0.0
    %v4555 = vmax.f32 %v4115, 0.0
    %v4556 = vmax.f32 %v4120, 0.0
    %v4557 = vmax.f32 %v4123, 0.0
    %v4558 = vmax.f32 %v4128, 0.0
    %v4559 = vmax.f32 %v4131, 0.0
    %v4560 = vmax.f32 %v4136, 0.0
    %v4561 = vmax.f32 %v4139, 0.0
    %v4562 = vmax.f32 %v4144, 0.0
    %v4563 = vmax.f32 %v4147, 0.0
    %v4564 = vmax.f32 %v4152, 0.0
    %v4565 = vmax.f32 %v4155, 0.0
    %v4566 = vmax.f32 %v4160, 0.0
    %v4567 = vmax.f32 %v4163, 0.0
    %v4568 = vmax.f32 %v4168, 0.0
    %v4569 = vmax.f32 %v4171, 0.0
    %v4570 = vmax.f32 %v4176, 0.0
    %v4571 = vmax.f32 %v4179, 0.0
    %v4572 = vmax.f32 %v4184, 0.0
    %v4573 = vmax.f32 %v4187, 0.0
    %v4574 = vmax.f32 %v4192, 0.0
    %v4575 = vmax.f32 %v4195, 0.0
    %v4576 = vmax.f32 %v4200, 0.0
    %v4577 = vmax.f32 %v4203, 0.0
    %v4578 = vmax.f32 %v4208, 0.0
    %v4579 = vmax.f32 %v4211, 0.0
    %v4580 = vmax.f32 %v4216, 0.0
    %v4581 = vmax.f32 %v4219, 0.0
    %v4582 = vmax.f32 %v4224, 0.0
    %v4583 = vmax.f32 %v4227, 0.0
    %v4584 = vmax.f32 %v4232, 0.0
    %v4585 = vmax.f32 %v4235, 0.0
    %v4586 = vmax.f32 %v4240, 0.0
    %v4587 = vmax.f32 %v4243, 0.0
    %v4588 = vmax.f32 %v4248, 0.0
    %v4589 = vmax.f32 %v4251, 0.0
    %v4590 = vmax.f32 %v4256, 0.0
    %v4591 = vmax.f32 %v4259, 0.0
    %v4592 = vmax.f32 %v4264, 0.0
    %v4593 = vmax.f32 %v4267, 0.0
    %v4594 = vmax.f32 %v4272, 0.0
    %v4595 = vmax.f32 %v4275, 0.0
    %v4596 = vmax.f32 %v4280, 0.0
    %v4597 = vmax.f32 %v4283, 0.0
    %v4598 = vmax.f32 %v4288, 0.0
    %v4599 = vmax.f32 %v4291, 0.0
    %v4600 = vmax.f32 %v4296, 0.0
    %v4601 = vmax.f32 %v4299, 0.0
    %v4602 = vmax.f32 %v4304, 0.0
    %v4603 = vmax.f32 %v4307, 0.0
    %v4604 = vmax.f32 %v4312, 0.0
    %v4605 = vmax.f32 %v4315, 0.0
    %v4606 = vmax.f32 %v4320, 0.0
    %v4607 = vmax.f32 %v4323, 0.0
    %v4608 = vmax.f32 %v4328, 0.0
    %v4609 = vmax.f32 %v4331, 0.0
    %v4610 = vmax.f32 %v4336, 0.0
    %v4611 = vmax.f32 %v4339, 0.0
    %v4612 = vmax.f32 %v4344, 0.0
    %v4613 = vmax.f32 %v4347, 0.0
    %v4614 = vmax.f32 %v4352, 0.0
    %v4615 = vmax.f32 %v4355, 0.0
    %v4616 = vmax.f32 %v4360, 0.0
    %v4617 = vmax.f32 %v4363, 0.0
    %v4618 = vmax.f32 %v4368, 0.0
    %v4619 = vmax.f32 %v4371, 0.0
    %v4620 = vmax.f32 %v4376, 0.0
    %v4621 = vmax.f32 %v4379, 0.0
    %v4622 = vmax.f32 %v4384, 0.0
    %v4623 = vmax.f32 %v4387, 0.0
    %v4624 = vmax.f32 %v4392, 0.0
    %v4625 = vmax.f32 %v4395, 0.0
    %v4626 = vmax.f32 %v4400, 0.0
    %v4627 = vmax.f32 %v4403, 0.0
    %v4628 = vmax.f32 %v4408, 0.0
    %v4629 = vmax.f32 %v4411, 0.0
    %v4630 = vmax.f32 %v4416, 0.0
    %v4631 = vmax.f32 %v4419, 0.0
    %v4632 = vmax.f32 %v4424, 0.0
    %v4633 = vmax.f32 %v4427, 0.0
    %v4634 = vmax.f32 %v4432, 0.0
    %v4635 = vmax.f32 %v4435, 0.0
    %v4636 = vmax.f32 %v4440, 0.0
    %v4637 = vmax.f32 %v4443, 0.0
    %v4638 = vmax.f32 %v4448, 0.0
    %v4639 = vmax.f32 %v4451, 0.0
    %v4640 = vmax.f32 %v4456, 0.0
    %v4641 = vmax.f32 %v4459, 0.0
    %v4642 = vmax.f32 %v4464, 0.0
    %v4643 = vmax.f32 %v4467, 0.0
    %v4644 = vmax.f32 %v4472, 0.0
    %v4645 = vmax.f32 %v4475, 0.0
    %v4646 = vmax.f32 %v4480, 0.0
    %v4647 = vmax.f32 %v4483, 0.0
    %v4648 = vmax.f32 %v4488, 0.0
    %v4649 = vmax.f32 %v4491, 0.0
    %v4650 = vmax.f32 %v4496, 0.0
    %v4651 = vmax.f32 %v4499, 0.0
    %v4652 = vmax.f32 %v4504, 0.0
    %v4653 = vmax.f32 %v4507, 0.0
    %v4654 = vmax.f32 %v4512, 0.0
    %v4655 = vmax.f32 %v4515, 0.0
    %v4656 = vmax.f32 %v4520, 0.0
    %v4657 = vmax.f32 %v4523, 0.0
    %v4658 = vmax.f32 %v4528, 0.0
    %v4659 = vmax.f32 %v4531, 0.0
    %v4660 = vpack.c.bf16 %v4535, %v4534
    %v4661 = vpack.c.bf16 %v4537, %v4536
    %v4662 = vpack.c.bf16 %v4539, %v4538
    %v4663 = vpack.c.bf16 %v4541, %v4540
    %v4664 = vpack.c.bf16 %v4543, %v4542
    %v4665 = vpack.c.bf16 %v4545, %v4544
    %v4666 = vpack.c.bf16 %v4547, %v4546
    %v4667 = vpack.c.bf16 %v4549, %v4548
    %v4668 = vpack.c.bf16 %v4551, %v4550
    %v4669 = vpack.c.bf16 %v4553, %v4552
    %v4670 = vpack.c.bf16 %v4555, %v4554
    %v4671 = vpack.c.bf16 %v4557, %v4556
    %v4672 = vpack.c.bf16 %v4559, %v4558
    %v4673 = vpack.c.bf16 %v4561, %v4560
    %v4674 = vpack.c.bf16 %v4563, %v4562
    %v4675 = vpack.c.bf16 %v4565, %v4564
    %v4676 = vpack.c.bf16 %v4567, %v4566
    %v4677 = vpack.c.bf16 %v4569, %v4568
    %v4678 = vpack.c.bf16 %v4571, %v4570
    %v4679 = vpack.c.bf16 %v4573, %v4572
    %v4680 = vpack.c.bf16 %v4575, %v4574
    %v4681 = vpack.c.bf16 %v4577, %v4576
    %v4682 = vpack.c.bf16 %v4579, %v4578
    %v4683 = vpack.c.bf16 %v4581, %v4580
    %v4684 = vpack.c.bf16 %v4583, %v4582
    %v4685 = vpack.c.bf16 %v4585, %v4584
    %v4686 = vpack.c.bf16 %v4587, %v4586
    %v4687 = vpack.c.bf16 %v4589, %v4588
    %v4688 = vpack.c.bf16 %v4591, %v4590
    %v4689 = vpack.c.bf16 %v4593, %v4592
    %v4690 = vpack.c.bf16 %v4595, %v4594
    %v4691 = vpack.c.bf16 %v4597, %v4596
    %v4692 = vpack.c.bf16 %v4599, %v4598
    %v4693 = vpack.c.bf16 %v4601, %v4600
    %v4694 = vpack.c.bf16 %v4603, %v4602
    %v4695 = vpack.c.bf16 %v4605, %v4604
    %v4696 = vpack.c.bf16 %v4607, %v4606
    %v4697 = vpack.c.bf16 %v4609, %v4608
    %v4698 = vpack.c.bf16 %v4611, %v4610
    %v4699 = vpack.c.bf16 %v4613, %v4612
    %v4700 = vpack.c.bf16 %v4615, %v4614
    %v4701 = vpack.c.bf16 %v4617, %v4616
    %v4702 = vpack.c.bf16 %v4619, %v4618
    %v4703 = vpack.c.bf16 %v4621, %v4620
    %v4704 = vpack.c.bf16 %v4623, %v4622
    %v4705 = vpack.c.bf16 %v4625, %v4624
    %v4706 = vpack.c.bf16 %v4627, %v4626
    %v4707 = vpack.c.bf16 %v4629, %v4628
    %v4708 = vpack.c.bf16 %v4631, %v4630
    %v4709 = vpack.c.bf16 %v4633, %v4632
    %v4710 = vpack.c.bf16 %v4635, %v4634
    %v4711 = vpack.c.bf16 %v4637, %v4636
    %v4712 = vpack.c.bf16 %v4639, %v4638
    %v4713 = vpack.c.bf16 %v4641, %v4640
    %v4714 = vpack.c.bf16 %v4643, %v4642
    %v4715 = vpack.c.bf16 %v4645, %v4644
    %v4716 = vpack.c.bf16 %v4647, %v4646
    %v4717 = vpack.c.bf16 %v4649, %v4648
    %v4718 = vpack.c.bf16 %v4651, %v4650
    %v4719 = vpack.c.bf16 %v4653, %v4652
    %v4720 = vpack.c.bf16 %v4655, %v4654
    %v4721 = vpack.c.bf16 %v4657, %v4656
    %v4722 = vpack.c.bf16 %v4659, %v4658
    %v4723 = vld [vmem:[#allocation40] sm:$0xf]
    %v4724 = vld [vmem:[#allocation40 + $0x4] sm:$0xf]
    %v4725 = vld [vmem:[#allocation40 + $0x8] sm:$0xf]
    %v4726 = vld [vmem:[#allocation40 + $0xc] sm:$0xf]
    %v4727 = vld [vmem:[#allocation40 + $0x10] sm:$0xf]
    %v4728 = vld [vmem:[#allocation40 + $0x14] sm:$0xf]
    %v4729 = vld [vmem:[#allocation40 + $0x18] sm:$0xf]
    %v4730 = vld [vmem:[#allocation40 + $0x1c] sm:$0xf]
    %v4731 = vld [vmem:[#allocation40 + $0x20] sm:$0xf]
    %v4732 = vld [vmem:[#allocation40 + $0x24] sm:$0xf]
    %v4733 = vld [vmem:[#allocation40 + $0x28] sm:$0xf]
    %v4734 = vld [vmem:[#allocation40 + $0x2c] sm:$0xf]
    %v4735 = vld [vmem:[#allocation40 + $0x30] sm:$0xf]
    %v4736 = vld [vmem:[#allocation40 + $0x34] sm:$0xf]
    %v4737 = vld [vmem:[#allocation40 + $0x38] sm:$0xf]
    %v4738 = vld [vmem:[#allocation40 + $0x3c] sm:$0xf]
    %v4739 = vld [vmem:[#allocation41] sm:$0x1]
    %v4741 = vlaneseq
    %v4742 = vshrl.u32 %v4741, 7
    %v4743 = vsub.s32 0, %v4742
    %v4744 = vrot.slane %v4739, %v4743
    %v4762 = vunpack.c.l.b16 %v4723
    %v4763 = vunpack.c.l.b16 %v4724
    %v4764 = vunpack.c.l.b16 %v4725
    %v4765 = vunpack.c.l.b16 %v4726
    %v4766 = vunpack.c.l.b16 %v4727
    %v4767 = vunpack.c.l.b16 %v4728
    %v4768 = vunpack.c.l.b16 %v4729
    %v4769 = vunpack.c.l.b16 %v4730
    %v4770 = vunpack.c.l.b16 %v4731
    %v4771 = vunpack.c.l.b16 %v4732
    %v4772 = vunpack.c.l.b16 %v4733
    %v4773 = vunpack.c.l.b16 %v4734
    %v4774 = vunpack.c.l.b16 %v4735
    %v4775 = vunpack.c.l.b16 %v4736
    %v4776 = vunpack.c.l.b16 %v4737
    %v4777 = vunpack.c.l.b16 %v4738
    %v4778 = vpack.c.b16 %v4763, %v4762
    %v4779 = vpack.c.b16 %v4765, %v4764
    %v4780 = vpack.c.b16 %v4767, %v4766
    %v4781 = vpack.c.b16 %v4769, %v4768
    %v4782 = vpack.c.b16 %v4771, %v4770
    %v4783 = vpack.c.b16 %v4773, %v4772
    %v4784 = vpack.c.b16 %v4775, %v4774
    %v4785 = vpack.c.b16 %v4777, %v4776
    %4794 = vmatprep.subr.bf16.mxu0 0
    %4795 = vmatpush1.bf16.msra.mxu0 %v4785
    %4796 = vmatprep.subr.bf16.mxu0 0
    %4797 = vmatpush1.bf16.msra.mxu0 %v4784
    %4798 = vmatprep.subr.bf16.mxu0 0
    %4799 = vmatpush1.bf16.msra.mxu0 %v4783
    %4800 = vmatprep.subr.bf16.mxu0 0
    %4801 = vmatpush1.bf16.msra.mxu0 %v4782
    %4802 = vmatprep.subr.bf16.mxu0 0
    %4803 = vmatpush1.bf16.msra.mxu0 %v4781
    %4804 = vmatprep.subr.bf16.mxu0 0
    %4805 = vmatpush1.bf16.msra.mxu0 %v4780
    %4806 = vmatprep.subr.bf16.mxu0 0
    %4807 = vmatpush1.bf16.msra.mxu0 %v4779
    %4808 = vmatprep.subr.bf16.mxu0 0
    %4809 = vmatpush1.bf16.msra.mxu0 %v4778
    %4810 = vmatprep.subr.bf16.mxu0 0
    %4811 = vmatpush2.bf16.msra.mxu0 0
    %4812 = vmatprep.subr.bf16.mxu0 0
    %4813 = vmatpush2.bf16.msra.mxu0 0
    %4814 = vmatprep.subr.bf16.mxu0 0
    %4815 = vmatpush2.bf16.msra.mxu0 0
    %4816 = vmatprep.subr.bf16.mxu0 0
    %4817 = vmatpush2.bf16.msra.mxu0 0
    %4818 = vmatprep.subr.bf16.mxu0 0
    %4819 = vmatpush2.bf16.msra.mxu0 0
    %4820 = vmatprep.subr.bf16.mxu0 0
    %4821 = vmatpush2.bf16.msra.mxu0 0
    %4822 = vmatprep.subr.bf16.mxu0 0
    %4823 = vmatpush2.bf16.msra.mxu0 0
    %4824 = vmatprep.subr.bf16.mxu0 0
    %4825 = vmatpush2.bf16.msra.mxu0 0
    %4826 = vmatprep.mubr.bf16.mxu0 0
    %4827 = vmatmul.mubr.bf16.gmra.mxu0 %v4660
    %v4828 = vpop.f32.mrf.mxu0
    %v4829 = vadd.f32 %v4744, %v4828
    %v4830 = vpop.f32.mrf.mxu0
    %v4831 = vpop.f32.mrf.mxu0
    %v4832 = vadd.f32 %v4744, %v4831
    %v4833 = vpop.f32.mrf.mxu0
    %4834 = vmatprep.mubr.bf16.mxu0 0
    %4835 = vmatmul.mubr.bf16.gmra.mxu0 %v4661
    %v4836 = vpop.f32.mrf.mxu0
    %v4837 = vadd.f32 %v4744, %v4836
    %v4838 = vpop.f32.mrf.mxu0
    %v4839 = vpop.f32.mrf.mxu0
    %v4840 = vadd.f32 %v4744, %v4839
    %v4841 = vpop.f32.mrf.mxu0
    %4842 = vmatprep.mubr.bf16.mxu0 0
    %4843 = vmatmul.mubr.bf16.gmra.mxu0 %v4662
    %v4844 = vpop.f32.mrf.mxu0
    %v4845 = vadd.f32 %v4744, %v4844
    %v4846 = vpop.f32.mrf.mxu0
    %v4847 = vpop.f32.mrf.mxu0
    %v4848 = vadd.f32 %v4744, %v4847
    %v4849 = vpop.f32.mrf.mxu0
    %4850 = vmatprep.mubr.bf16.mxu0 0
    %4851 = vmatmul.mubr.bf16.gmra.mxu0 %v4663
    %v4852 = vpop.f32.mrf.mxu0
    %v4853 = vadd.f32 %v4744, %v4852
    %v4854 = vpop.f32.mrf.mxu0
    %v4855 = vpop.f32.mrf.mxu0
    %v4856 = vadd.f32 %v4744, %v4855
    %v4857 = vpop.f32.mrf.mxu0
    %4858 = vmatprep.mubr.bf16.mxu0 0
    %4859 = vmatmul.mubr.bf16.gmra.mxu0 %v4664
    %v4860 = vpop.f32.mrf.mxu0
    %v4861 = vadd.f32 %v4744, %v4860
    %v4862 = vpop.f32.mrf.mxu0
    %v4863 = vpop.f32.mrf.mxu0
    %v4864 = vadd.f32 %v4744, %v4863
    %v4865 = vpop.f32.mrf.mxu0
    %4866 = vmatprep.mubr.bf16.mxu0 0
    %4867 = vmatmul.mubr.bf16.gmra.mxu0 %v4665
    %v4868 = vpop.f32.mrf.mxu0
    %v4869 = vadd.f32 %v4744, %v4868
    %v4870 = vpop.f32.mrf.mxu0
    %v4871 = vpop.f32.mrf.mxu0
    %v4872 = vadd.f32 %v4744, %v4871
    %v4873 = vpop.f32.mrf.mxu0
    %4874 = vmatprep.mubr.bf16.mxu0 0
    %4875 = vmatmul.mubr.bf16.gmra.mxu0 %v4666
    %v4876 = vpop.f32.mrf.mxu0
    %v4877 = vadd.f32 %v4744, %v4876
    %v4878 = vpop.f32.mrf.mxu0
    %v4879 = vpop.f32.mrf.mxu0
    %v4880 = vadd.f32 %v4744, %v4879
    %v4881 = vpop.f32.mrf.mxu0
    %4882 = vmatprep.mubr.bf16.mxu0 0
    %4883 = vmatmul.mubr.bf16.gmra.mxu0 %v4667
    %v4884 = vpop.f32.mrf.mxu0
    %v4885 = vadd.f32 %v4744, %v4884
    %v4886 = vpop.f32.mrf.mxu0
    %v4887 = vpop.f32.mrf.mxu0
    %v4888 = vadd.f32 %v4744, %v4887
    %v4889 = vpop.f32.mrf.mxu0
    %4890 = vmatprep.mubr.bf16.mxu0 0
    %4891 = vmatmul.mubr.bf16.gmra.mxu0 %v4668
    %v4892 = vpop.f32.mrf.mxu0
    %v4893 = vadd.f32 %v4744, %v4892
    %v4894 = vpop.f32.mrf.mxu0
    %v4895 = vpop.f32.mrf.mxu0
    %v4896 = vadd.f32 %v4744, %v4895
    %v4897 = vpop.f32.mrf.mxu0
    %4898 = vmatprep.mubr.bf16.mxu0 0
    %4899 = vmatmul.mubr.bf16.gmra.mxu0 %v4669
    %v4900 = vpop.f32.mrf.mxu0
    %v4901 = vadd.f32 %v4744, %v4900
    %v4902 = vpop.f32.mrf.mxu0
    %v4903 = vpop.f32.mrf.mxu0
    %v4904 = vadd.f32 %v4744, %v4903
    %v4905 = vpop.f32.mrf.mxu0
    %4906 = vmatprep.mubr.bf16.mxu0 0
    %4907 = vmatmul.mubr.bf16.gmra.mxu0 %v4670
    %v4908 = vpop.f32.mrf.mxu0
    %v4909 = vadd.f32 %v4744, %v4908
    %v4910 = vpop.f32.mrf.mxu0
    %v4911 = vpop.f32.mrf.mxu0
    %v4912 = vadd.f32 %v4744, %v4911
    %v4913 = vpop.f32.mrf.mxu0
    %4914 = vmatprep.mubr.bf16.mxu0 0
    %4915 = vmatmul.mubr.bf16.gmra.mxu0 %v4671
    %v4916 = vpop.f32.mrf.mxu0
    %v4917 = vadd.f32 %v4744, %v4916
    %v4918 = vpop.f32.mrf.mxu0
    %v4919 = vpop.f32.mrf.mxu0
    %v4920 = vadd.f32 %v4744, %v4919
    %v4921 = vpop.f32.mrf.mxu0
    %4922 = vmatprep.mubr.bf16.mxu0 0
    %4923 = vmatmul.mubr.bf16.gmra.mxu0 %v4672
    %v4924 = vpop.f32.mrf.mxu0
    %v4925 = vadd.f32 %v4744, %v4924
    %v4926 = vpop.f32.mrf.mxu0
    %v4927 = vpop.f32.mrf.mxu0
    %v4928 = vadd.f32 %v4744, %v4927
    %v4929 = vpop.f32.mrf.mxu0
    %4930 = vmatprep.mubr.bf16.mxu0 0
    %4931 = vmatmul.mubr.bf16.gmra.mxu0 %v4673
    %v4932 = vpop.f32.mrf.mxu0
    %v4933 = vadd.f32 %v4744, %v4932
    %v4934 = vpop.f32.mrf.mxu0
    %v4935 = vpop.f32.mrf.mxu0
    %v4936 = vadd.f32 %v4744, %v4935
    %v4937 = vpop.f32.mrf.mxu0
    %4938 = vmatprep.mubr.bf16.mxu0 0
    %4939 = vmatmul.mubr.bf16.gmra.mxu0 %v4674
    %v4940 = vpop.f32.mrf.mxu0
    %v4941 = vadd.f32 %v4744, %v4940
    %v4942 = vpop.f32.mrf.mxu0
    %v4943 = vpop.f32.mrf.mxu0
    %v4944 = vadd.f32 %v4744, %v4943
    %v4945 = vpop.f32.mrf.mxu0
    %4946 = vmatprep.mubr.bf16.mxu0 0
    %4947 = vmatmul.mubr.bf16.gmra.mxu0 %v4675
    %v4948 = vpop.f32.mrf.mxu0
    %v4949 = vadd.f32 %v4744, %v4948
    %v4950 = vpop.f32.mrf.mxu0
    %v4951 = vpop.f32.mrf.mxu0
    %v4952 = vadd.f32 %v4744, %v4951
    %v4953 = vpop.f32.mrf.mxu0
    %4954 = vmatprep.mubr.bf16.mxu0 0
    %4955 = vmatmul.mubr.bf16.gmra.mxu0 %v4676
    %v4956 = vpop.f32.mrf.mxu0
    %v4957 = vadd.f32 %v4744, %v4956
    %v4958 = vpop.f32.mrf.mxu0
    %v4959 = vpop.f32.mrf.mxu0
    %v4960 = vadd.f32 %v4744, %v4959
    %v4961 = vpop.f32.mrf.mxu0
    %4962 = vmatprep.mubr.bf16.mxu0 0
    %4963 = vmatmul.mubr.bf16.gmra.mxu0 %v4677
    %v4964 = vpop.f32.mrf.mxu0
    %v4965 = vadd.f32 %v4744, %v4964
    %v4966 = vpop.f32.mrf.mxu0
    %v4967 = vpop.f32.mrf.mxu0
    %v4968 = vadd.f32 %v4744, %v4967
    %v4969 = vpop.f32.mrf.mxu0
    %4970 = vmatprep.mubr.bf16.mxu0 0
    %4971 = vmatmul.mubr.bf16.gmra.mxu0 %v4678
    %v4972 = vpop.f32.mrf.mxu0
    %v4973 = vadd.f32 %v4744, %v4972
    %v4974 = vpop.f32.mrf.mxu0
    %v4975 = vpop.f32.mrf.mxu0
    %v4976 = vadd.f32 %v4744, %v4975
    %v4977 = vpop.f32.mrf.mxu0
    %4978 = vmatprep.mubr.bf16.mxu0 0
    %4979 = vmatmul.mubr.bf16.gmra.mxu0 %v4679
    %v4980 = vpop.f32.mrf.mxu0
    %v4981 = vadd.f32 %v4744, %v4980
    %v4982 = vpop.f32.mrf.mxu0
    %v4983 = vpop.f32.mrf.mxu0
    %v4984 = vadd.f32 %v4744, %v4983
    %v4985 = vpop.f32.mrf.mxu0
    %4986 = vmatprep.mubr.bf16.mxu0 0
    %4987 = vmatmul.mubr.bf16.gmra.mxu0 %v4680
    %v4988 = vpop.f32.mrf.mxu0
    %v4989 = vadd.f32 %v4744, %v4988
    %v4990 = vpop.f32.mrf.mxu0
    %v4991 = vpop.f32.mrf.mxu0
    %v4992 = vadd.f32 %v4744, %v4991
    %v4993 = vpop.f32.mrf.mxu0
    %4994 = vmatprep.mubr.bf16.mxu0 0
    %4995 = vmatmul.mubr.bf16.gmra.mxu0 %v4681
    %v4996 = vpop.f32.mrf.mxu0
    %v4997 = vadd.f32 %v4744, %v4996
    %v4998 = vpop.f32.mrf.mxu0
    %v4999 = vpop.f32.mrf.mxu0
    %v5000 = vadd.f32 %v4744, %v4999
    %v5001 = vpop.f32.mrf.mxu0
    %5002 = vmatprep.mubr.bf16.mxu0 0
    %5003 = vmatmul.mubr.bf16.gmra.mxu0 %v4682
    %v5004 = vpop.f32.mrf.mxu0
    %v5005 = vadd.f32 %v4744, %v5004
    %v5006 = vpop.f32.mrf.mxu0
    %v5007 = vpop.f32.mrf.mxu0
    %v5008 = vadd.f32 %v4744, %v5007
    %v5009 = vpop.f32.mrf.mxu0
    %5010 = vmatprep.mubr.bf16.mxu0 0
    %5011 = vmatmul.mubr.bf16.gmra.mxu0 %v4683
    %v5012 = vpop.f32.mrf.mxu0
    %v5013 = vadd.f32 %v4744, %v5012
    %v5014 = vpop.f32.mrf.mxu0
    %v5015 = vpop.f32.mrf.mxu0
    %v5016 = vadd.f32 %v4744, %v5015
    %v5017 = vpop.f32.mrf.mxu0
    %5018 = vmatprep.mubr.bf16.mxu0 0
    %5019 = vmatmul.mubr.bf16.gmra.mxu0 %v4684
    %v5020 = vpop.f32.mrf.mxu0
    %v5021 = vadd.f32 %v4744, %v5020
    %v5022 = vpop.f32.mrf.mxu0
    %v5023 = vpop.f32.mrf.mxu0
    %v5024 = vadd.f32 %v4744, %v5023
    %v5025 = vpop.f32.mrf.mxu0
    %5026 = vmatprep.mubr.bf16.mxu0 0
    %5027 = vmatmul.mubr.bf16.gmra.mxu0 %v4685
    %v5028 = vpop.f32.mrf.mxu0
    %v5029 = vadd.f32 %v4744, %v5028
    %v5030 = vpop.f32.mrf.mxu0
    %v5031 = vpop.f32.mrf.mxu0
    %v5032 = vadd.f32 %v4744, %v5031
    %v5033 = vpop.f32.mrf.mxu0
    %5034 = vmatprep.mubr.bf16.mxu0 0
    %5035 = vmatmul.mubr.bf16.gmra.mxu0 %v4686
    %v5036 = vpop.f32.mrf.mxu0
    %v5037 = vadd.f32 %v4744, %v5036
    %v5038 = vpop.f32.mrf.mxu0
    %v5039 = vpop.f32.mrf.mxu0
    %v5040 = vadd.f32 %v4744, %v5039
    %v5041 = vpop.f32.mrf.mxu0
    %5042 = vmatprep.mubr.bf16.mxu0 0
    %5043 = vmatmul.mubr.bf16.gmra.mxu0 %v4687
    %v5044 = vpop.f32.mrf.mxu0
    %v5045 = vadd.f32 %v4744, %v5044
    %v5046 = vpop.f32.mrf.mxu0
    %v5047 = vpop.f32.mrf.mxu0
    %v5048 = vadd.f32 %v4744, %v5047
    %v5049 = vpop.f32.mrf.mxu0
    %5050 = vmatprep.mubr.bf16.mxu0 0
    %5051 = vmatmul.mubr.bf16.gmra.mxu0 %v4688
    %v5052 = vpop.f32.mrf.mxu0
    %v5053 = vadd.f32 %v4744, %v5052
    %v5054 = vpop.f32.mrf.mxu0
    %v5055 = vpop.f32.mrf.mxu0
    %v5056 = vadd.f32 %v4744, %v5055
    %v5057 = vpop.f32.mrf.mxu0
    %5058 = vmatprep.mubr.bf16.mxu0 0
    %5059 = vmatmul.mubr.bf16.gmra.mxu0 %v4689
    %v5060 = vpop.f32.mrf.mxu0
    %v5061 = vadd.f32 %v4744, %v5060
    %v5062 = vpop.f32.mrf.mxu0
    %v5063 = vpop.f32.mrf.mxu0
    %v5064 = vadd.f32 %v4744, %v5063
    %v5065 = vpop.f32.mrf.mxu0
    %5066 = vmatprep.mubr.bf16.mxu0 0
    %5067 = vmatmul.mubr.bf16.gmra.mxu0 %v4690
    %v5068 = vpop.f32.mrf.mxu0
    %v5069 = vadd.f32 %v4744, %v5068
    %v5070 = vpop.f32.mrf.mxu0
    %v5071 = vpop.f32.mrf.mxu0
    %v5072 = vadd.f32 %v4744, %v5071
    %v5073 = vpop.f32.mrf.mxu0
    %5074 = vmatprep.mubr.bf16.mxu0 0
    %5075 = vmatmul.mubr.bf16.gmra.mxu0 %v4691
    %v5076 = vpop.f32.mrf.mxu0
    %v5077 = vadd.f32 %v4744, %v5076
    %v5078 = vpop.f32.mrf.mxu0
    %v5079 = vpop.f32.mrf.mxu0
    %v5080 = vadd.f32 %v4744, %v5079
    %v5081 = vpop.f32.mrf.mxu0
    %5082 = vmatprep.mubr.bf16.mxu0 0
    %5083 = vmatmul.mubr.bf16.gmra.mxu0 %v4692
    %v5084 = vpop.f32.mrf.mxu0
    %v5085 = vadd.f32 %v4744, %v5084
    %v5086 = vpop.f32.mrf.mxu0
    %v5087 = vpop.f32.mrf.mxu0
    %v5088 = vadd.f32 %v4744, %v5087
    %v5089 = vpop.f32.mrf.mxu0
    %5090 = vmatprep.mubr.bf16.mxu0 0
    %5091 = vmatmul.mubr.bf16.gmra.mxu0 %v4693
    %v5092 = vpop.f32.mrf.mxu0
    %v5093 = vadd.f32 %v4744, %v5092
    %v5094 = vpop.f32.mrf.mxu0
    %v5095 = vpop.f32.mrf.mxu0
    %v5096 = vadd.f32 %v4744, %v5095
    %v5097 = vpop.f32.mrf.mxu0
    %5098 = vmatprep.mubr.bf16.mxu0 0
    %5099 = vmatmul.mubr.bf16.gmra.mxu0 %v4694
    %v5100 = vpop.f32.mrf.mxu0
    %v5101 = vadd.f32 %v4744, %v5100
    %v5102 = vpop.f32.mrf.mxu0
    %v5103 = vpop.f32.mrf.mxu0
    %v5104 = vadd.f32 %v4744, %v5103
    %v5105 = vpop.f32.mrf.mxu0
    %5106 = vmatprep.mubr.bf16.mxu0 0
    %5107 = vmatmul.mubr.bf16.gmra.mxu0 %v4695
    %v5108 = vpop.f32.mrf.mxu0
    %v5109 = vadd.f32 %v4744, %v5108
    %v5110 = vpop.f32.mrf.mxu0
    %v5111 = vpop.f32.mrf.mxu0
    %v5112 = vadd.f32 %v4744, %v5111
    %v5113 = vpop.f32.mrf.mxu0
    %5114 = vmatprep.mubr.bf16.mxu0 0
    %5115 = vmatmul.mubr.bf16.gmra.mxu0 %v4696
    %v5116 = vpop.f32.mrf.mxu0
    %v5117 = vadd.f32 %v4744, %v5116
    %v5118 = vpop.f32.mrf.mxu0
    %v5119 = vpop.f32.mrf.mxu0
    %v5120 = vadd.f32 %v4744, %v5119
    %v5121 = vpop.f32.mrf.mxu0
    %5122 = vmatprep.mubr.bf16.mxu0 0
    %5123 = vmatmul.mubr.bf16.gmra.mxu0 %v4697
    %v5124 = vpop.f32.mrf.mxu0
    %v5125 = vadd.f32 %v4744, %v5124
    %v5126 = vpop.f32.mrf.mxu0
    %v5127 = vpop.f32.mrf.mxu0
    %v5128 = vadd.f32 %v4744, %v5127
    %v5129 = vpop.f32.mrf.mxu0
    %5130 = vmatprep.mubr.bf16.mxu0 0
    %5131 = vmatmul.mubr.bf16.gmra.mxu0 %v4698
    %v5132 = vpop.f32.mrf.mxu0
    %v5133 = vadd.f32 %v4744, %v5132
    %v5134 = vpop.f32.mrf.mxu0
    %v5135 = vpop.f32.mrf.mxu0
    %v5136 = vadd.f32 %v4744, %v5135
    %v5137 = vpop.f32.mrf.mxu0
    %5138 = vmatprep.mubr.bf16.mxu0 0
    %5139 = vmatmul.mubr.bf16.gmra.mxu0 %v4699
    %v5140 = vpop.f32.mrf.mxu0
    %v5141 = vadd.f32 %v4744, %v5140
    %v5142 = vpop.f32.mrf.mxu0
    %v5143 = vpop.f32.mrf.mxu0
    %v5144 = vadd.f32 %v4744, %v5143
    %v5145 = vpop.f32.mrf.mxu0
    %5146 = vmatprep.mubr.bf16.mxu0 0
    %5147 = vmatmul.mubr.bf16.gmra.mxu0 %v4700
    %v5148 = vpop.f32.mrf.mxu0
    %v5149 = vadd.f32 %v4744, %v5148
    %v5150 = vpop.f32.mrf.mxu0
    %v5151 = vpop.f32.mrf.mxu0
    %v5152 = vadd.f32 %v4744, %v5151
    %v5153 = vpop.f32.mrf.mxu0
    %5154 = vmatprep.mubr.bf16.mxu0 0
    %5155 = vmatmul.mubr.bf16.gmra.mxu0 %v4701
    %v5156 = vpop.f32.mrf.mxu0
    %v5157 = vadd.f32 %v4744, %v5156
    %v5158 = vpop.f32.mrf.mxu0
    %v5159 = vpop.f32.mrf.mxu0
    %v5160 = vadd.f32 %v4744, %v5159
    %v5161 = vpop.f32.mrf.mxu0
    %5162 = vmatprep.mubr.bf16.mxu0 0
    %5163 = vmatmul.mubr.bf16.gmra.mxu0 %v4702
    %v5164 = vpop.f32.mrf.mxu0
    %v5165 = vadd.f32 %v4744, %v5164
    %v5166 = vpop.f32.mrf.mxu0
    %v5167 = vpop.f32.mrf.mxu0
    %v5168 = vadd.f32 %v4744, %v5167
    %v5169 = vpop.f32.mrf.mxu0
    %5170 = vmatprep.mubr.bf16.mxu0 0
    %5171 = vmatmul.mubr.bf16.gmra.mxu0 %v4703
    %v5172 = vpop.f32.mrf.mxu0
    %v5173 = vadd.f32 %v4744, %v5172
    %v5174 = vpop.f32.mrf.mxu0
    %v5175 = vpop.f32.mrf.mxu0
    %v5176 = vadd.f32 %v4744, %v5175
    %v5177 = vpop.f32.mrf.mxu0
    %5178 = vmatprep.mubr.bf16.mxu0 0
    %5179 = vmatmul.mubr.bf16.gmra.mxu0 %v4704
    %v5180 = vpop.f32.mrf.mxu0
    %v5181 = vadd.f32 %v4744, %v5180
    %v5182 = vpop.f32.mrf.mxu0
    %v5183 = vpop.f32.mrf.mxu0
    %v5184 = vadd.f32 %v4744, %v5183
    %v5185 = vpop.f32.mrf.mxu0
    %5186 = vmatprep.mubr.bf16.mxu0 0
    %5187 = vmatmul.mubr.bf16.gmra.mxu0 %v4705
    %v5188 = vpop.f32.mrf.mxu0
    %v5189 = vadd.f32 %v4744, %v5188
    %v5190 = vpop.f32.mrf.mxu0
    %v5191 = vpop.f32.mrf.mxu0
    %v5192 = vadd.f32 %v4744, %v5191
    %v5193 = vpop.f32.mrf.mxu0
    %5194 = vmatprep.mubr.bf16.mxu0 0
    %5195 = vmatmul.mubr.bf16.gmra.mxu0 %v4706
    %v5196 = vpop.f32.mrf.mxu0
    %v5197 = vadd.f32 %v4744, %v5196
    %v5198 = vpop.f32.mrf.mxu0
    %v5199 = vpop.f32.mrf.mxu0
    %v5200 = vadd.f32 %v4744, %v5199
    %v5201 = vpop.f32.mrf.mxu0
    %5202 = vmatprep.mubr.bf16.mxu0 0
    %5203 = vmatmul.mubr.bf16.gmra.mxu0 %v4707
    %v5204 = vpop.f32.mrf.mxu0
    %v5205 = vadd.f32 %v4744, %v5204
    %v5206 = vpop.f32.mrf.mxu0
    %v5207 = vpop.f32.mrf.mxu0
    %v5208 = vadd.f32 %v4744, %v5207
    %v5209 = vpop.f32.mrf.mxu0
    %5210 = vmatprep.mubr.bf16.mxu0 0
    %5211 = vmatmul.mubr.bf16.gmra.mxu0 %v4708
    %v5212 = vpop.f32.mrf.mxu0
    %v5213 = vadd.f32 %v4744, %v5212
    %v5214 = vpop.f32.mrf.mxu0
    %v5215 = vpop.f32.mrf.mxu0
    %v5216 = vadd.f32 %v4744, %v5215
    %v5217 = vpop.f32.mrf.mxu0
    %5218 = vmatprep.mubr.bf16.mxu0 0
    %5219 = vmatmul.mubr.bf16.gmra.mxu0 %v4709
    %v5220 = vpop.f32.mrf.mxu0
    %v5221 = vadd.f32 %v4744, %v5220
    %v5222 = vpop.f32.mrf.mxu0
    %v5223 = vpop.f32.mrf.mxu0
    %v5224 = vadd.f32 %v4744, %v5223
    %v5225 = vpop.f32.mrf.mxu0
    %5226 = vmatprep.mubr.bf16.mxu0 0
    %5227 = vmatmul.mubr.bf16.gmra.mxu0 %v4710
    %v5228 = vpop.f32.mrf.mxu0
    %v5229 = vadd.f32 %v4744, %v5228
    %v5230 = vpop.f32.mrf.mxu0
    %v5231 = vpop.f32.mrf.mxu0
    %v5232 = vadd.f32 %v4744, %v5231
    %v5233 = vpop.f32.mrf.mxu0
    %5234 = vmatprep.mubr.bf16.mxu0 0
    %5235 = vmatmul.mubr.bf16.gmra.mxu0 %v4711
    %v5236 = vpop.f32.mrf.mxu0
    %v5237 = vadd.f32 %v4744, %v5236
    %v5238 = vpop.f32.mrf.mxu0
    %v5239 = vpop.f32.mrf.mxu0
    %v5240 = vadd.f32 %v4744, %v5239
    %v5241 = vpop.f32.mrf.mxu0
    %5242 = vmatprep.mubr.bf16.mxu0 0
    %5243 = vmatmul.mubr.bf16.gmra.mxu0 %v4712
    %v5244 = vpop.f32.mrf.mxu0
    %v5245 = vadd.f32 %v4744, %v5244
    %v5246 = vpop.f32.mrf.mxu0
    %v5247 = vpop.f32.mrf.mxu0
    %v5248 = vadd.f32 %v4744, %v5247
    %v5249 = vpop.f32.mrf.mxu0
    %5250 = vmatprep.mubr.bf16.mxu0 0
    %5251 = vmatmul.mubr.bf16.gmra.mxu0 %v4713
    %v5252 = vpop.f32.mrf.mxu0
    %v5253 = vadd.f32 %v4744, %v5252
    %v5254 = vpop.f32.mrf.mxu0
    %v5255 = vpop.f32.mrf.mxu0
    %v5256 = vadd.f32 %v4744, %v5255
    %v5257 = vpop.f32.mrf.mxu0
    %5258 = vmatprep.mubr.bf16.mxu0 0
    %5259 = vmatmul.mubr.bf16.gmra.mxu0 %v4714
    %v5260 = vpop.f32.mrf.mxu0
    %v5261 = vadd.f32 %v4744, %v5260
    %v5262 = vpop.f32.mrf.mxu0
    %v5263 = vpop.f32.mrf.mxu0
    %v5264 = vadd.f32 %v4744, %v5263
    %v5265 = vpop.f32.mrf.mxu0
    %5266 = vmatprep.mubr.bf16.mxu0 0
    %5267 = vmatmul.mubr.bf16.gmra.mxu0 %v4715
    %v5268 = vpop.f32.mrf.mxu0
    %v5269 = vadd.f32 %v4744, %v5268
    %v5270 = vpop.f32.mrf.mxu0
    %v5271 = vpop.f32.mrf.mxu0
    %v5272 = vadd.f32 %v4744, %v5271
    %v5273 = vpop.f32.mrf.mxu0
    %5274 = vmatprep.mubr.bf16.mxu0 0
    %5275 = vmatmul.mubr.bf16.gmra.mxu0 %v4716
    %v5276 = vpop.f32.mrf.mxu0
    %v5277 = vadd.f32 %v4744, %v5276
    %v5278 = vpop.f32.mrf.mxu0
    %v5279 = vpop.f32.mrf.mxu0
    %v5280 = vadd.f32 %v4744, %v5279
    %v5281 = vpop.f32.mrf.mxu0
    %5282 = vmatprep.mubr.bf16.mxu0 0
    %5283 = vmatmul.mubr.bf16.gmra.mxu0 %v4717
    %v5284 = vpop.f32.mrf.mxu0
    %v5285 = vadd.f32 %v4744, %v5284
    %v5286 = vpop.f32.mrf.mxu0
    %v5287 = vpop.f32.mrf.mxu0
    %v5288 = vadd.f32 %v4744, %v5287
    %v5289 = vpop.f32.mrf.mxu0
    %5290 = vmatprep.mubr.bf16.mxu0 0
    %5291 = vmatmul.mubr.bf16.gmra.mxu0 %v4718
    %v5292 = vpop.f32.mrf.mxu0
    %v5293 = vadd.f32 %v4744, %v5292
    %v5294 = vpop.f32.mrf.mxu0
    %v5295 = vpop.f32.mrf.mxu0
    %v5296 = vadd.f32 %v4744, %v5295
    %v5297 = vpop.f32.mrf.mxu0
    %5298 = vmatprep.mubr.bf16.mxu0 0
    %5299 = vmatmul.mubr.bf16.gmra.mxu0 %v4719
    %v5300 = vpop.f32.mrf.mxu0
    %v5301 = vadd.f32 %v4744, %v5300
    %v5302 = vpop.f32.mrf.mxu0
    %v5303 = vpop.f32.mrf.mxu0
    %v5304 = vadd.f32 %v4744, %v5303
    %v5305 = vpop.f32.mrf.mxu0
    %5306 = vmatprep.mubr.bf16.mxu0 0
    %5307 = vmatmul.mubr.bf16.gmra.mxu0 %v4720
    %v5308 = vpop.f32.mrf.mxu0
    %v5309 = vadd.f32 %v4744, %v5308
    %v5310 = vpop.f32.mrf.mxu0
    %v5311 = vpop.f32.mrf.mxu0
    %v5312 = vadd.f32 %v4744, %v5311
    %v5313 = vpop.f32.mrf.mxu0
    %5314 = vmatprep.mubr.bf16.mxu0 0
    %5315 = vmatmul.mubr.bf16.gmra.mxu0 %v4721
    %v5316 = vpop.f32.mrf.mxu0
    %v5317 = vadd.f32 %v4744, %v5316
    %v5318 = vpop.f32.mrf.mxu0
    %v5319 = vpop.f32.mrf.mxu0
    %v5320 = vadd.f32 %v4744, %v5319
    %v5321 = vpop.f32.mrf.mxu0
    %5322 = vmatprep.mubr.bf16.mxu0 0
    %5323 = vmatmul.mubr.bf16.gmra.mxu0 %v4722
    %v5324 = vpop.f32.mrf.mxu0
    %v5325 = vadd.f32 %v4744, %v5324
    %v5326 = vpop.f32.mrf.mxu0
    %v5327 = vpop.f32.mrf.mxu0
    %v5328 = vadd.f32 %v4744, %v5327
    %v5329 = vpop.f32.mrf.mxu0
    %5330 = vdwg.mxu0
    %v5331 = vmax.f32 %v4829, 0.0
    %v5332 = vmax.f32 %v4832, 0.0
    %v5333 = vmax.f32 %v4837, 0.0
    %v5334 = vmax.f32 %v4840, 0.0
    %v5335 = vmax.f32 %v4845, 0.0
    %v5336 = vmax.f32 %v4848, 0.0
    %v5337 = vmax.f32 %v4853, 0.0
    %v5338 = vmax.f32 %v4856, 0.0
    %v5339 = vmax.f32 %v4861, 0.0
    %v5340 = vmax.f32 %v4864, 0.0
    %v5341 = vmax.f32 %v4869, 0.0
    %v5342 = vmax.f32 %v4872, 0.0
    %v5343 = vmax.f32 %v4877, 0.0
    %v5344 = vmax.f32 %v4880, 0.0
    %v5345 = vmax.f32 %v4885, 0.0
    %v5346 = vmax.f32 %v4888, 0.0
    %v5347 = vmax.f32 %v4893, 0.0
    %v5348 = vmax.f32 %v4896, 0.0
    %v5349 = vmax.f32 %v4901, 0.0
    %v5350 = vmax.f32 %v4904, 0.0
    %v5351 = vmax.f32 %v4909, 0.0
    %v5352 = vmax.f32 %v4912, 0.0
    %v5353 = vmax.f32 %v4917, 0.0
    %v5354 = vmax.f32 %v4920, 0.0
    %v5355 = vmax.f32 %v4925, 0.0
    %v5356 = vmax.f32 %v4928, 0.0
    %v5357 = vmax.f32 %v4933, 0.0
    %v5358 = vmax.f32 %v4936, 0.0
    %v5359 = vmax.f32 %v4941, 0.0
    %v5360 = vmax.f32 %v4944, 0.0
    %v5361 = vmax.f32 %v4949, 0.0
    %v5362 = vmax.f32 %v4952, 0.0
    %v5363 = vmax.f32 %v4957, 0.0
    %v5364 = vmax.f32 %v4960, 0.0
    %v5365 = vmax.f32 %v4965, 0.0
    %v5366 = vmax.f32 %v4968, 0.0
    %v5367 = vmax.f32 %v4973, 0.0
    %v5368 = vmax.f32 %v4976, 0.0
    %v5369 = vmax.f32 %v4981, 0.0
    %v5370 = vmax.f32 %v4984, 0.0
    %v5371 = vmax.f32 %v4989, 0.0
    %v5372 = vmax.f32 %v4992, 0.0
    %v5373 = vmax.f32 %v4997, 0.0
    %v5374 = vmax.f32 %v5000, 0.0
    %v5375 = vmax.f32 %v5005, 0.0
    %v5376 = vmax.f32 %v5008, 0.0
    %v5377 = vmax.f32 %v5013, 0.0
    %v5378 = vmax.f32 %v5016, 0.0
    %v5379 = vmax.f32 %v5021, 0.0
    %v5380 = vmax.f32 %v5024, 0.0
    %v5381 = vmax.f32 %v5029, 0.0
    %v5382 = vmax.f32 %v5032, 0.0
    %v5383 = vmax.f32 %v5037, 0.0
    %v5384 = vmax.f32 %v5040, 0.0
    %v5385 = vmax.f32 %v5045, 0.0
    %v5386 = vmax.f32 %v5048, 0.0
    %v5387 = vmax.f32 %v5053, 0.0
    %v5388 = vmax.f32 %v5056, 0.0
    %v5389 = vmax.f32 %v5061, 0.0
    %v5390 = vmax.f32 %v5064, 0.0
    %v5391 = vmax.f32 %v5069, 0.0
    %v5392 = vmax.f32 %v5072, 0.0
    %v5393 = vmax.f32 %v5077, 0.0
    %v5394 = vmax.f32 %v5080, 0.0
    %v5395 = vmax.f32 %v5085, 0.0
    %v5396 = vmax.f32 %v5088, 0.0
    %v5397 = vmax.f32 %v5093, 0.0
    %v5398 = vmax.f32 %v5096, 0.0
    %v5399 = vmax.f32 %v5101, 0.0
    %v5400 = vmax.f32 %v5104, 0.0
    %v5401 = vmax.f32 %v5109, 0.0
    %v5402 = vmax.f32 %v5112, 0.0
    %v5403 = vmax.f32 %v5117, 0.0
    %v5404 = vmax.f32 %v5120, 0.0
    %v5405 = vmax.f32 %v5125, 0.0
    %v5406 = vmax.f32 %v5128, 0.0
    %v5407 = vmax.f32 %v5133, 0.0
    %v5408 = vmax.f32 %v5136, 0.0
    %v5409 = vmax.f32 %v5141, 0.0
    %v5410 = vmax.f32 %v5144, 0.0
    %v5411 = vmax.f32 %v5149, 0.0
    %v5412 = vmax.f32 %v5152, 0.0
    %v5413 = vmax.f32 %v5157, 0.0
    %v5414 = vmax.f32 %v5160, 0.0
    %v5415 = vmax.f32 %v5165, 0.0
    %v5416 = vmax.f32 %v5168, 0.0
    %v5417 = vmax.f32 %v5173, 0.0
    %v5418 = vmax.f32 %v5176, 0.0
    %v5419 = vmax.f32 %v5181, 0.0
    %v5420 = vmax.f32 %v5184, 0.0
    %v5421 = vmax.f32 %v5189, 0.0
    %v5422 = vmax.f32 %v5192, 0.0
    %v5423 = vmax.f32 %v5197, 0.0
    %v5424 = vmax.f32 %v5200, 0.0
    %v5425 = vmax.f32 %v5205, 0.0
    %v5426 = vmax.f32 %v5208, 0.0
    %v5427 = vmax.f32 %v5213, 0.0
    %v5428 = vmax.f32 %v5216, 0.0
    %v5429 = vmax.f32 %v5221, 0.0
    %v5430 = vmax.f32 %v5224, 0.0
    %v5431 = vmax.f32 %v5229, 0.0
    %v5432 = vmax.f32 %v5232, 0.0
    %v5433 = vmax.f32 %v5237, 0.0
    %v5434 = vmax.f32 %v5240, 0.0
    %v5435 = vmax.f32 %v5245, 0.0
    %v5436 = vmax.f32 %v5248, 0.0
    %v5437 = vmax.f32 %v5253, 0.0
    %v5438 = vmax.f32 %v5256, 0.0
    %v5439 = vmax.f32 %v5261, 0.0
    %v5440 = vmax.f32 %v5264, 0.0
    %v5441 = vmax.f32 %v5269, 0.0
    %v5442 = vmax.f32 %v5272, 0.0
    %v5443 = vmax.f32 %v5277, 0.0
    %v5444 = vmax.f32 %v5280, 0.0
    %v5445 = vmax.f32 %v5285, 0.0
    %v5446 = vmax.f32 %v5288, 0.0
    %v5447 = vmax.f32 %v5293, 0.0
    %v5448 = vmax.f32 %v5296, 0.0
    %v5449 = vmax.f32 %v5301, 0.0
    %v5450 = vmax.f32 %v5304, 0.0
    %v5451 = vmax.f32 %v5309, 0.0
    %v5452 = vmax.f32 %v5312, 0.0
    %v5453 = vmax.f32 %v5317, 0.0
    %v5454 = vmax.f32 %v5320, 0.0
    %v5455 = vmax.f32 %v5325, 0.0
    %v5456 = vmax.f32 %v5328, 0.0
    %v5457 = vpack.c.bf16 %v5332, %v5331
    %v5458 = vpack.c.bf16 %v5334, %v5333
    %v5459 = vpack.c.bf16 %v5336, %v5335
    %v5460 = vpack.c.bf16 %v5338, %v5337
    %v5461 = vpack.c.bf16 %v5340, %v5339
    %v5462 = vpack.c.bf16 %v5342, %v5341
    %v5463 = vpack.c.bf16 %v5344, %v5343
    %v5464 = vpack.c.bf16 %v5346, %v5345
    %v5465 = vpack.c.bf16 %v5348, %v5347
    %v5466 = vpack.c.bf16 %v5350, %v5349
    %v5467 = vpack.c.bf16 %v5352, %v5351
    %v5468 = vpack.c.bf16 %v5354, %v5353
    %v5469 = vpack.c.bf16 %v5356, %v5355
    %v5470 = vpack.c.bf16 %v5358, %v5357
    %v5471 = vpack.c.bf16 %v5360, %v5359
    %v5472 = vpack.c.bf16 %v5362, %v5361
    %v5473 = vpack.c.bf16 %v5364, %v5363
    %v5474 = vpack.c.bf16 %v5366, %v5365
    %v5475 = vpack.c.bf16 %v5368, %v5367
    %v5476 = vpack.c.bf16 %v5370, %v5369
    %v5477 = vpack.c.bf16 %v5372, %v5371
    %v5478 = vpack.c.bf16 %v5374, %v5373
    %v5479 = vpack.c.bf16 %v5376, %v5375
    %v5480 = vpack.c.bf16 %v5378, %v5377
    %v5481 = vpack.c.bf16 %v5380, %v5379
    %v5482 = vpack.c.bf16 %v5382, %v5381
    %v5483 = vpack.c.bf16 %v5384, %v5383
    %v5484 = vpack.c.bf16 %v5386, %v5385
    %v5485 = vpack.c.bf16 %v5388, %v5387
    %v5486 = vpack.c.bf16 %v5390, %v5389
    %v5487 = vpack.c.bf16 %v5392, %v5391
    %v5488 = vpack.c.bf16 %v5394, %v5393
    %v5489 = vpack.c.bf16 %v5396, %v5395
    %v5490 = vpack.c.bf16 %v5398, %v5397
    %v5491 = vpack.c.bf16 %v5400, %v5399
    %v5492 = vpack.c.bf16 %v5402, %v5401
    %v5493 = vpack.c.bf16 %v5404, %v5403
    %v5494 = vpack.c.bf16 %v5406, %v5405
    %v5495 = vpack.c.bf16 %v5408, %v5407
    %v5496 = vpack.c.bf16 %v5410, %v5409
    %v5497 = vpack.c.bf16 %v5412, %v5411
    %v5498 = vpack.c.bf16 %v5414, %v5413
    %v5499 = vpack.c.bf16 %v5416, %v5415
    %v5500 = vpack.c.bf16 %v5418, %v5417
    %v5501 = vpack.c.bf16 %v5420, %v5419
    %v5502 = vpack.c.bf16 %v5422, %v5421
    %v5503 = vpack.c.bf16 %v5424, %v5423
    %v5504 = vpack.c.bf16 %v5426, %v5425
    %v5505 = vpack.c.bf16 %v5428, %v5427
    %v5506 = vpack.c.bf16 %v5430, %v5429
    %v5507 = vpack.c.bf16 %v5432, %v5431
    %v5508 = vpack.c.bf16 %v5434, %v5433
    %v5509 = vpack.c.bf16 %v5436, %v5435
    %v5510 = vpack.c.bf16 %v5438, %v5437
    %v5511 = vpack.c.bf16 %v5440, %v5439
    %v5512 = vpack.c.bf16 %v5442, %v5441
    %v5513 = vpack.c.bf16 %v5444, %v5443
    %v5514 = vpack.c.bf16 %v5446, %v5445
    %v5515 = vpack.c.bf16 %v5448, %v5447
    %v5516 = vpack.c.bf16 %v5450, %v5449
    %v5517 = vpack.c.bf16 %v5452, %v5451
    %v5518 = vpack.c.bf16 %v5454, %v5453
    %v5519 = vpack.c.bf16 %v5456, %v5455
    %v5520 = vld [vmem:[#allocation42] sm:$0xf]
    %v5521 = vld [vmem:[#allocation42 + $0x4] sm:$0xf]
    %v5522 = vld [vmem:[#allocation42 + $0x8] sm:$0xf]
    %v5523 = vld [vmem:[#allocation42 + $0xc] sm:$0xf]
    %v5524 = vld [vmem:[#allocation42 + $0x10] sm:$0xf]
    %v5525 = vld [vmem:[#allocation42 + $0x14] sm:$0xf]
    %v5526 = vld [vmem:[#allocation42 + $0x18] sm:$0xf]
    %v5527 = vld [vmem:[#allocation42 + $0x1c] sm:$0xf]
    %v5528 = vld [vmem:[#allocation42 + $0x20] sm:$0xf]
    %v5529 = vld [vmem:[#allocation42 + $0x24] sm:$0xf]
    %v5530 = vld [vmem:[#allocation42 + $0x28] sm:$0xf]
    %v5531 = vld [vmem:[#allocation42 + $0x2c] sm:$0xf]
    %v5532 = vld [vmem:[#allocation42 + $0x30] sm:$0xf]
    %v5533 = vld [vmem:[#allocation42 + $0x34] sm:$0xf]
    %v5534 = vld [vmem:[#allocation42 + $0x38] sm:$0xf]
    %v5535 = vld [vmem:[#allocation42 + $0x3c] sm:$0xf]
    %v5536 = vld [vmem:[#allocation43] sm:$0x1]
    %v5538 = vlaneseq
    %v5539 = vshrl.u32 %v5538, 7
    %v5540 = vsub.s32 0, %v5539
    %v5541 = vrot.slane %v5536, %v5540
    %v5559 = vunpack.c.l.b16 %v5520
    %v5560 = vunpack.c.l.b16 %v5521
    %v5561 = vunpack.c.l.b16 %v5522
    %v5562 = vunpack.c.l.b16 %v5523
    %v5563 = vunpack.c.l.b16 %v5524
    %v5564 = vunpack.c.l.b16 %v5525
    %v5565 = vunpack.c.l.b16 %v5526
    %v5566 = vunpack.c.l.b16 %v5527
    %v5567 = vunpack.c.l.b16 %v5528
    %v5568 = vunpack.c.l.b16 %v5529
    %v5569 = vunpack.c.l.b16 %v5530
    %v5570 = vunpack.c.l.b16 %v5531
    %v5571 = vunpack.c.l.b16 %v5532
    %v5572 = vunpack.c.l.b16 %v5533
    %v5573 = vunpack.c.l.b16 %v5534
    %v5574 = vunpack.c.l.b16 %v5535
    %v5575 = vpack.c.b16 %v5560, %v5559
    %v5576 = vpack.c.b16 %v5562, %v5561
    %v5577 = vpack.c.b16 %v5564, %v5563
    %v5578 = vpack.c.b16 %v5566, %v5565
    %v5579 = vpack.c.b16 %v5568, %v5567
    %v5580 = vpack.c.b16 %v5570, %v5569
    %v5581 = vpack.c.b16 %v5572, %v5571
    %v5582 = vpack.c.b16 %v5574, %v5573
    %5591 = vmatprep.subr.bf16.mxu0 0
    %5592 = vmatpush1.bf16.msra.mxu0 %v5582
    %5593 = vmatprep.subr.bf16.mxu0 0
    %5594 = vmatpush1.bf16.msra.mxu0 %v5581
    %5595 = vmatprep.subr.bf16.mxu0 0
    %5596 = vmatpush1.bf16.msra.mxu0 %v5580
    %5597 = vmatprep.subr.bf16.mxu0 0
    %5598 = vmatpush1.bf16.msra.mxu0 %v5579
    %5599 = vmatprep.subr.bf16.mxu0 0
    %5600 = vmatpush1.bf16.msra.mxu0 %v5578
    %5601 = vmatprep.subr.bf16.mxu0 0
    %5602 = vmatpush1.bf16.msra.mxu0 %v5577
    %5603 = vmatprep.subr.bf16.mxu0 0
    %5604 = vmatpush1.bf16.msra.mxu0 %v5576
    %5605 = vmatprep.subr.bf16.mxu0 0
    %5606 = vmatpush1.bf16.msra.mxu0 %v5575
    %5607 = vmatprep.subr.bf16.mxu0 0
    %5608 = vmatpush2.bf16.msra.mxu0 0
    %5609 = vmatprep.subr.bf16.mxu0 0
    %5610 = vmatpush2.bf16.msra.mxu0 0
    %5611 = vmatprep.subr.bf16.mxu0 0
    %5612 = vmatpush2.bf16.msra.mxu0 0
    %5613 = vmatprep.subr.bf16.mxu0 0
    %5614 = vmatpush2.bf16.msra.mxu0 0
    %5615 = vmatprep.subr.bf16.mxu0 0
    %5616 = vmatpush2.bf16.msra.mxu0 0
    %5617 = vmatprep.subr.bf16.mxu0 0
    %5618 = vmatpush2.bf16.msra.mxu0 0
    %5619 = vmatprep.subr.bf16.mxu0 0
    %5620 = vmatpush2.bf16.msra.mxu0 0
    %5621 = vmatprep.subr.bf16.mxu0 0
    %5622 = vmatpush2.bf16.msra.mxu0 0
    %5623 = vmatprep.mubr.bf16.mxu0 0
    %5624 = vmatmul.mubr.bf16.gmra.mxu0 %v5457
    %v5625 = vpop.f32.mrf.mxu0
    %v5626 = vadd.f32 %v5541, %v5625
    %v5627 = vpop.f32.mrf.mxu0
    %v5628 = vpop.f32.mrf.mxu0
    %v5629 = vadd.f32 %v5541, %v5628
    %v5630 = vpop.f32.mrf.mxu0
    %5631 = vmatprep.mubr.bf16.mxu0 0
    %5632 = vmatmul.mubr.bf16.gmra.mxu0 %v5458
    %v5633 = vpop.f32.mrf.mxu0
    %v5634 = vadd.f32 %v5541, %v5633
    %v5635 = vpop.f32.mrf.mxu0
    %v5636 = vpop.f32.mrf.mxu0
    %v5637 = vadd.f32 %v5541, %v5636
    %v5638 = vpop.f32.mrf.mxu0
    %5639 = vmatprep.mubr.bf16.mxu0 0
    %5640 = vmatmul.mubr.bf16.gmra.mxu0 %v5459
    %v5641 = vpop.f32.mrf.mxu0
    %v5642 = vadd.f32 %v5541, %v5641
    %v5643 = vpop.f32.mrf.mxu0
    %v5644 = vpop.f32.mrf.mxu0
    %v5645 = vadd.f32 %v5541, %v5644
    %v5646 = vpop.f32.mrf.mxu0
    %5647 = vmatprep.mubr.bf16.mxu0 0
    %5648 = vmatmul.mubr.bf16.gmra.mxu0 %v5460
    %v5649 = vpop.f32.mrf.mxu0
    %v5650 = vadd.f32 %v5541, %v5649
    %v5651 = vpop.f32.mrf.mxu0
    %v5652 = vpop.f32.mrf.mxu0
    %v5653 = vadd.f32 %v5541, %v5652
    %v5654 = vpop.f32.mrf.mxu0
    %5655 = vmatprep.mubr.bf16.mxu0 0
    %5656 = vmatmul.mubr.bf16.gmra.mxu0 %v5461
    %v5657 = vpop.f32.mrf.mxu0
    %v5658 = vadd.f32 %v5541, %v5657
    %v5659 = vpop.f32.mrf.mxu0
    %v5660 = vpop.f32.mrf.mxu0
    %v5661 = vadd.f32 %v5541, %v5660
    %v5662 = vpop.f32.mrf.mxu0
    %5663 = vmatprep.mubr.bf16.mxu0 0
    %5664 = vmatmul.mubr.bf16.gmra.mxu0 %v5462
    %v5665 = vpop.f32.mrf.mxu0
    %v5666 = vadd.f32 %v5541, %v5665
    %v5667 = vpop.f32.mrf.mxu0
    %v5668 = vpop.f32.mrf.mxu0
    %v5669 = vadd.f32 %v5541, %v5668
    %v5670 = vpop.f32.mrf.mxu0
    %5671 = vmatprep.mubr.bf16.mxu0 0
    %5672 = vmatmul.mubr.bf16.gmra.mxu0 %v5463
    %v5673 = vpop.f32.mrf.mxu0
    %v5674 = vadd.f32 %v5541, %v5673
    %v5675 = vpop.f32.mrf.mxu0
    %v5676 = vpop.f32.mrf.mxu0
    %v5677 = vadd.f32 %v5541, %v5676
    %v5678 = vpop.f32.mrf.mxu0
    %5679 = vmatprep.mubr.bf16.mxu0 0
    %5680 = vmatmul.mubr.bf16.gmra.mxu0 %v5464
    %v5681 = vpop.f32.mrf.mxu0
    %v5682 = vadd.f32 %v5541, %v5681
    %v5683 = vpop.f32.mrf.mxu0
    %v5684 = vpop.f32.mrf.mxu0
    %v5685 = vadd.f32 %v5541, %v5684
    %v5686 = vpop.f32.mrf.mxu0
    %5687 = vmatprep.mubr.bf16.mxu0 0
    %5688 = vmatmul.mubr.bf16.gmra.mxu0 %v5465
    %v5689 = vpop.f32.mrf.mxu0
    %v5690 = vadd.f32 %v5541, %v5689
    %v5691 = vpop.f32.mrf.mxu0
    %v5692 = vpop.f32.mrf.mxu0
    %v5693 = vadd.f32 %v5541, %v5692
    %v5694 = vpop.f32.mrf.mxu0
    %5695 = vmatprep.mubr.bf16.mxu0 0
    %5696 = vmatmul.mubr.bf16.gmra.mxu0 %v5466
    %v5697 = vpop.f32.mrf.mxu0
    %v5698 = vadd.f32 %v5541, %v5697
    %v5699 = vpop.f32.mrf.mxu0
    %v5700 = vpop.f32.mrf.mxu0
    %v5701 = vadd.f32 %v5541, %v5700
    %v5702 = vpop.f32.mrf.mxu0
    %5703 = vmatprep.mubr.bf16.mxu0 0
    %5704 = vmatmul.mubr.bf16.gmra.mxu0 %v5467
    %v5705 = vpop.f32.mrf.mxu0
    %v5706 = vadd.f32 %v5541, %v5705
    %v5707 = vpop.f32.mrf.mxu0
    %v5708 = vpop.f32.mrf.mxu0
    %v5709 = vadd.f32 %v5541, %v5708
    %v5710 = vpop.f32.mrf.mxu0
    %5711 = vmatprep.mubr.bf16.mxu0 0
    %5712 = vmatmul.mubr.bf16.gmra.mxu0 %v5468
    %v5713 = vpop.f32.mrf.mxu0
    %v5714 = vadd.f32 %v5541, %v5713
    %v5715 = vpop.f32.mrf.mxu0
    %v5716 = vpop.f32.mrf.mxu0
    %v5717 = vadd.f32 %v5541, %v5716
    %v5718 = vpop.f32.mrf.mxu0
    %5719 = vmatprep.mubr.bf16.mxu0 0
    %5720 = vmatmul.mubr.bf16.gmra.mxu0 %v5469
    %v5721 = vpop.f32.mrf.mxu0
    %v5722 = vadd.f32 %v5541, %v5721
    %v5723 = vpop.f32.mrf.mxu0
    %v5724 = vpop.f32.mrf.mxu0
    %v5725 = vadd.f32 %v5541, %v5724
    %v5726 = vpop.f32.mrf.mxu0
    %5727 = vmatprep.mubr.bf16.mxu0 0
    %5728 = vmatmul.mubr.bf16.gmra.mxu0 %v5470
    %v5729 = vpop.f32.mrf.mxu0
    %v5730 = vadd.f32 %v5541, %v5729
    %v5731 = vpop.f32.mrf.mxu0
    %v5732 = vpop.f32.mrf.mxu0
    %v5733 = vadd.f32 %v5541, %v5732
    %v5734 = vpop.f32.mrf.mxu0
    %5735 = vmatprep.mubr.bf16.mxu0 0
    %5736 = vmatmul.mubr.bf16.gmra.mxu0 %v5471
    %v5737 = vpop.f32.mrf.mxu0
    %v5738 = vadd.f32 %v5541, %v5737
    %v5739 = vpop.f32.mrf.mxu0
    %v5740 = vpop.f32.mrf.mxu0
    %v5741 = vadd.f32 %v5541, %v5740
    %v5742 = vpop.f32.mrf.mxu0
    %5743 = vmatprep.mubr.bf16.mxu0 0
    %5744 = vmatmul.mubr.bf16.gmra.mxu0 %v5472
    %v5745 = vpop.f32.mrf.mxu0
    %v5746 = vadd.f32 %v5541, %v5745
    %v5747 = vpop.f32.mrf.mxu0
    %v5748 = vpop.f32.mrf.mxu0
    %v5749 = vadd.f32 %v5541, %v5748
    %v5750 = vpop.f32.mrf.mxu0
    %5751 = vmatprep.mubr.bf16.mxu0 0
    %5752 = vmatmul.mubr.bf16.gmra.mxu0 %v5473
    %v5753 = vpop.f32.mrf.mxu0
    %v5754 = vadd.f32 %v5541, %v5753
    %v5755 = vpop.f32.mrf.mxu0
    %v5756 = vpop.f32.mrf.mxu0
    %v5757 = vadd.f32 %v5541, %v5756
    %v5758 = vpop.f32.mrf.mxu0
    %5759 = vmatprep.mubr.bf16.mxu0 0
    %5760 = vmatmul.mubr.bf16.gmra.mxu0 %v5474
    %v5761 = vpop.f32.mrf.mxu0
    %v5762 = vadd.f32 %v5541, %v5761
    %v5763 = vpop.f32.mrf.mxu0
    %v5764 = vpop.f32.mrf.mxu0
    %v5765 = vadd.f32 %v5541, %v5764
    %v5766 = vpop.f32.mrf.mxu0
    %5767 = vmatprep.mubr.bf16.mxu0 0
    %5768 = vmatmul.mubr.bf16.gmra.mxu0 %v5475
    %v5769 = vpop.f32.mrf.mxu0
    %v5770 = vadd.f32 %v5541, %v5769
    %v5771 = vpop.f32.mrf.mxu0
    %v5772 = vpop.f32.mrf.mxu0
    %v5773 = vadd.f32 %v5541, %v5772
    %v5774 = vpop.f32.mrf.mxu0
    %5775 = vmatprep.mubr.bf16.mxu0 0
    %5776 = vmatmul.mubr.bf16.gmra.mxu0 %v5476
    %v5777 = vpop.f32.mrf.mxu0
    %v5778 = vadd.f32 %v5541, %v5777
    %v5779 = vpop.f32.mrf.mxu0
    %v5780 = vpop.f32.mrf.mxu0
    %v5781 = vadd.f32 %v5541, %v5780
    %v5782 = vpop.f32.mrf.mxu0
    %5783 = vmatprep.mubr.bf16.mxu0 0
    %5784 = vmatmul.mubr.bf16.gmra.mxu0 %v5477
    %v5785 = vpop.f32.mrf.mxu0
    %v5786 = vadd.f32 %v5541, %v5785
    %v5787 = vpop.f32.mrf.mxu0
    %v5788 = vpop.f32.mrf.mxu0
    %v5789 = vadd.f32 %v5541, %v5788
    %v5790 = vpop.f32.mrf.mxu0
    %5791 = vmatprep.mubr.bf16.mxu0 0
    %5792 = vmatmul.mubr.bf16.gmra.mxu0 %v5478
    %v5793 = vpop.f32.mrf.mxu0
    %v5794 = vadd.f32 %v5541, %v5793
    %v5795 = vpop.f32.mrf.mxu0
    %v5796 = vpop.f32.mrf.mxu0
    %v5797 = vadd.f32 %v5541, %v5796
    %v5798 = vpop.f32.mrf.mxu0
    %5799 = vmatprep.mubr.bf16.mxu0 0
    %5800 = vmatmul.mubr.bf16.gmra.mxu0 %v5479
    %v5801 = vpop.f32.mrf.mxu0
    %v5802 = vadd.f32 %v5541, %v5801
    %v5803 = vpop.f32.mrf.mxu0
    %v5804 = vpop.f32.mrf.mxu0
    %v5805 = vadd.f32 %v5541, %v5804
    %v5806 = vpop.f32.mrf.mxu0
    %5807 = vmatprep.mubr.bf16.mxu0 0
    %5808 = vmatmul.mubr.bf16.gmra.mxu0 %v5480
    %v5809 = vpop.f32.mrf.mxu0
    %v5810 = vadd.f32 %v5541, %v5809
    %v5811 = vpop.f32.mrf.mxu0
    %v5812 = vpop.f32.mrf.mxu0
    %v5813 = vadd.f32 %v5541, %v5812
    %v5814 = vpop.f32.mrf.mxu0
    %5815 = vmatprep.mubr.bf16.mxu0 0
    %5816 = vmatmul.mubr.bf16.gmra.mxu0 %v5481
    %v5817 = vpop.f32.mrf.mxu0
    %v5818 = vadd.f32 %v5541, %v5817
    %v5819 = vpop.f32.mrf.mxu0
    %v5820 = vpop.f32.mrf.mxu0
    %v5821 = vadd.f32 %v5541, %v5820
    %v5822 = vpop.f32.mrf.mxu0
    %5823 = vmatprep.mubr.bf16.mxu0 0
    %5824 = vmatmul.mubr.bf16.gmra.mxu0 %v5482
    %v5825 = vpop.f32.mrf.mxu0
    %v5826 = vadd.f32 %v5541, %v5825
    %v5827 = vpop.f32.mrf.mxu0
    %v5828 = vpop.f32.mrf.mxu0
    %v5829 = vadd.f32 %v5541, %v5828
    %v5830 = vpop.f32.mrf.mxu0
    %5831 = vmatprep.mubr.bf16.mxu0 0
    %5832 = vmatmul.mubr.bf16.gmra.mxu0 %v5483
    %v5833 = vpop.f32.mrf.mxu0
    %v5834 = vadd.f32 %v5541, %v5833
    %v5835 = vpop.f32.mrf.mxu0
    %v5836 = vpop.f32.mrf.mxu0
    %v5837 = vadd.f32 %v5541, %v5836
    %v5838 = vpop.f32.mrf.mxu0
    %5839 = vmatprep.mubr.bf16.mxu0 0
    %5840 = vmatmul.mubr.bf16.gmra.mxu0 %v5484
    %v5841 = vpop.f32.mrf.mxu0
    %v5842 = vadd.f32 %v5541, %v5841
    %v5843 = vpop.f32.mrf.mxu0
    %v5844 = vpop.f32.mrf.mxu0
    %v5845 = vadd.f32 %v5541, %v5844
    %v5846 = vpop.f32.mrf.mxu0
    %5847 = vmatprep.mubr.bf16.mxu0 0
    %5848 = vmatmul.mubr.bf16.gmra.mxu0 %v5485
    %v5849 = vpop.f32.mrf.mxu0
    %v5850 = vadd.f32 %v5541, %v5849
    %v5851 = vpop.f32.mrf.mxu0
    %v5852 = vpop.f32.mrf.mxu0
    %v5853 = vadd.f32 %v5541, %v5852
    %v5854 = vpop.f32.mrf.mxu0
    %5855 = vmatprep.mubr.bf16.mxu0 0
    %5856 = vmatmul.mubr.bf16.gmra.mxu0 %v5486
    %v5857 = vpop.f32.mrf.mxu0
    %v5858 = vadd.f32 %v5541, %v5857
    %v5859 = vpop.f32.mrf.mxu0
    %v5860 = vpop.f32.mrf.mxu0
    %v5861 = vadd.f32 %v5541, %v5860
    %v5862 = vpop.f32.mrf.mxu0
    %5863 = vmatprep.mubr.bf16.mxu0 0
    %5864 = vmatmul.mubr.bf16.gmra.mxu0 %v5487
    %v5865 = vpop.f32.mrf.mxu0
    %v5866 = vadd.f32 %v5541, %v5865
    %v5867 = vpop.f32.mrf.mxu0
    %v5868 = vpop.f32.mrf.mxu0
    %v5869 = vadd.f32 %v5541, %v5868
    %v5870 = vpop.f32.mrf.mxu0
    %5871 = vmatprep.mubr.bf16.mxu0 0
    %5872 = vmatmul.mubr.bf16.gmra.mxu0 %v5488
    %v5873 = vpop.f32.mrf.mxu0
    %v5874 = vadd.f32 %v5541, %v5873
    %v5875 = vpop.f32.mrf.mxu0
    %v5876 = vpop.f32.mrf.mxu0
    %v5877 = vadd.f32 %v5541, %v5876
    %v5878 = vpop.f32.mrf.mxu0
    %5879 = vmatprep.mubr.bf16.mxu0 0
    %5880 = vmatmul.mubr.bf16.gmra.mxu0 %v5489
    %v5881 = vpop.f32.mrf.mxu0
    %v5882 = vadd.f32 %v5541, %v5881
    %v5883 = vpop.f32.mrf.mxu0
    %v5884 = vpop.f32.mrf.mxu0
    %v5885 = vadd.f32 %v5541, %v5884
    %v5886 = vpop.f32.mrf.mxu0
    %5887 = vmatprep.mubr.bf16.mxu0 0
    %5888 = vmatmul.mubr.bf16.gmra.mxu0 %v5490
    %v5889 = vpop.f32.mrf.mxu0
    %v5890 = vadd.f32 %v5541, %v5889
    %v5891 = vpop.f32.mrf.mxu0
    %v5892 = vpop.f32.mrf.mxu0
    %v5893 = vadd.f32 %v5541, %v5892
    %v5894 = vpop.f32.mrf.mxu0
    %5895 = vmatprep.mubr.bf16.mxu0 0
    %5896 = vmatmul.mubr.bf16.gmra.mxu0 %v5491
    %v5897 = vpop.f32.mrf.mxu0
    %v5898 = vadd.f32 %v5541, %v5897
    %v5899 = vpop.f32.mrf.mxu0
    %v5900 = vpop.f32.mrf.mxu0
    %v5901 = vadd.f32 %v5541, %v5900
    %v5902 = vpop.f32.mrf.mxu0
    %5903 = vmatprep.mubr.bf16.mxu0 0
    %5904 = vmatmul.mubr.bf16.gmra.mxu0 %v5492
    %v5905 = vpop.f32.mrf.mxu0
    %v5906 = vadd.f32 %v5541, %v5905
    %v5907 = vpop.f32.mrf.mxu0
    %v5908 = vpop.f32.mrf.mxu0
    %v5909 = vadd.f32 %v5541, %v5908
    %v5910 = vpop.f32.mrf.mxu0
    %5911 = vmatprep.mubr.bf16.mxu0 0
    %5912 = vmatmul.mubr.bf16.gmra.mxu0 %v5493
    %v5913 = vpop.f32.mrf.mxu0
    %v5914 = vadd.f32 %v5541, %v5913
    %v5915 = vpop.f32.mrf.mxu0
    %v5916 = vpop.f32.mrf.mxu0
    %v5917 = vadd.f32 %v5541, %v5916
    %v5918 = vpop.f32.mrf.mxu0
    %5919 = vmatprep.mubr.bf16.mxu0 0
    %5920 = vmatmul.mubr.bf16.gmra.mxu0 %v5494
    %v5921 = vpop.f32.mrf.mxu0
    %v5922 = vadd.f32 %v5541, %v5921
    %v5923 = vpop.f32.mrf.mxu0
    %v5924 = vpop.f32.mrf.mxu0
    %v5925 = vadd.f32 %v5541, %v5924
    %v5926 = vpop.f32.mrf.mxu0
    %5927 = vmatprep.mubr.bf16.mxu0 0
    %5928 = vmatmul.mubr.bf16.gmra.mxu0 %v5495
    %v5929 = vpop.f32.mrf.mxu0
    %v5930 = vadd.f32 %v5541, %v5929
    %v5931 = vpop.f32.mrf.mxu0
    %v5932 = vpop.f32.mrf.mxu0
    %v5933 = vadd.f32 %v5541, %v5932
    %v5934 = vpop.f32.mrf.mxu0
    %5935 = vmatprep.mubr.bf16.mxu0 0
    %5936 = vmatmul.mubr.bf16.gmra.mxu0 %v5496
    %v5937 = vpop.f32.mrf.mxu0
    %v5938 = vadd.f32 %v5541, %v5937
    %v5939 = vpop.f32.mrf.mxu0
    %v5940 = vpop.f32.mrf.mxu0
    %v5941 = vadd.f32 %v5541, %v5940
    %v5942 = vpop.f32.mrf.mxu0
    %5943 = vmatprep.mubr.bf16.mxu0 0
    %5944 = vmatmul.mubr.bf16.gmra.mxu0 %v5497
    %v5945 = vpop.f32.mrf.mxu0
    %v5946 = vadd.f32 %v5541, %v5945
    %v5947 = vpop.f32.mrf.mxu0
    %v5948 = vpop.f32.mrf.mxu0
    %v5949 = vadd.f32 %v5541, %v5948
    %v5950 = vpop.f32.mrf.mxu0
    %5951 = vmatprep.mubr.bf16.mxu0 0
    %5952 = vmatmul.mubr.bf16.gmra.mxu0 %v5498
    %v5953 = vpop.f32.mrf.mxu0
    %v5954 = vadd.f32 %v5541, %v5953
    %v5955 = vpop.f32.mrf.mxu0
    %v5956 = vpop.f32.mrf.mxu0
    %v5957 = vadd.f32 %v5541, %v5956
    %v5958 = vpop.f32.mrf.mxu0
    %5959 = vmatprep.mubr.bf16.mxu0 0
    %5960 = vmatmul.mubr.bf16.gmra.mxu0 %v5499
    %v5961 = vpop.f32.mrf.mxu0
    %v5962 = vadd.f32 %v5541, %v5961
    %v5963 = vpop.f32.mrf.mxu0
    %v5964 = vpop.f32.mrf.mxu0
    %v5965 = vadd.f32 %v5541, %v5964
    %v5966 = vpop.f32.mrf.mxu0
    %5967 = vmatprep.mubr.bf16.mxu0 0
    %5968 = vmatmul.mubr.bf16.gmra.mxu0 %v5500
    %v5969 = vpop.f32.mrf.mxu0
    %v5970 = vadd.f32 %v5541, %v5969
    %v5971 = vpop.f32.mrf.mxu0
    %v5972 = vpop.f32.mrf.mxu0
    %v5973 = vadd.f32 %v5541, %v5972
    %v5974 = vpop.f32.mrf.mxu0
    %5975 = vmatprep.mubr.bf16.mxu0 0
    %5976 = vmatmul.mubr.bf16.gmra.mxu0 %v5501
    %v5977 = vpop.f32.mrf.mxu0
    %v5978 = vadd.f32 %v5541, %v5977
    %v5979 = vpop.f32.mrf.mxu0
    %v5980 = vpop.f32.mrf.mxu0
    %v5981 = vadd.f32 %v5541, %v5980
    %v5982 = vpop.f32.mrf.mxu0
    %5983 = vmatprep.mubr.bf16.mxu0 0
    %5984 = vmatmul.mubr.bf16.gmra.mxu0 %v5502
    %v5985 = vpop.f32.mrf.mxu0
    %v5986 = vadd.f32 %v5541, %v5985
    %v5987 = vpop.f32.mrf.mxu0
    %v5988 = vpop.f32.mrf.mxu0
    %v5989 = vadd.f32 %v5541, %v5988
    %v5990 = vpop.f32.mrf.mxu0
    %5991 = vmatprep.mubr.bf16.mxu0 0
    %5992 = vmatmul.mubr.bf16.gmra.mxu0 %v5503
    %v5993 = vpop.f32.mrf.mxu0
    %v5994 = vadd.f32 %v5541, %v5993
    %v5995 = vpop.f32.mrf.mxu0
    %v5996 = vpop.f32.mrf.mxu0
    %v5997 = vadd.f32 %v5541, %v5996
    %v5998 = vpop.f32.mrf.mxu0
    %5999 = vmatprep.mubr.bf16.mxu0 0
    %6000 = vmatmul.mubr.bf16.gmra.mxu0 %v5504
    %v6001 = vpop.f32.mrf.mxu0
    %v6002 = vadd.f32 %v5541, %v6001
    %v6003 = vpop.f32.mrf.mxu0
    %v6004 = vpop.f32.mrf.mxu0
    %v6005 = vadd.f32 %v5541, %v6004
    %v6006 = vpop.f32.mrf.mxu0
    %6007 = vmatprep.mubr.bf16.mxu0 0
    %6008 = vmatmul.mubr.bf16.gmra.mxu0 %v5505
    %v6009 = vpop.f32.mrf.mxu0
    %v6010 = vadd.f32 %v5541, %v6009
    %v6011 = vpop.f32.mrf.mxu0
    %v6012 = vpop.f32.mrf.mxu0
    %v6013 = vadd.f32 %v5541, %v6012
    %v6014 = vpop.f32.mrf.mxu0
    %6015 = vmatprep.mubr.bf16.mxu0 0
    %6016 = vmatmul.mubr.bf16.gmra.mxu0 %v5506
    %v6017 = vpop.f32.mrf.mxu0
    %v6018 = vadd.f32 %v5541, %v6017
    %v6019 = vpop.f32.mrf.mxu0
    %v6020 = vpop.f32.mrf.mxu0
    %v6021 = vadd.f32 %v5541, %v6020
    %v6022 = vpop.f32.mrf.mxu0
    %6023 = vmatprep.mubr.bf16.mxu0 0
    %6024 = vmatmul.mubr.bf16.gmra.mxu0 %v5507
    %v6025 = vpop.f32.mrf.mxu0
    %v6026 = vadd.f32 %v5541, %v6025
    %v6027 = vpop.f32.mrf.mxu0
    %v6028 = vpop.f32.mrf.mxu0
    %v6029 = vadd.f32 %v5541, %v6028
    %v6030 = vpop.f32.mrf.mxu0
    %6031 = vmatprep.mubr.bf16.mxu0 0
    %6032 = vmatmul.mubr.bf16.gmra.mxu0 %v5508
    %v6033 = vpop.f32.mrf.mxu0
    %v6034 = vadd.f32 %v5541, %v6033
    %v6035 = vpop.f32.mrf.mxu0
    %v6036 = vpop.f32.mrf.mxu0
    %v6037 = vadd.f32 %v5541, %v6036
    %v6038 = vpop.f32.mrf.mxu0
    %6039 = vmatprep.mubr.bf16.mxu0 0
    %6040 = vmatmul.mubr.bf16.gmra.mxu0 %v5509
    %v6041 = vpop.f32.mrf.mxu0
    %v6042 = vadd.f32 %v5541, %v6041
    %v6043 = vpop.f32.mrf.mxu0
    %v6044 = vpop.f32.mrf.mxu0
    %v6045 = vadd.f32 %v5541, %v6044
    %v6046 = vpop.f32.mrf.mxu0
    %6047 = vmatprep.mubr.bf16.mxu0 0
    %6048 = vmatmul.mubr.bf16.gmra.mxu0 %v5510
    %v6049 = vpop.f32.mrf.mxu0
    %v6050 = vadd.f32 %v5541, %v6049
    %v6051 = vpop.f32.mrf.mxu0
    %v6052 = vpop.f32.mrf.mxu0
    %v6053 = vadd.f32 %v5541, %v6052
    %v6054 = vpop.f32.mrf.mxu0
    %6055 = vmatprep.mubr.bf16.mxu0 0
    %6056 = vmatmul.mubr.bf16.gmra.mxu0 %v5511
    %v6057 = vpop.f32.mrf.mxu0
    %v6058 = vadd.f32 %v5541, %v6057
    %v6059 = vpop.f32.mrf.mxu0
    %v6060 = vpop.f32.mrf.mxu0
    %v6061 = vadd.f32 %v5541, %v6060
    %v6062 = vpop.f32.mrf.mxu0
    %6063 = vmatprep.mubr.bf16.mxu0 0
    %6064 = vmatmul.mubr.bf16.gmra.mxu0 %v5512
    %v6065 = vpop.f32.mrf.mxu0
    %v6066 = vadd.f32 %v5541, %v6065
    %v6067 = vpop.f32.mrf.mxu0
    %v6068 = vpop.f32.mrf.mxu0
    %v6069 = vadd.f32 %v5541, %v6068
    %v6070 = vpop.f32.mrf.mxu0
    %6071 = vmatprep.mubr.bf16.mxu0 0
    %6072 = vmatmul.mubr.bf16.gmra.mxu0 %v5513
    %v6073 = vpop.f32.mrf.mxu0
    %v6074 = vadd.f32 %v5541, %v6073
    %v6075 = vpop.f32.mrf.mxu0
    %v6076 = vpop.f32.mrf.mxu0
    %v6077 = vadd.f32 %v5541, %v6076
    %v6078 = vpop.f32.mrf.mxu0
    %6079 = vmatprep.mubr.bf16.mxu0 0
    %6080 = vmatmul.mubr.bf16.gmra.mxu0 %v5514
    %v6081 = vpop.f32.mrf.mxu0
    %v6082 = vadd.f32 %v5541, %v6081
    %v6083 = vpop.f32.mrf.mxu0
    %v6084 = vpop.f32.mrf.mxu0
    %v6085 = vadd.f32 %v5541, %v6084
    %v6086 = vpop.f32.mrf.mxu0
    %6087 = vmatprep.mubr.bf16.mxu0 0
    %6088 = vmatmul.mubr.bf16.gmra.mxu0 %v5515
    %v6089 = vpop.f32.mrf.mxu0
    %v6090 = vadd.f32 %v5541, %v6089
    %v6091 = vpop.f32.mrf.mxu0
    %v6092 = vpop.f32.mrf.mxu0
    %v6093 = vadd.f32 %v5541, %v6092
    %v6094 = vpop.f32.mrf.mxu0
    %6095 = vmatprep.mubr.bf16.mxu0 0
    %6096 = vmatmul.mubr.bf16.gmra.mxu0 %v5516
    %v6097 = vpop.f32.mrf.mxu0
    %v6098 = vadd.f32 %v5541, %v6097
    %v6099 = vpop.f32.mrf.mxu0
    %v6100 = vpop.f32.mrf.mxu0
    %v6101 = vadd.f32 %v5541, %v6100
    %v6102 = vpop.f32.mrf.mxu0
    %6103 = vmatprep.mubr.bf16.mxu0 0
    %6104 = vmatmul.mubr.bf16.gmra.mxu0 %v5517
    %v6105 = vpop.f32.mrf.mxu0
    %v6106 = vadd.f32 %v5541, %v6105
    %v6107 = vpop.f32.mrf.mxu0
    %v6108 = vpop.f32.mrf.mxu0
    %v6109 = vadd.f32 %v5541, %v6108
    %v6110 = vpop.f32.mrf.mxu0
    %6111 = vmatprep.mubr.bf16.mxu0 0
    %6112 = vmatmul.mubr.bf16.gmra.mxu0 %v5518
    %v6113 = vpop.f32.mrf.mxu0
    %v6114 = vadd.f32 %v5541, %v6113
    %v6115 = vpop.f32.mrf.mxu0
    %v6116 = vpop.f32.mrf.mxu0
    %v6117 = vadd.f32 %v5541, %v6116
    %v6118 = vpop.f32.mrf.mxu0
    %6119 = vmatprep.mubr.bf16.mxu0 0
    %6120 = vmatmul.mubr.bf16.gmra.mxu0 %v5519
    %v6121 = vpop.f32.mrf.mxu0
    %v6122 = vadd.f32 %v5541, %v6121
    %v6123 = vpop.f32.mrf.mxu0
    %v6124 = vpop.f32.mrf.mxu0
    %v6125 = vadd.f32 %v5541, %v6124
    %v6126 = vpop.f32.mrf.mxu0
    %6127 = vdwg.mxu0
    %v6128 = vsub.f32 0.0, %v5626
    %v6129 = vsub.f32 0.0, %v5629
    %v6130 = vsub.f32 0.0, %v5634
    %v6131 = vsub.f32 0.0, %v5637
    %v6132 = vsub.f32 0.0, %v5642
    %v6133 = vsub.f32 0.0, %v5645
    %v6134 = vsub.f32 0.0, %v5650
    %v6135 = vsub.f32 0.0, %v5653
    %v6136 = vsub.f32 0.0, %v5658
    %v6137 = vsub.f32 0.0, %v5661
    %v6138 = vsub.f32 0.0, %v5666
    %v6139 = vsub.f32 0.0, %v5669
    %v6140 = vsub.f32 0.0, %v5674
    %v6141 = vsub.f32 0.0, %v5677
    %v6142 = vsub.f32 0.0, %v5682
    %v6143 = vsub.f32 0.0, %v5685
    %v6144 = vsub.f32 0.0, %v5690
    %v6145 = vsub.f32 0.0, %v5693
    %v6146 = vsub.f32 0.0, %v5698
    %v6147 = vsub.f32 0.0, %v5701
    %v6148 = vsub.f32 0.0, %v5706
    %v6149 = vsub.f32 0.0, %v5709
    %v6150 = vsub.f32 0.0, %v5714
    %v6151 = vsub.f32 0.0, %v5717
    %v6152 = vsub.f32 0.0, %v5722
    %v6153 = vsub.f32 0.0, %v5725
    %v6154 = vsub.f32 0.0, %v5730
    %v6155 = vsub.f32 0.0, %v5733
    %v6156 = vsub.f32 0.0, %v5738
    %v6157 = vsub.f32 0.0, %v5741
    %v6158 = vsub.f32 0.0, %v5746
    %v6159 = vsub.f32 0.0, %v5749
    %v6160 = vsub.f32 0.0, %v5754
    %v6161 = vsub.f32 0.0, %v5757
    %v6162 = vsub.f32 0.0, %v5762
    %v6163 = vsub.f32 0.0, %v5765
    %v6164 = vsub.f32 0.0, %v5770
    %v6165 = vsub.f32 0.0, %v5773
    %v6166 = vsub.f32 0.0, %v5778
    %v6167 = vsub.f32 0.0, %v5781
    %v6168 = vsub.f32 0.0, %v5786
    %v6169 = vsub.f32 0.0, %v5789
    %v6170 = vsub.f32 0.0, %v5794
    %v6171 = vsub.f32 0.0, %v5797
    %v6172 = vsub.f32 0.0, %v5802
    %v6173 = vsub.f32 0.0, %v5805
    %v6174 = vsub.f32 0.0, %v5810
    %v6175 = vsub.f32 0.0, %v5813
    %v6176 = vsub.f32 0.0, %v5818
    %v6177 = vsub.f32 0.0, %v5821
    %v6178 = vsub.f32 0.0, %v5826
    %v6179 = vsub.f32 0.0, %v5829
    %v6180 = vsub.f32 0.0, %v5834
    %v6181 = vsub.f32 0.0, %v5837
    %v6182 = vsub.f32 0.0, %v5842
    %v6183 = vsub.f32 0.0, %v5845
    %v6184 = vsub.f32 0.0, %v5850
    %v6185 = vsub.f32 0.0, %v5853
    %v6186 = vsub.f32 0.0, %v5858
    %v6187 = vsub.f32 0.0, %v5861
    %v6188 = vsub.f32 0.0, %v5866
    %v6189 = vsub.f32 0.0, %v5869
    %v6190 = vsub.f32 0.0, %v5874
    %v6191 = vsub.f32 0.0, %v5877
    %v6192 = vsub.f32 0.0, %v5882
    %v6193 = vsub.f32 0.0, %v5885
    %v6194 = vsub.f32 0.0, %v5890
    %v6195 = vsub.f32 0.0, %v5893
    %v6196 = vsub.f32 0.0, %v5898
    %v6197 = vsub.f32 0.0, %v5901
    %v6198 = vsub.f32 0.0, %v5906
    %v6199 = vsub.f32 0.0, %v5909
    %v6200 = vsub.f32 0.0, %v5914
    %v6201 = vsub.f32 0.0, %v5917
    %v6202 = vsub.f32 0.0, %v5922
    %v6203 = vsub.f32 0.0, %v5925
    %v6204 = vsub.f32 0.0, %v5930
    %v6205 = vsub.f32 0.0, %v5933
    %v6206 = vsub.f32 0.0, %v5938
    %v6207 = vsub.f32 0.0, %v5941
    %v6208 = vsub.f32 0.0, %v5946
    %v6209 = vsub.f32 0.0, %v5949
    %v6210 = vsub.f32 0.0, %v5954
    %v6211 = vsub.f32 0.0, %v5957
    %v6212 = vsub.f32 0.0, %v5962
    %v6213 = vsub.f32 0.0, %v5965
    %v6214 = vsub.f32 0.0, %v5970
    %v6215 = vsub.f32 0.0, %v5973
    %v6216 = vsub.f32 0.0, %v5978
    %v6217 = vsub.f32 0.0, %v5981
    %v6218 = vsub.f32 0.0, %v5986
    %v6219 = vsub.f32 0.0, %v5989
    %v6220 = vsub.f32 0.0, %v5994
    %v6221 = vsub.f32 0.0, %v5997
    %v6222 = vsub.f32 0.0, %v6002
    %v6223 = vsub.f32 0.0, %v6005
    %v6224 = vsub.f32 0.0, %v6010
    %v6225 = vsub.f32 0.0, %v6013
    %v6226 = vsub.f32 0.0, %v6018
    %v6227 = vsub.f32 0.0, %v6021
    %v6228 = vsub.f32 0.0, %v6026
    %v6229 = vsub.f32 0.0, %v6029
    %v6230 = vsub.f32 0.0, %v6034
    %v6231 = vsub.f32 0.0, %v6037
    %v6232 = vsub.f32 0.0, %v6042
    %v6233 = vsub.f32 0.0, %v6045
    %v6234 = vsub.f32 0.0, %v6050
    %v6235 = vsub.f32 0.0, %v6053
    %v6236 = vsub.f32 0.0, %v6058
    %v6237 = vsub.f32 0.0, %v6061
    %v6238 = vsub.f32 0.0, %v6066
    %v6239 = vsub.f32 0.0, %v6069
    %v6240 = vsub.f32 0.0, %v6074
    %v6241 = vsub.f32 0.0, %v6077
    %v6242 = vsub.f32 0.0, %v6082
    %v6243 = vsub.f32 0.0, %v6085
    %v6244 = vsub.f32 0.0, %v6090
    %v6245 = vsub.f32 0.0, %v6093
    %v6246 = vsub.f32 0.0, %v6098
    %v6247 = vsub.f32 0.0, %v6101
    %v6248 = vsub.f32 0.0, %v6106
    %v6249 = vsub.f32 0.0, %v6109
    %v6250 = vsub.f32 0.0, %v6114
    %v6251 = vsub.f32 0.0, %v6117
    %v6252 = vsub.f32 0.0, %v6122
    %v6253 = vsub.f32 0.0, %v6125
    %v6254 = vmul.f32 %v6128, 1.442695
    %v6255 = vpow.pop %v6254
    %v6256 = vmul.f32 %v6129, 1.442695
    %v6257 = vpow.pop %v6256
    %v6258 = vmul.f32 %v6130, 1.442695
    %v6259 = vpow.pop %v6258
    %v6260 = vmul.f32 %v6131, 1.442695
    %v6261 = vpow.pop %v6260
    %v6262 = vmul.f32 %v6132, 1.442695
    %v6263 = vpow.pop %v6262
    %v6264 = vmul.f32 %v6133, 1.442695
    %v6265 = vpow.pop %v6264
    %v6266 = vmul.f32 %v6134, 1.442695
    %v6267 = vpow.pop %v6266
    %v6268 = vmul.f32 %v6135, 1.442695
    %v6269 = vpow.pop %v6268
    %v6270 = vmul.f32 %v6136, 1.442695
    %v6271 = vpow.pop %v6270
    %v6272 = vmul.f32 %v6137, 1.442695
    %v6273 = vpow.pop %v6272
    %v6274 = vmul.f32 %v6138, 1.442695
    %v6275 = vpow.pop %v6274
    %v6276 = vmul.f32 %v6139, 1.442695
    %v6277 = vpow.pop %v6276
    %v6278 = vmul.f32 %v6140, 1.442695
    %v6279 = vpow.pop %v6278
    %v6280 = vmul.f32 %v6141, 1.442695
    %v6281 = vpow.pop %v6280
    %v6282 = vmul.f32 %v6142, 1.442695
    %v6283 = vpow.pop %v6282
    %v6284 = vmul.f32 %v6143, 1.442695
    %v6285 = vpow.pop %v6284
    %v6286 = vmul.f32 %v6144, 1.442695
    %v6287 = vpow.pop %v6286
    %v6288 = vmul.f32 %v6145, 1.442695
    %v6289 = vpow.pop %v6288
    %v6290 = vmul.f32 %v6146, 1.442695
    %v6291 = vpow.pop %v6290
    %v6292 = vmul.f32 %v6147, 1.442695
    %v6293 = vpow.pop %v6292
    %v6294 = vmul.f32 %v6148, 1.442695
    %v6295 = vpow.pop %v6294
    %v6296 = vmul.f32 %v6149, 1.442695
    %v6297 = vpow.pop %v6296
    %v6298 = vmul.f32 %v6150, 1.442695
    %v6299 = vpow.pop %v6298
    %v6300 = vmul.f32 %v6151, 1.442695
    %v6301 = vpow.pop %v6300
    %v6302 = vmul.f32 %v6152, 1.442695
    %v6303 = vpow.pop %v6302
    %v6304 = vmul.f32 %v6153, 1.442695
    %v6305 = vpow.pop %v6304
    %v6306 = vmul.f32 %v6154, 1.442695
    %v6307 = vpow.pop %v6306
    %v6308 = vmul.f32 %v6155, 1.442695
    %v6309 = vpow.pop %v6308
    %v6310 = vmul.f32 %v6156, 1.442695
    %v6311 = vpow.pop %v6310
    %v6312 = vmul.f32 %v6157, 1.442695
    %v6313 = vpow.pop %v6312
    %v6314 = vmul.f32 %v6158, 1.442695
    %v6315 = vpow.pop %v6314
    %v6316 = vmul.f32 %v6159, 1.442695
    %v6317 = vpow.pop %v6316
    %v6318 = vmul.f32 %v6160, 1.442695
    %v6319 = vpow.pop %v6318
    %v6320 = vmul.f32 %v6161, 1.442695
    %v6321 = vpow.pop %v6320
    %v6322 = vmul.f32 %v6162, 1.442695
    %v6323 = vpow.pop %v6322
    %v6324 = vmul.f32 %v6163, 1.442695
    %v6325 = vpow.pop %v6324
    %v6326 = vmul.f32 %v6164, 1.442695
    %v6327 = vpow.pop %v6326
    %v6328 = vmul.f32 %v6165, 1.442695
    %v6329 = vpow.pop %v6328
    %v6330 = vmul.f32 %v6166, 1.442695
    %v6331 = vpow.pop %v6330
    %v6332 = vmul.f32 %v6167, 1.442695
    %v6333 = vpow.pop %v6332
    %v6334 = vmul.f32 %v6168, 1.442695
    %v6335 = vpow.pop %v6334
    %v6336 = vmul.f32 %v6169, 1.442695
    %v6337 = vpow.pop %v6336
    %v6338 = vmul.f32 %v6170, 1.442695
    %v6339 = vpow.pop %v6338
    %v6340 = vmul.f32 %v6171, 1.442695
    %v6341 = vpow.pop %v6340
    %v6342 = vmul.f32 %v6172, 1.442695
    %v6343 = vpow.pop %v6342
    %v6344 = vmul.f32 %v6173, 1.442695
    %v6345 = vpow.pop %v6344
    %v6346 = vmul.f32 %v6174, 1.442695
    %v6347 = vpow.pop %v6346
    %v6348 = vmul.f32 %v6175, 1.442695
    %v6349 = vpow.pop %v6348
    %v6350 = vmul.f32 %v6176, 1.442695
    %v6351 = vpow.pop %v6350
    %v6352 = vmul.f32 %v6177, 1.442695
    %v6353 = vpow.pop %v6352
    %v6354 = vmul.f32 %v6178, 1.442695
    %v6355 = vpow.pop %v6354
    %v6356 = vmul.f32 %v6179, 1.442695
    %v6357 = vpow.pop %v6356
    %v6358 = vmul.f32 %v6180, 1.442695
    %v6359 = vpow.pop %v6358
    %v6360 = vmul.f32 %v6181, 1.442695
    %v6361 = vpow.pop %v6360
    %v6362 = vmul.f32 %v6182, 1.442695
    %v6363 = vpow.pop %v6362
    %v6364 = vmul.f32 %v6183, 1.442695
    %v6365 = vpow.pop %v6364
    %v6366 = vmul.f32 %v6184, 1.442695
    %v6367 = vpow.pop %v6366
    %v6368 = vmul.f32 %v6185, 1.442695
    %v6369 = vpow.pop %v6368
    %v6370 = vmul.f32 %v6186, 1.442695
    %v6371 = vpow.pop %v6370
    %v6372 = vmul.f32 %v6187, 1.442695
    %v6373 = vpow.pop %v6372
    %v6374 = vmul.f32 %v6188, 1.442695
    %v6375 = vpow.pop %v6374
    %v6376 = vmul.f32 %v6189, 1.442695
    %v6377 = vpow.pop %v6376
    %v6378 = vmul.f32 %v6190, 1.442695
    %v6379 = vpow.pop %v6378
    %v6380 = vmul.f32 %v6191, 1.442695
    %v6381 = vpow.pop %v6380
    %v6382 = vmul.f32 %v6192, 1.442695
    %v6383 = vpow.pop %v6382
    %v6384 = vmul.f32 %v6193, 1.442695
    %v6385 = vpow.pop %v6384
    %v6386 = vmul.f32 %v6194, 1.442695
    %v6387 = vpow.pop %v6386
    %v6388 = vmul.f32 %v6195, 1.442695
    %v6389 = vpow.pop %v6388
    %v6390 = vmul.f32 %v6196, 1.442695
    %v6391 = vpow.pop %v6390
    %v6392 = vmul.f32 %v6197, 1.442695
    %v6393 = vpow.pop %v6392
    %v6394 = vmul.f32 %v6198, 1.442695
    %v6395 = vpow.pop %v6394
    %v6396 = vmul.f32 %v6199, 1.442695
    %v6397 = vpow.pop %v6396
    %v6398 = vmul.f32 %v6200, 1.442695
    %v6399 = vpow.pop %v6398
    %v6400 = vmul.f32 %v6201, 1.442695
    %v6401 = vpow.pop %v6400
    %v6402 = vmul.f32 %v6202, 1.442695
    %v6403 = vpow.pop %v6402
    %v6404 = vmul.f32 %v6203, 1.442695
    %v6405 = vpow.pop %v6404
    %v6406 = vmul.f32 %v6204, 1.442695
    %v6407 = vpow.pop %v6406
    %v6408 = vmul.f32 %v6205, 1.442695
    %v6409 = vpow.pop %v6408
    %v6410 = vmul.f32 %v6206, 1.442695
    %v6411 = vpow.pop %v6410
    %v6412 = vmul.f32 %v6207, 1.442695
    %v6413 = vpow.pop %v6412
    %v6414 = vmul.f32 %v6208, 1.442695
    %v6415 = vpow.pop %v6414
    %v6416 = vmul.f32 %v6209, 1.442695
    %v6417 = vpow.pop %v6416
    %v6418 = vmul.f32 %v6210, 1.442695
    %v6419 = vpow.pop %v6418
    %v6420 = vmul.f32 %v6211, 1.442695
    %v6421 = vpow.pop %v6420
    %v6422 = vmul.f32 %v6212, 1.442695
    %v6423 = vpow.pop %v6422
    %v6424 = vmul.f32 %v6213, 1.442695
    %v6425 = vpow.pop %v6424
    %v6426 = vmul.f32 %v6214, 1.442695
    %v6427 = vpow.pop %v6426
    %v6428 = vmul.f32 %v6215, 1.442695
    %v6429 = vpow.pop %v6428
    %v6430 = vmul.f32 %v6216, 1.442695
    %v6431 = vpow.pop %v6430
    %v6432 = vmul.f32 %v6217, 1.442695
    %v6433 = vpow.pop %v6432
    %v6434 = vmul.f32 %v6218, 1.442695
    %v6435 = vpow.pop %v6434
    %v6436 = vmul.f32 %v6219, 1.442695
    %v6437 = vpow.pop %v6436
    %v6438 = vmul.f32 %v6220, 1.442695
    %v6439 = vpow.pop %v6438
    %v6440 = vmul.f32 %v6221, 1.442695
    %v6441 = vpow.pop %v6440
    %v6442 = vmul.f32 %v6222, 1.442695
    %v6443 = vpow.pop %v6442
    %v6444 = vmul.f32 %v6223, 1.442695
    %v6445 = vpow.pop %v6444
    %v6446 = vmul.f32 %v6224, 1.442695
    %v6447 = vpow.pop %v6446
    %v6448 = vmul.f32 %v6225, 1.442695
    %v6449 = vpow.pop %v6448
    %v6450 = vmul.f32 %v6226, 1.442695
    %v6451 = vpow.pop %v6450
    %v6452 = vmul.f32 %v6227, 1.442695
    %v6453 = vpow.pop %v6452
    %v6454 = vmul.f32 %v6228, 1.442695
    %v6455 = vpow.pop %v6454
    %v6456 = vmul.f32 %v6229, 1.442695
    %v6457 = vpow.pop %v6456
    %v6458 = vmul.f32 %v6230, 1.442695
    %v6459 = vpow.pop %v6458
    %v6460 = vmul.f32 %v6231, 1.442695
    %v6461 = vpow.pop %v6460
    %v6462 = vmul.f32 %v6232, 1.442695
    %v6463 = vpow.pop %v6462
    %v6464 = vmul.f32 %v6233, 1.442695
    %v6465 = vpow.pop %v6464
    %v6466 = vmul.f32 %v6234, 1.442695
    %v6467 = vpow.pop %v6466
    %v6468 = vmul.f32 %v6235, 1.442695
    %v6469 = vpow.pop %v6468
    %v6470 = vmul.f32 %v6236, 1.442695
    %v6471 = vpow.pop %v6470
    %v6472 = vmul.f32 %v6237, 1.442695
    %v6473 = vpow.pop %v6472
    %v6474 = vmul.f32 %v6238, 1.442695
    %v6475 = vpow.pop %v6474
    %v6476 = vmul.f32 %v6239, 1.442695
    %v6477 = vpow.pop %v6476
    %v6478 = vmul.f32 %v6240, 1.442695
    %v6479 = vpow.pop %v6478
    %v6480 = vmul.f32 %v6241, 1.442695
    %v6481 = vpow.pop %v6480
    %v6482 = vmul.f32 %v6242, 1.442695
    %v6483 = vpow.pop %v6482
    %v6484 = vmul.f32 %v6243, 1.442695
    %v6485 = vpow.pop %v6484
    %v6486 = vmul.f32 %v6244, 1.442695
    %v6487 = vpow.pop %v6486
    %v6488 = vmul.f32 %v6245, 1.442695
    %v6489 = vpow.pop %v6488
    %v6490 = vmul.f32 %v6246, 1.442695
    %v6491 = vpow.pop %v6490
    %v6492 = vmul.f32 %v6247, 1.442695
    %v6493 = vpow.pop %v6492
    %v6494 = vmul.f32 %v6248, 1.442695
    %v6495 = vpow.pop %v6494
    %v6496 = vmul.f32 %v6249, 1.442695
    %v6497 = vpow.pop %v6496
    %v6498 = vmul.f32 %v6250, 1.442695
    %v6499 = vpow.pop %v6498
    %v6500 = vmul.f32 %v6251, 1.442695
    %v6501 = vpow.pop %v6500
    %v6502 = vmul.f32 %v6252, 1.442695
    %v6503 = vpow.pop %v6502
    %v6504 = vmul.f32 %v6253, 1.442695
    %v6505 = vpow.pop %v6504
    %v6506 = vadd.f32 %v6255, 1.0
    %v6507 = vadd.f32 %v6257, 1.0
    %v6508 = vadd.f32 %v6259, 1.0
    %v6509 = vadd.f32 %v6261, 1.0
    %v6510 = vadd.f32 %v6263, 1.0
    %v6511 = vadd.f32 %v6265, 1.0
    %v6512 = vadd.f32 %v6267, 1.0
    %v6513 = vadd.f32 %v6269, 1.0
    %v6514 = vadd.f32 %v6271, 1.0
    %v6515 = vadd.f32 %v6273, 1.0
    %v6516 = vadd.f32 %v6275, 1.0
    %v6517 = vadd.f32 %v6277, 1.0
    %v6518 = vadd.f32 %v6279, 1.0
    %v6519 = vadd.f32 %v6281, 1.0
    %v6520 = vadd.f32 %v6283, 1.0
    %v6521 = vadd.f32 %v6285, 1.0
    %v6522 = vadd.f32 %v6287, 1.0
    %v6523 = vadd.f32 %v6289, 1.0
    %v6524 = vadd.f32 %v6291, 1.0
    %v6525 = vadd.f32 %v6293, 1.0
    %v6526 = vadd.f32 %v6295, 1.0
    %v6527 = vadd.f32 %v6297, 1.0
    %v6528 = vadd.f32 %v6299, 1.0
    %v6529 = vadd.f32 %v6301, 1.0
    %v6530 = vadd.f32 %v6303, 1.0
    %v6531 = vadd.f32 %v6305, 1.0
    %v6532 = vadd.f32 %v6307, 1.0
    %v6533 = vadd.f32 %v6309, 1.0
    %v6534 = vadd.f32 %v6311, 1.0
    %v6535 = vadd.f32 %v6313, 1.0
    %v6536 = vadd.f32 %v6315, 1.0
    %v6537 = vadd.f32 %v6317, 1.0
    %v6538 = vadd.f32 %v6319, 1.0
    %v6539 = vadd.f32 %v6321, 1.0
    %v6540 = vadd.f32 %v6323, 1.0
    %v6541 = vadd.f32 %v6325, 1.0
    %v6542 = vadd.f32 %v6327, 1.0
    %v6543 = vadd.f32 %v6329, 1.0
    %v6544 = vadd.f32 %v6331, 1.0
    %v6545 = vadd.f32 %v6333, 1.0
    %v6546 = vadd.f32 %v6335, 1.0
    %v6547 = vadd.f32 %v6337, 1.0
    %v6548 = vadd.f32 %v6339, 1.0
    %v6549 = vadd.f32 %v6341, 1.0
    %v6550 = vadd.f32 %v6343, 1.0
    %v6551 = vadd.f32 %v6345, 1.0
    %v6552 = vadd.f32 %v6347, 1.0
    %v6553 = vadd.f32 %v6349, 1.0
    %v6554 = vadd.f32 %v6351, 1.0
    %v6555 = vadd.f32 %v6353, 1.0
    %v6556 = vadd.f32 %v6355, 1.0
    %v6557 = vadd.f32 %v6357, 1.0
    %v6558 = vadd.f32 %v6359, 1.0
    %v6559 = vadd.f32 %v6361, 1.0
    %v6560 = vadd.f32 %v6363, 1.0
    %v6561 = vadd.f32 %v6365, 1.0
    %v6562 = vadd.f32 %v6367, 1.0
    %v6563 = vadd.f32 %v6369, 1.0
    %v6564 = vadd.f32 %v6371, 1.0
    %v6565 = vadd.f32 %v6373, 1.0
    %v6566 = vadd.f32 %v6375, 1.0
    %v6567 = vadd.f32 %v6377, 1.0
    %v6568 = vadd.f32 %v6379, 1.0
    %v6569 = vadd.f32 %v6381, 1.0
    %v6570 = vadd.f32 %v6383, 1.0
    %v6571 = vadd.f32 %v6385, 1.0
    %v6572 = vadd.f32 %v6387, 1.0
    %v6573 = vadd.f32 %v6389, 1.0
    %v6574 = vadd.f32 %v6391, 1.0
    %v6575 = vadd.f32 %v6393, 1.0
    %v6576 = vadd.f32 %v6395, 1.0
    %v6577 = vadd.f32 %v6397, 1.0
    %v6578 = vadd.f32 %v6399, 1.0
    %v6579 = vadd.f32 %v6401, 1.0
    %v6580 = vadd.f32 %v6403, 1.0
    %v6581 = vadd.f32 %v6405, 1.0
    %v6582 = vadd.f32 %v6407, 1.0
    %v6583 = vadd.f32 %v6409, 1.0
    %v6584 = vadd.f32 %v6411, 1.0
    %v6585 = vadd.f32 %v6413, 1.0
    %v6586 = vadd.f32 %v6415, 1.0
    %v6587 = vadd.f32 %v6417, 1.0
    %v6588 = vadd.f32 %v6419, 1.0
    %v6589 = vadd.f32 %v6421, 1.0
    %v6590 = vadd.f32 %v6423, 1.0
    %v6591 = vadd.f32 %v6425, 1.0
    %v6592 = vadd.f32 %v6427, 1.0
    %v6593 = vadd.f32 %v6429, 1.0
    %v6594 = vadd.f32 %v6431, 1.0
    %v6595 = vadd.f32 %v6433, 1.0
    %v6596 = vadd.f32 %v6435, 1.0
    %v6597 = vadd.f32 %v6437, 1.0
    %v6598 = vadd.f32 %v6439, 1.0
    %v6599 = vadd.f32 %v6441, 1.0
    %v6600 = vadd.f32 %v6443, 1.0
    %v6601 = vadd.f32 %v6445, 1.0
    %v6602 = vadd.f32 %v6447, 1.0
    %v6603 = vadd.f32 %v6449, 1.0
    %v6604 = vadd.f32 %v6451, 1.0
    %v6605 = vadd.f32 %v6453, 1.0
    %v6606 = vadd.f32 %v6455, 1.0
    %v6607 = vadd.f32 %v6457, 1.0
    %v6608 = vadd.f32 %v6459, 1.0
    %v6609 = vadd.f32 %v6461, 1.0
    %v6610 = vadd.f32 %v6463, 1.0
    %v6611 = vadd.f32 %v6465, 1.0
    %v6612 = vadd.f32 %v6467, 1.0
    %v6613 = vadd.f32 %v6469, 1.0
    %v6614 = vadd.f32 %v6471, 1.0
    %v6615 = vadd.f32 %v6473, 1.0
    %v6616 = vadd.f32 %v6475, 1.0
    %v6617 = vadd.f32 %v6477, 1.0
    %v6618 = vadd.f32 %v6479, 1.0
    %v6619 = vadd.f32 %v6481, 1.0
    %v6620 = vadd.f32 %v6483, 1.0
    %v6621 = vadd.f32 %v6485, 1.0
    %v6622 = vadd.f32 %v6487, 1.0
    %v6623 = vadd.f32 %v6489, 1.0
    %v6624 = vadd.f32 %v6491, 1.0
    %v6625 = vadd.f32 %v6493, 1.0
    %v6626 = vadd.f32 %v6495, 1.0
    %v6627 = vadd.f32 %v6497, 1.0
    %v6628 = vadd.f32 %v6499, 1.0
    %v6629 = vadd.f32 %v6501, 1.0
    %v6630 = vadd.f32 %v6503, 1.0
    %v6631 = vadd.f32 %v6505, 1.0
    %v6632 = vrcp.pop %v6506
    %v6633 = vrcp.pop %v6507
    %v6634 = vrcp.pop %v6508
    %v6635 = vrcp.pop %v6509
    %v6636 = vrcp.pop %v6510
    %v6637 = vrcp.pop %v6511
    %v6638 = vrcp.pop %v6512
    %v6639 = vrcp.pop %v6513
    %v6640 = vrcp.pop %v6514
    %v6641 = vrcp.pop %v6515
    %v6642 = vrcp.pop %v6516
    %v6643 = vrcp.pop %v6517
    %v6644 = vrcp.pop %v6518
    %v6645 = vrcp.pop %v6519
    %v6646 = vrcp.pop %v6520
    %v6647 = vrcp.pop %v6521
    %v6648 = vrcp.pop %v6522
    %v6649 = vrcp.pop %v6523
    %v6650 = vrcp.pop %v6524
    %v6651 = vrcp.pop %v6525
    %v6652 = vrcp.pop %v6526
    %v6653 = vrcp.pop %v6527
    %v6654 = vrcp.pop %v6528
    %v6655 = vrcp.pop %v6529
    %v6656 = vrcp.pop %v6530
    %v6657 = vrcp.pop %v6531
    %v6658 = vrcp.pop %v6532
    %v6659 = vrcp.pop %v6533
    %v6660 = vrcp.pop %v6534
    %v6661 = vrcp.pop %v6535
    %v6662 = vrcp.pop %v6536
    %v6663 = vrcp.pop %v6537
    %v6664 = vrcp.pop %v6538
    %v6665 = vrcp.pop %v6539
    %v6666 = vrcp.pop %v6540
    %v6667 = vrcp.pop %v6541
    %v6668 = vrcp.pop %v6542
    %v6669 = vrcp.pop %v6543
    %v6670 = vrcp.pop %v6544
    %v6671 = vrcp.pop %v6545
    %v6672 = vrcp.pop %v6546
    %v6673 = vrcp.pop %v6547
    %v6674 = vrcp.pop %v6548
    %v6675 = vrcp.pop %v6549
    %v6676 = vrcp.pop %v6550
    %v6677 = vrcp.pop %v6551
    %v6678 = vrcp.pop %v6552
    %v6679 = vrcp.pop %v6553
    %v6680 = vrcp.pop %v6554
    %v6681 = vrcp.pop %v6555
    %v6682 = vrcp.pop %v6556
    %v6683 = vrcp.pop %v6557
    %v6684 = vrcp.pop %v6558
    %v6685 = vrcp.pop %v6559
    %v6686 = vrcp.pop %v6560
    %v6687 = vrcp.pop %v6561
    %v6688 = vrcp.pop %v6562
    %v6689 = vrcp.pop %v6563
    %v6690 = vrcp.pop %v6564
    %v6691 = vrcp.pop %v6565
    %v6692 = vrcp.pop %v6566
    %v6693 = vrcp.pop %v6567
    %v6694 = vrcp.pop %v6568
    %v6695 = vrcp.pop %v6569
    %v6696 = vrcp.pop %v6570
    %v6697 = vrcp.pop %v6571
    %v6698 = vrcp.pop %v6572
    %v6699 = vrcp.pop %v6573
    %v6700 = vrcp.pop %v6574
    %v6701 = vrcp.pop %v6575
    %v6702 = vrcp.pop %v6576
    %v6703 = vrcp.pop %v6577
    %v6704 = vrcp.pop %v6578
    %v6705 = vrcp.pop %v6579
    %v6706 = vrcp.pop %v6580
    %v6707 = vrcp.pop %v6581
    %v6708 = vrcp.pop %v6582
    %v6709 = vrcp.pop %v6583
    %v6710 = vrcp.pop %v6584
    %v6711 = vrcp.pop %v6585
    %v6712 = vrcp.pop %v6586
    %v6713 = vrcp.pop %v6587
    %v6714 = vrcp.pop %v6588
    %v6715 = vrcp.pop %v6589
    %v6716 = vrcp.pop %v6590
    %v6717 = vrcp.pop %v6591
    %v6718 = vrcp.pop %v6592
    %v6719 = vrcp.pop %v6593
    %v6720 = vrcp.pop %v6594
    %v6721 = vrcp.pop %v6595
    %v6722 = vrcp.pop %v6596
    %v6723 = vrcp.pop %v6597
    %v6724 = vrcp.pop %v6598
    %v6725 = vrcp.pop %v6599
    %v6726 = vrcp.pop %v6600
    %v6727 = vrcp.pop %v6601
    %v6728 = vrcp.pop %v6602
    %v6729 = vrcp.pop %v6603
    %v6730 = vrcp.pop %v6604
    %v6731 = vrcp.pop %v6605
    %v6732 = vrcp.pop %v6606
    %v6733 = vrcp.pop %v6607
    %v6734 = vrcp.pop %v6608
    %v6735 = vrcp.pop %v6609
    %v6736 = vrcp.pop %v6610
    %v6737 = vrcp.pop %v6611
    %v6738 = vrcp.pop %v6612
    %v6739 = vrcp.pop %v6613
    %v6740 = vrcp.pop %v6614
    %v6741 = vrcp.pop %v6615
    %v6742 = vrcp.pop %v6616
    %v6743 = vrcp.pop %v6617
    %v6744 = vrcp.pop %v6618
    %v6745 = vrcp.pop %v6619
    %v6746 = vrcp.pop %v6620
    %v6747 = vrcp.pop %v6621
    %v6748 = vrcp.pop %v6622
    %v6749 = vrcp.pop %v6623
    %v6750 = vrcp.pop %v6624
    %v6751 = vrcp.pop %v6625
    %v6752 = vrcp.pop %v6626
    %v6753 = vrcp.pop %v6627
    %v6754 = vrcp.pop %v6628
    %v6755 = vrcp.pop %v6629
    %v6756 = vrcp.pop %v6630
    %v6757 = vrcp.pop %v6631
    %vm6758 = vcmask 64512
    %6759 = vst.msk [vmem:[%s9] sm:$0xff] %vm6758, %v6632
    %6760 = vst.msk [vmem:[%s9 + $0x8] sm:$0xff] %vm6758, %v6633
    %6761 = vst.msk [vmem:[%s9 + $0x10] sm:$0xff] %vm6758, %v6634
    %6762 = vst.msk [vmem:[%s9 + $0x18] sm:$0xff] %vm6758, %v6635
    %6763 = vst.msk [vmem:[%s9 + $0x20] sm:$0xff] %vm6758, %v6636
    %6764 = vst.msk [vmem:[%s9 + $0x28] sm:$0xff] %vm6758, %v6637
    %6765 = vst.msk [vmem:[%s9 + $0x30] sm:$0xff] %vm6758, %v6638
    %6766 = vst.msk [vmem:[%s9 + $0x38] sm:$0xff] %vm6758, %v6639
    %6767 = vst.msk [vmem:[%s9 + $0x40] sm:$0xff] %vm6758, %v6640
    %6768 = vst.msk [vmem:[%s9 + $0x48] sm:$0xff] %vm6758, %v6641
    %6769 = vst.msk [vmem:[%s9 + $0x50] sm:$0xff] %vm6758, %v6642
    %6770 = vst.msk [vmem:[%s9 + $0x58] sm:$0xff] %vm6758, %v6643
    %6771 = vst.msk [vmem:[%s9 + $0x60] sm:$0xff] %vm6758, %v6644
    %6772 = vst.msk [vmem:[%s9 + $0x68] sm:$0xff] %vm6758, %v6645
    %6773 = vst.msk [vmem:[%s9 + $0x70] sm:$0xff] %vm6758, %v6646
    %6774 = vst.msk [vmem:[%s9 + $0x78] sm:$0xff] %vm6758, %v6647
    %6775 = vst.msk [vmem:[%s9 + $0x80] sm:$0xff] %vm6758, %v6648
    %6776 = vst.msk [vmem:[%s9 + $0x88] sm:$0xff] %vm6758, %v6649
    %6777 = vst.msk [vmem:[%s9 + $0x90] sm:$0xff] %vm6758, %v6650
    %6778 = vst.msk [vmem:[%s9 + $0x98] sm:$0xff] %vm6758, %v6651
    %6779 = vst.msk [vmem:[%s9 + $0xa0] sm:$0xff] %vm6758, %v6652
    %6780 = vst.msk [vmem:[%s9 + $0xa8] sm:$0xff] %vm6758, %v6653
    %6781 = vst.msk [vmem:[%s9 + $0xb0] sm:$0xff] %vm6758, %v6654
    %6782 = vst.msk [vmem:[%s9 + $0xb8] sm:$0xff] %vm6758, %v6655
    %6783 = vst.msk [vmem:[%s9 + $0xc0] sm:$0xff] %vm6758, %v6656
    %6784 = vst.msk [vmem:[%s9 + $0xc8] sm:$0xff] %vm6758, %v6657
    %6785 = vst.msk [vmem:[%s9 + $0xd0] sm:$0xff] %vm6758, %v6658
    %6786 = vst.msk [vmem:[%s9 + $0xd8] sm:$0xff] %vm6758, %v6659
    %6787 = vst.msk [vmem:[%s9 + $0xe0] sm:$0xff] %vm6758, %v6660
    %6788 = vst.msk [vmem:[%s9 + $0xe8] sm:$0xff] %vm6758, %v6661
    %6789 = vst.msk [vmem:[%s9 + $0xf0] sm:$0xff] %vm6758, %v6662
    %6790 = vst.msk [vmem:[%s9 + $0xf8] sm:$0xff] %vm6758, %v6663
    %6791 = vst.msk [vmem:[%s9 + $0x100] sm:$0xff] %vm6758, %v6664
    %6792 = vst.msk [vmem:[%s9 + $0x108] sm:$0xff] %vm6758, %v6665
    %6793 = vst.msk [vmem:[%s9 + $0x110] sm:$0xff] %vm6758, %v6666
    %6794 = vst.msk [vmem:[%s9 + $0x118] sm:$0xff] %vm6758, %v6667
    %6795 = vst.msk [vmem:[%s9 + $0x120] sm:$0xff] %vm6758, %v6668
    %6796 = vst.msk [vmem:[%s9 + $0x128] sm:$0xff] %vm6758, %v6669
    %6797 = vst.msk [vmem:[%s9 + $0x130] sm:$0xff] %vm6758, %v6670
    %6798 = vst.msk [vmem:[%s9 + $0x138] sm:$0xff] %vm6758, %v6671
    %6799 = vst.msk [vmem:[%s9 + $0x140] sm:$0xff] %vm6758, %v6672
    %6800 = vst.msk [vmem:[%s9 + $0x148] sm:$0xff] %vm6758, %v6673
    %6801 = vst.msk [vmem:[%s9 + $0x150] sm:$0xff] %vm6758, %v6674
    %6802 = vst.msk [vmem:[%s9 + $0x158] sm:$0xff] %vm6758, %v6675
    %6803 = vst.msk [vmem:[%s9 + $0x160] sm:$0xff] %vm6758, %v6676
    %6804 = vst.msk [vmem:[%s9 + $0x168] sm:$0xff] %vm6758, %v6677
    %6805 = vst.msk [vmem:[%s9 + $0x170] sm:$0xff] %vm6758, %v6678
    %6806 = vst.msk [vmem:[%s9 + $0x178] sm:$0xff] %vm6758, %v6679
    %6807 = vst.msk [vmem:[%s9 + $0x180] sm:$0xff] %vm6758, %v6680
    %6808 = vst.msk [vmem:[%s9 + $0x188] sm:$0xff] %vm6758, %v6681
    %6809 = vst.msk [vmem:[%s9 + $0x190] sm:$0xff] %vm6758, %v6682
    %6810 = vst.msk [vmem:[%s9 + $0x198] sm:$0xff] %vm6758, %v6683
    %6811 = vst.msk [vmem:[%s9 + $0x1a0] sm:$0xff] %vm6758, %v6684
    %6812 = vst.msk [vmem:[%s9 + $0x1a8] sm:$0xff] %vm6758, %v6685
    %6813 = vst.msk [vmem:[%s9 + $0x1b0] sm:$0xff] %vm6758, %v6686
    %6814 = vst.msk [vmem:[%s9 + $0x1b8] sm:$0xff] %vm6758, %v6687
    %6815 = vst.msk [vmem:[%s9 + $0x1c0] sm:$0xff] %vm6758, %v6688
    %6816 = vst.msk [vmem:[%s9 + $0x1c8] sm:$0xff] %vm6758, %v6689
    %6817 = vst.msk [vmem:[%s9 + $0x1d0] sm:$0xff] %vm6758, %v6690
    %6818 = vst.msk [vmem:[%s9 + $0x1d8] sm:$0xff] %vm6758, %v6691
    %6819 = vst.msk [vmem:[%s9 + $0x1e0] sm:$0xff] %vm6758, %v6692
    %6820 = vst.msk [vmem:[%s9 + $0x1e8] sm:$0xff] %vm6758, %v6693
    %6821 = vst.msk [vmem:[%s9 + $0x1f0] sm:$0xff] %vm6758, %v6694
    %6822 = vst.msk [vmem:[%s9 + $0x1f8] sm:$0xff] %vm6758, %v6695
    %6823 = vst.msk [vmem:[%s9 + $0x200] sm:$0xff] %vm6758, %v6696
    %6824 = vst.msk [vmem:[%s9 + $0x208] sm:$0xff] %vm6758, %v6697
    %6825 = vst.msk [vmem:[%s9 + $0x210] sm:$0xff] %vm6758, %v6698
    %6826 = vst.msk [vmem:[%s9 + $0x218] sm:$0xff] %vm6758, %v6699
    %6827 = vst.msk [vmem:[%s9 + $0x220] sm:$0xff] %vm6758, %v6700
    %6828 = vst.msk [vmem:[%s9 + $0x228] sm:$0xff] %vm6758, %v6701
    %6829 = vst.msk [vmem:[%s9 + $0x230] sm:$0xff] %vm6758, %v6702
    %6830 = vst.msk [vmem:[%s9 + $0x238] sm:$0xff] %vm6758, %v6703
    %6831 = vst.msk [vmem:[%s9 + $0x240] sm:$0xff] %vm6758, %v6704
    %6832 = vst.msk [vmem:[%s9 + $0x248] sm:$0xff] %vm6758, %v6705
    %6833 = vst.msk [vmem:[%s9 + $0x250] sm:$0xff] %vm6758, %v6706
    %6834 = vst.msk [vmem:[%s9 + $0x258] sm:$0xff] %vm6758, %v6707
    %6835 = vst.msk [vmem:[%s9 + $0x260] sm:$0xff] %vm6758, %v6708
    %6836 = vst.msk [vmem:[%s9 + $0x268] sm:$0xff] %vm6758, %v6709
    %6837 = vst.msk [vmem:[%s9 + $0x270] sm:$0xff] %vm6758, %v6710
    %6838 = vst.msk [vmem:[%s9 + $0x278] sm:$0xff] %vm6758, %v6711
    %6839 = vst.msk [vmem:[%s9 + $0x280] sm:$0xff] %vm6758, %v6712
    %6840 = vst.msk [vmem:[%s9 + $0x288] sm:$0xff] %vm6758, %v6713
    %6841 = vst.msk [vmem:[%s9 + $0x290] sm:$0xff] %vm6758, %v6714
    %6842 = vst.msk [vmem:[%s9 + $0x298] sm:$0xff] %vm6758, %v6715
    %6843 = vst.msk [vmem:[%s9 + $0x2a0] sm:$0xff] %vm6758, %v6716
    %6844 = vst.msk [vmem:[%s9 + $0x2a8] sm:$0xff] %vm6758, %v6717
    %6845 = vst.msk [vmem:[%s9 + $0x2b0] sm:$0xff] %vm6758, %v6718
    %6846 = vst.msk [vmem:[%s9 + $0x2b8] sm:$0xff] %vm6758, %v6719
    %6847 = vst.msk [vmem:[%s9 + $0x2c0] sm:$0xff] %vm6758, %v6720
    %6848 = vst.msk [vmem:[%s9 + $0x2c8] sm:$0xff] %vm6758, %v6721
    %6849 = vst.msk [vmem:[%s9 + $0x2d0] sm:$0xff] %vm6758, %v6722
    %6850 = vst.msk [vmem:[%s9 + $0x2d8] sm:$0xff] %vm6758, %v6723
    %6851 = vst.msk [vmem:[%s9 + $0x2e0] sm:$0xff] %vm6758, %v6724
    %6852 = vst.msk [vmem:[%s9 + $0x2e8] sm:$0xff] %vm6758, %v6725
    %6853 = vst.msk [vmem:[%s9 + $0x2f0] sm:$0xff] %vm6758, %v6726
    %6854 = vst.msk [vmem:[%s9 + $0x2f8] sm:$0xff] %vm6758, %v6727
    %6855 = vst.msk [vmem:[%s9 + $0x300] sm:$0xff] %vm6758, %v6728
    %6856 = vst.msk [vmem:[%s9 + $0x308] sm:$0xff] %vm6758, %v6729
    %6857 = vst.msk [vmem:[%s9 + $0x310] sm:$0xff] %vm6758, %v6730
    %6858 = vst.msk [vmem:[%s9 + $0x318] sm:$0xff] %vm6758, %v6731
    %6859 = vst.msk [vmem:[%s9 + $0x320] sm:$0xff] %vm6758, %v6732
    %6860 = vst.msk [vmem:[%s9 + $0x328] sm:$0xff] %vm6758, %v6733
    %6861 = vst.msk [vmem:[%s9 + $0x330] sm:$0xff] %vm6758, %v6734
    %6862 = vst.msk [vmem:[%s9 + $0x338] sm:$0xff] %vm6758, %v6735
    %6863 = vst.msk [vmem:[%s9 + $0x340] sm:$0xff] %vm6758, %v6736
    %6864 = vst.msk [vmem:[%s9 + $0x348] sm:$0xff] %vm6758, %v6737
    %6865 = vst.msk [vmem:[%s9 + $0x350] sm:$0xff] %vm6758, %v6738
    %6866 = vst.msk [vmem:[%s9 + $0x358] sm:$0xff] %vm6758, %v6739
    %6867 = vst.msk [vmem:[%s9 + $0x360] sm:$0xff] %vm6758, %v6740
    %6868 = vst.msk [vmem:[%s9 + $0x368] sm:$0xff] %vm6758, %v6741
    %6869 = vst.msk [vmem:[%s9 + $0x370] sm:$0xff] %vm6758, %v6742
    %6870 = vst.msk [vmem:[%s9 + $0x378] sm:$0xff] %vm6758, %v6743
    %6871 = vst.msk [vmem:[%s9 + $0x380] sm:$0xff] %vm6758, %v6744
    %6872 = vst.msk [vmem:[%s9 + $0x388] sm:$0xff] %vm6758, %v6745
    %6873 = vst.msk [vmem:[%s9 + $0x390] sm:$0xff] %vm6758, %v6746
    %6874 = vst.msk [vmem:[%s9 + $0x398] sm:$0xff] %vm6758, %v6747
    %6875 = vst.msk [vmem:[%s9 + $0x3a0] sm:$0xff] %vm6758, %v6748
    %6876 = vst.msk [vmem:[%s9 + $0x3a8] sm:$0xff] %vm6758, %v6749
    %6877 = vst.msk [vmem:[%s9 + $0x3b0] sm:$0xff] %vm6758, %v6750
    %6878 = vst.msk [vmem:[%s9 + $0x3b8] sm:$0xff] %vm6758, %v6751
    %6879 = vst.msk [vmem:[%s9 + $0x3c0] sm:$0xff] %vm6758, %v6752
    %6880 = vst.msk [vmem:[%s9 + $0x3c8] sm:$0xff] %vm6758, %v6753
    %6881 = vst.msk [vmem:[%s9 + $0x3d0] sm:$0xff] %vm6758, %v6754
    %6882 = vst.msk [vmem:[%s9 + $0x3d8] sm:$0xff] %vm6758, %v6755
    %6883 = vst.msk [vmem:[%s9 + $0x3e0] sm:$0xff] %vm6758, %v6756
    %6884 = vst.msk [vmem:[%s9 + $0x3e8] sm:$0xff] %vm6758, %v6757
    // Predicated region
    $region30: #{_forward_impl.2} parent=1 // pred_check
      _
    $region31: #{_forward_impl.2} parent=1 // pred_check_branch
      %6886 = sbr.rel (0) target = $region33
    $region32: #{_forward_impl.2} parent=1 // pred_region
      _
    $region33: #{_forward_impl.2} parent=1 // pred_fallthru
      _
    // Predicated region
    $region34: #{_forward_impl.2} parent=1 // pred_check
      _
    $region35: #{_forward_impl.2} parent=1 // pred_check_branch
      %6888 = sbr.rel (0) target = $region37
    $region36: #{_forward_impl.2} parent=1 // pred_region
      _
    $region37: #{_forward_impl.2} parent=1 // pred_fallthru
      _

</llo_original>
